<compile_context>
chip_gen: v5e
topology: v5e:2x2
jax: 0.10.0
libtpu: 0.0.40
codegen_flags: <defaults>
</compile_context>

<pallas_src>
import numpy as np

import jax
import jax.numpy as jnp
from jax.experimental import pallas as pl
from jax.experimental.pallas import tpu as pltpu


# ---------------------------------------------------------------------------
# The single fused Pallas kernel
# ---------------------------------------------------------------------------

def _nn_for_mnist_kernel(x4_ref, m1_ref, b1_ref, m2_ref, b2_ref,
                         wfc1_ref, bfc1_ref, wfc2_ref, bfc2_ref, out_ref):
    """One grid step processes `bt` samples, batch-interleaved into rows.

    x4_ref : (1, 4*7*bt, 28) input rows re-grouped by (row mod 4); inside a
                             parity group the row index is r*bt + b.
    m1_ref : (5, 28, 288)    conv1 Toeplitz weights, cols = (wpar, wpair, c1)
    m2_ref : (5, 144, 160)   conv2 Toeplitz weights, cols = (wpar, wpair, c2)
    wfc1_ref:(4, 80, 50)     fc1 weights split by pooled-H row, NCHW-permuted
    out_ref: (bt, 12)
    """
    bt = out_ref.shape[0]              # per-tile batch size (static)
    f32 = jnp.float32
    rows_per_group = 7 * bt

    def x_rows(t, n_rows):
        # Rows r = t//4 .. t//4 + n_rows - 1 of parity group (t % 4);
        # row layout inside the group is r*bt + b (batch-interleaved).
        base = (t % 4) * rows_per_group + (t // 4) * bt
        return x4_ref[0, base:base + n_rows * bt, :]

    # ---- conv1 + 2x2 max-pool + ReLU --------------------------------------
    # h1[q] rows = (p1'', b) where the pooled row index p1 = 2*p1'' + q;
    # columns = (pooled_w 0..11, c1 0..11) -> 144 lanes.
    h1 = []
    for q in (0, 1):                   # parity of the pooled output row
        acc = []
        for i in (0, 1):               # pooling parity along conv-output H
            a = None
            for kh in range(5):
                t = kh + i + 2 * q     # input row offset = 4*p1'' + t
                p = jnp.dot(x_rows(t, 6), m1_ref[kh],
                            preferred_element_type=f32)
                a = p if a is None else a + p          # (6*bt, 288)
            acc.append(a)
        pre = jnp.maximum(acc[0], acc[1])              # pool over H
        pooled = jnp.maximum(pre[:, :144], pre[:, 144:])   # pool over W
        h1.append(jnp.maximum(pooled + b1_ref[...], 0.0))  # bias + ReLU

    # ---- conv2 + 2x2 max-pool + ReLU --------------------------------------
    # TODO(synk): nn.Dropout2d is identity in eval mode; training-mode channel
    # dropout (pltpu.prng_* masking) is not implemented here.
    acc2 = []
    for i2 in (0, 1):                  # pooling parity along conv2-output H
        a = None
        for kh in range(5):
            t = i2 + kh                # needed h1 row = 2*ph2 + t
            lhs = h1[t % 2][(t // 2) * bt:(t // 2 + 4) * bt, :]
            p = jnp.dot(lhs, m2_ref[kh], preferred_element_type=f32)
            a = p if a is None else a + p              # (4*bt, 160)
        acc2.append(a)
    pre2 = jnp.maximum(acc2[0], acc2[1])               # pool over H
    pooled2 = jnp.maximum(pre2[:, :80], pre2[:, 80:])  # pool over W
    h2 = jnp.maximum(pooled2 + b2_ref[...], 0.0)       # (4*bt, 80): rows (ph2,b)

    # ---- fc1 (NCHW flatten folded into weight rows) + ReLU -----------------
    f = None
    for ph in range(4):
        p = jnp.dot(h2[ph * bt:(ph + 1) * bt, :], wfc1_ref[ph],
                    preferred_element_type=f32)
        f = p if f is None else f + p                  # (bt, 50)
    # TODO(synk): F.dropout(training=self.training) is identity at inference.
    f = jnp.maximum(f + bfc1_ref[...], 0.0)

    # ---- fc2 + log_softmax --------------------------------------------------
    logits = jnp.dot(f, wfc2_ref[...], preferred_element_type=f32) + bfc2_ref[...]
    m = jnp.max(logits, axis=-1, keepdims=True)
    s = logits - m
    lse = jnp.log(jnp.sum(jnp.exp(s), axis=-1, keepdims=True))
    out_ref[...] = (s - lse).astype(out_ref.dtype)


# ---------------------------------------------------------------------------
# Host-side (one-time) weight packing
# ---------------------------------------------------------------------------

def init_raw_params(key):
    """Raw weights in the exact PyTorch layouts of NNForMnist."""
    ks = jax.random.split(key, 8)
    conv1_w = jax.random.normal(ks[0], (12, 1, 5, 5), jnp.float32) * 0.10
    conv1_b = jax.random.normal(ks[1], (12,), jnp.float32) * 0.01
    conv2_w = jax.random.normal(ks[2], (20, 12, 5, 5), jnp.float32) * 0.05
    conv2_b = jax.random.normal(ks[3], (20,), jnp.float32) * 0.01
    fc1_w = jax.random.normal(ks[4], (50, 320), jnp.float32) * 0.05
    fc1_b = jax.random.normal(ks[5], (50,), jnp.float32) * 0.01
    fc2_w = jax.random.normal(ks[6], (12, 50), jnp.float32) * 0.10
    fc2_b = jax.random.normal(ks[7], (12,), jnp.float32) * 0.01
    return (conv1_w, conv1_b, conv2_w, conv2_b, fc1_w, fc1_b, fc2_w, fc2_b)


def pack_params(conv1_w, conv1_b, conv2_w, conv2_b, fc1_w, fc1_b, fc2_w, fc2_b):
    """Pack PyTorch-layout weights into the kernel's matmul-friendly layouts."""
    w1 = np.asarray(conv1_w, np.float32)   # (12, 1, 5, 5)  (c_out, 1, kh, kw)
    w2 = np.asarray(conv2_w, np.float32)   # (20, 12, 5, 5) (c2, c1, kh, kw)
    f1 = np.asarray(fc1_w, np.float32)     # (50, 320)
    f2 = np.asarray(fc2_w, np.float32)     # (12, 50)

    # conv1: M1[kh, w_in, j*144 + pw*12 + c] = w1[c, 0, kh, w_in - (2*pw + j)]
    m1 = np.zeros((5, 28, 2, 12, 12), np.float32)
    for kh in range(5):
        for kw in range(5):
            for j in range(2):
                for pw in range(12):
                    m1[kh, 2 * pw + j + kw, j, pw, :] = w1[:, 0, kh, kw]
    m1 = m1.reshape(5, 28, 288)

    # conv2: M2[kh, ow1*12 + c1, j2*80 + pw2*20 + c2]
    #          = w2[c2, c1, kh, ow1 - (2*pw2 + j2)]
    m2 = np.zeros((5, 12, 12, 2, 4, 20), np.float32)
    for kh in range(5):
        for kw in range(5):
            for j2 in range(2):
                for pw2 in range(4):
                    m2[kh, 2 * pw2 + j2 + kw, :, j2, pw2, :] = w2[:, :, kh, kw].T
    m2 = m2.reshape(5, 144, 160)

    # fc1: NCHW flatten (f = c2*16 + ph*4 + pw) folded into the weight rows:
    # Wfc1[ph, pw*20 + c2, n] = fc1_w[n, c2*16 + ph*4 + pw]
    wfc1 = np.zeros((4, 4, 20, 50), np.float32)
    for ph in range(4):
        for pw in range(4):
            for c2 in range(20):
                wfc1[ph, pw, c2, :] = f1[:, c2 * 16 + ph * 4 + pw]
    wfc1 = wfc1.reshape(4, 80, 50)

    return dict(
        m1=jnp.asarray(m1),
        b1t=jnp.asarray(np.tile(np.asarray(conv1_b, np.float32), 12).reshape(1, 144)),
        m2=jnp.asarray(m2),
        b2t=jnp.asarray(np.tile(np.asarray(conv2_b, np.float32), 4).reshape(1, 80)),
        wfc1=jnp.asarray(wfc1),
        bfc1=jnp.asarray(np.asarray(fc1_b, np.float32).reshape(1, 50)),
        wfc2=jnp.asarray(np.ascontiguousarray(f2.T)),   # (50, 12)
        bfc2=jnp.asarray(np.asarray(fc2_b, np.float32).reshape(1, 12)),
    )


# ---------------------------------------------------------------------------
# Forward pass (single fused pallas_call; batch tiled over a parallel grid)
# ---------------------------------------------------------------------------

def nn_for_mnist_forward(x_nchw, params, *, batch_tile=None):
    B, C, H, W = x_nchw.shape
    assert (C, H, W) == (1, 28, 28), "NNForMnist's 320-dim view requires 1x28x28 input"

    bt = batch_tile if batch_tile is not None else min(B, 128)
    if B % bt != 0:
        bt = B
    nt = B // bt

    x = x_nchw.reshape(B, 28, 28).astype(jnp.float32)
    # Tiny host-side row re-layout (replaces any im2col HBM blow-up):
    # x4[tile, m*7*bt + r*bt + b, :] = x[tile*bt + b, 4*r + m, :]  so every
    # shifted-window / pooling-parity row group is a CONTIGUOUS in-kernel slice.
    x4 = x.reshape(nt, bt, 7, 4, 28)
    x4 = jnp.transpose(x4, (0, 3, 2, 1, 4)).reshape(nt, 4 * 7 * bt, 28)

    operands = (x4, params["m1"], params["b1t"], params["m2"], params["b2t"],
                params["wfc1"], params["bfc1"], params["wfc2"], params["bfc2"])

    flops = B * (2 * 6 * 28 * 288 * 20        # conv1 (Toeplitz matmuls)
                 + 2 * 4 * 144 * 160 * 10     # conv2
                 + 2 * 80 * 50 * 4            # fc1
                 + 2 * 50 * 12)               # fc2
    bytes_accessed = sum(int(np.prod(o.shape)) * 4 for o in operands) + B * 12 * 4

    return pl.pallas_call(
        _nn_for_mnist_kernel,
        out_shape=jax.ShapeDtypeStruct((B, 12), jnp.float32),
        grid=(nt,),
        in_specs=[
            pl.BlockSpec((1, 4 * 7 * bt, 28), lambda i: (i, 0, 0)),
            pl.BlockSpec((5, 28, 288), lambda i: (0, 0, 0)),
            pl.BlockSpec((1, 144), lambda i: (0, 0)),
            pl.BlockSpec((5, 144, 160), lambda i: (0, 0, 0)),
            pl.BlockSpec((1, 80), lambda i: (0, 0)),
            pl.BlockSpec((4, 80, 50), lambda i: (0, 0, 0)),
            pl.BlockSpec((1, 50), lambda i: (0, 0)),
            pl.BlockSpec((50, 12), lambda i: (0, 0)),
            pl.BlockSpec((1, 12), lambda i: (0, 0)),
        ],
        out_specs=pl.BlockSpec((bt, 12), lambda i: (i, 0)),
        compiler_params=pltpu.CompilerParams(
            dimension_semantics=("parallel",)),      # megacore-shards batch tiles
        cost_estimate=pl.CostEstimate(
            flops=int(flops), transcendentals=int(13 * B),
            bytes_accessed=int(bytes_accessed)),
    )(*operands)


# ---------------------------------------------------------------------------
# Pure-JAX reference (for correctness checking only)
# ---------------------------------------------------------------------------

def reference_forward(x, raw):
    conv1_w, conv1_b, conv2_w, conv2_b, fc1_w, fc1_b, fc2_w, fc2_b = raw

    def conv(h, w, b):
        y = jax.lax.conv_general_dilated(
            h, w, (1, 1), "VALID",
            dimension_numbers=("NCHW", "OIHW", "NCHW"))
        return y + b.reshape(1, -1, 1, 1)

    def maxpool2(h):
        return jax.lax.reduce_window(h, -jnp.inf, jax.lax.max,
                                     (1, 1, 2, 2), (1, 1, 2, 2), "VALID")

    h = jax.nn.relu(maxpool2(conv(x, conv1_w, conv1_b)))
    h = jax.nn.relu(maxpool2(conv(h, conv2_w, conv2_b)))
    h = h.reshape(h.shape[0], -1)                       # NCHW flatten -> 320
    h = jax.nn.relu(h @ fc1_w.T + fc1_b)
    h = h @ fc2_w.T + fc2_b
    return jax.nn.log_softmax(h, axis=1)


# ---------------------------------------------------------------------------
# Main
# ---------------------------------------------------------------------------

if __name__ == "__main__":
    key = jax.random.PRNGKey(0)
    k_x, k_p = jax.random.split(key)

    # MNIST-shaped input (the 320-dim view in forward() requires 1x28x28).
    x = jax.random.normal(k_x, (2, 1, 28, 28), jnp.float32)
    raw = init_raw_params(k_p)
    params = pack_params(*raw)

    fwd = jax.jit(nn_for_mnist_forward)
    out = jax.block_until_ready(fwd(x, params))

    assert out.shape == (2, 12), out.shape
    # log_softmax sanity: exp(out) rows sum to 1.
    row_sums = jnp.exp(out).sum(axis=-1)
    assert bool(jnp.allclose(row_sums, 1.0, atol=1e-4)), row_sums

    # Cross-check the fused kernel against a plain-JAX reference.
    ref = jax.block_until_ready(jax.jit(reference_forward)(x, raw))
    max_err = float(jnp.max(jnp.abs(out - ref)))
    assert max_err < 1e-2, f"mismatch vs reference: max|diff|={max_err}"

    print("KERNEL_OK")
</pallas_src>

<mosaic_0001>
module attributes {stable_mosaic.version = 11 : i64} {
  func.func @_nn_for_mnist_kernel(%arg0: i32, %arg1: memref<1x56x28xf32, #tpu.memory_space<vmem>>, %arg2: memref<5x28x288xf32, #tpu.memory_space<vmem>>, %arg3: memref<1x144xf32, #tpu.memory_space<vmem>>, %arg4: memref<5x144x160xf32, #tpu.memory_space<vmem>>, %arg5: memref<1x80xf32, #tpu.memory_space<vmem>>, %arg6: memref<4x80x50xf32, #tpu.memory_space<vmem>>, %arg7: memref<1x50xf32, #tpu.memory_space<vmem>>, %arg8: memref<50x12xf32, #tpu.memory_space<vmem>>, %arg9: memref<1x12xf32, #tpu.memory_space<vmem>>, %arg10: memref<2x12xf32, #tpu.memory_space<vmem>>) attributes {dimension_semantics = [#tpu.dimension_semantics<parallel>], iteration_bounds = array<i64: 1>, scalar_prefetch = 0 : i64, scratch_operands = 0 : i64, tpu.core_type = #tpu.core_type<tc>, window_params = [{transform_indices = @transform_0, window_bounds = array<i64: 1, 56, 28>}, {pipeline_mode = #tpu.pipeline_mode<synchronous>, transform_indices = @transform_1, window_bounds = array<i64: 5, 28, 288>}, {pipeline_mode = #tpu.pipeline_mode<synchronous>, transform_indices = @transform_2, window_bounds = array<i64: 1, 144>}, {pipeline_mode = #tpu.pipeline_mode<synchronous>, transform_indices = @transform_3, window_bounds = array<i64: 5, 144, 160>}, {pipeline_mode = #tpu.pipeline_mode<synchronous>, transform_indices = @transform_4, window_bounds = array<i64: 1, 80>}, {pipeline_mode = #tpu.pipeline_mode<synchronous>, transform_indices = @transform_5, window_bounds = array<i64: 4, 80, 50>}, {pipeline_mode = #tpu.pipeline_mode<synchronous>, transform_indices = @transform_6, window_bounds = array<i64: 1, 50>}, {pipeline_mode = #tpu.pipeline_mode<synchronous>, transform_indices = @transform_7, window_bounds = array<i64: 50, 12>}, {pipeline_mode = #tpu.pipeline_mode<synchronous>, transform_indices = @transform_8, window_bounds = array<i64: 1, 12>}, {transform_indices = @transform_9, window_bounds = array<i64: 2, 12>}]} {
    %c0 = arith.constant 0 : index
    %c0_0 = arith.constant 0 : index
    %c0_1 = arith.constant 0 : index
    %0 = vector.load %arg1[%c0, %c0_0, %c0_1] : memref<1x56x28xf32, #tpu.memory_space<vmem>>, vector<1x12x28xf32>
    %1 = vector.shape_cast %0 : vector<1x12x28xf32> to vector<12x28xf32>
    %c0_2 = arith.constant 0 : index
    %c0_3 = arith.constant 0 : index
    %c0_4 = arith.constant 0 : index
    %2 = vector.load %arg2[%c0_2, %c0_3, %c0_4] : memref<5x28x288xf32, #tpu.memory_space<vmem>>, vector<1x28x288xf32>
    %3 = vector.shape_cast %2 : vector<1x28x288xf32> to vector<28x288xf32>
    %cst = arith.constant dense<0.000000e+00> : vector<12x288xf32>
    %4 = tpu.matmul %1, %3, %cst {dimension_numbers = #tpu.dot_dimension_numbers<[1], [0], [0], [1], [0, 0, 1, 1], [], []>} : vector<12x28xf32>, vector<28x288xf32>, vector<12x288xf32> -> vector<12x288xf32>
    %c0_5 = arith.constant 0 : index
    %c14 = arith.constant 14 : index
    %c0_6 = arith.constant 0 : index
    %5 = vector.load %arg1[%c0_5, %c14, %c0_6] : memref<1x56x28xf32, #tpu.memory_space<vmem>>, vector<1x12x28xf32>
    %6 = vector.shape_cast %5 : vector<1x12x28xf32> to vector<12x28xf32>
    %c1 = arith.constant 1 : index
    %c0_7 = arith.constant 0 : index
    %c0_8 = arith.constant 0 : index
    %7 = vector.load %arg2[%c1, %c0_7, %c0_8] : memref<5x28x288xf32, #tpu.memory_space<vmem>>, vector<1x28x288xf32>
    %8 = vector.shape_cast %7 : vector<1x28x288xf32> to vector<28x288xf32>
    %cst_9 = arith.constant dense<0.000000e+00> : vector<12x288xf32>
    %9 = tpu.matmul %6, %8, %cst_9 {dimension_numbers = #tpu.dot_dimension_numbers<[1], [0], [0], [1], [0, 0, 1, 1], [], []>} : vector<12x28xf32>, vector<28x288xf32>, vector<12x288xf32> -> vector<12x288xf32>
    %10 = arith.addf %4, %9 : vector<12x288xf32>
    %c0_10 = arith.constant 0 : index
    %c28 = arith.constant 28 : index
    %c0_11 = arith.constant 0 : index
    %11 = vector.load %arg1[%c0_10, %c28, %c0_11] : memref<1x56x28xf32, #tpu.memory_space<vmem>>, vector<1x12x28xf32>
    %12 = vector.shape_cast %11 : vector<1x12x28xf32> to vector<12x28xf32>
    %c2 = arith.constant 2 : index
    %c0_12 = arith.constant 0 : index
    %c0_13 = arith.constant 0 : index
    %13 = vector.load %arg2[%c2, %c0_12, %c0_13] : memref<5x28x288xf32, #tpu.memory_space<vmem>>, vector<1x28x288xf32>
    %14 = vector.shape_cast %13 : vector<1x28x288xf32> to vector<28x288xf32>
    %cst_14 = arith.constant dense<0.000000e+00> : vector<12x288xf32>
    %15 = tpu.matmul %12, %14, %cst_14 {dimension_numbers = #tpu.dot_dimension_numbers<[1], [0], [0], [1], [0, 0, 1, 1], [], []>} : vector<12x28xf32>, vector<28x288xf32>, vector<12x288xf32> -> vector<12x288xf32>
    %16 = arith.addf %10, %15 : vector<12x288xf32>
    %c0_15 = arith.constant 0 : index
    %c42 = arith.constant 42 : index
    %c0_16 = arith.constant 0 : index
    %17 = vector.load %arg1[%c0_15, %c42, %c0_16] : memref<1x56x28xf32, #tpu.memory_space<vmem>>, vector<1x12x28xf32>
    %18 = vector.shape_cast %17 : vector<1x12x28xf32> to vector<12x28xf32>
    %c3 = arith.constant 3 : index
    %c0_17 = arith.constant 0 : index
    %c0_18 = arith.constant 0 : index
    %19 = vector.load %arg2[%c3, %c0_17, %c0_18] : memref<5x28x288xf32, #tpu.memory_space<vmem>>, vector<1x28x288xf32>
    %20 = vector.shape_cast %19 : vector<1x28x288xf32> to vector<28x288xf32>
    %cst_19 = arith.constant dense<0.000000e+00> : vector<12x288xf32>
    %21 = tpu.matmul %18, %20, %cst_19 {dimension_numbers = #tpu.dot_dimension_numbers<[1], [0], [0], [1], [0, 0, 1, 1], [], []>} : vector<12x28xf32>, vector<28x288xf32>, vector<12x288xf32> -> vector<12x288xf32>
    %22 = arith.addf %16, %21 : vector<12x288xf32>
    %c0_20 = arith.constant 0 : index
    %c2_21 = arith.constant 2 : index
    %c0_22 = arith.constant 0 : index
    %23 = vector.load %arg1[%c0_20, %c2_21, %c0_22] : memref<1x56x28xf32, #tpu.memory_space<vmem>>, vector<1x12x28xf32>
    %24 = vector.shape_cast %23 : vector<1x12x28xf32> to vector<12x28xf32>
    %c4 = arith.constant 4 : index
    %c0_23 = arith.constant 0 : index
    %c0_24 = arith.constant 0 : index
    %25 = vector.load %arg2[%c4, %c0_23, %c0_24] : memref<5x28x288xf32, #tpu.memory_space<vmem>>, vector<1x28x288xf32>
    %26 = vector.shape_cast %25 : vector<1x28x288xf32> to vector<28x288xf32>
    %cst_25 = arith.constant dense<0.000000e+00> : vector<12x288xf32>
    %27 = tpu.matmul %24, %26, %cst_25 {dimension_numbers = #tpu.dot_dimension_numbers<[1], [0], [0], [1], [0, 0, 1, 1], [], []>} : vector<12x28xf32>, vector<28x288xf32>, vector<12x288xf32> -> vector<12x288xf32>
    %28 = arith.addf %22, %27 : vector<12x288xf32>
    %c0_26 = arith.constant 0 : index
    %c14_27 = arith.constant 14 : index
    %c0_28 = arith.constant 0 : index
    %29 = vector.load %arg1[%c0_26, %c14_27, %c0_28] : memref<1x56x28xf32, #tpu.memory_space<vmem>>, vector<1x12x28xf32>
    %30 = vector.shape_cast %29 : vector<1x12x28xf32> to vector<12x28xf32>
    %c0_29 = arith.constant 0 : index
    %c0_30 = arith.constant 0 : index
    %c0_31 = arith.constant 0 : index
    %31 = vector.load %arg2[%c0_29, %c0_30, %c0_31] : memref<5x28x288xf32, #tpu.memory_space<vmem>>, vector<1x28x288xf32>
    %32 = vector.shape_cast %31 : vector<1x28x288xf32> to vector<28x288xf32>
    %cst_32 = arith.constant dense<0.000000e+00> : vector<12x288xf32>
    %33 = tpu.matmul %30, %32, %cst_32 {dimension_numbers = #tpu.dot_dimension_numbers<[1], [0], [0], [1], [0, 0, 1, 1], [], []>} : vector<12x28xf32>, vector<28x288xf32>, vector<12x288xf32> -> vector<12x288xf32>
    %c0_33 = arith.constant 0 : index
    %c28_34 = arith.constant 28 : index
    %c0_35 = arith.constant 0 : index
    %34 = vector.load %arg1[%c0_33, %c28_34, %c0_35] : memref<1x56x28xf32, #tpu.memory_space<vmem>>, vector<1x12x28xf32>
    %35 = vector.shape_cast %34 : vector<1x12x28xf32> to vector<12x28xf32>
    %c1_36 = arith.constant 1 : index
    %c0_37 = arith.constant 0 : index
    %c0_38 = arith.constant 0 : index
    %36 = vector.load %arg2[%c1_36, %c0_37, %c0_38] : memref<5x28x288xf32, #tpu.memory_space<vmem>>, vector<1x28x288xf32>
    %37 = vector.shape_cast %36 : vector<1x28x288xf32> to vector<28x288xf32>
    %cst_39 = arith.constant dense<0.000000e+00> : vector<12x288xf32>
    %38 = tpu.matmul %35, %37, %cst_39 {dimension_numbers = #tpu.dot_dimension_numbers<[1], [0], [0], [1], [0, 0, 1, 1], [], []>} : vector<12x28xf32>, vector<28x288xf32>, vector<12x288xf32> -> vector<12x288xf32>
    %39 = arith.addf %33, %38 : vector<12x288xf32>
    %c0_40 = arith.constant 0 : index
    %c42_41 = arith.constant 42 : index
    %c0_42 = arith.constant 0 : index
    %40 = vector.load %arg1[%c0_40, %c42_41, %c0_42] : memref<1x56x28xf32, #tpu.memory_space<vmem>>, vector<1x12x28xf32>
    %41 = vector.shape_cast %40 : vector<1x12x28xf32> to vector<12x28xf32>
    %c2_43 = arith.constant 2 : index
    %c0_44 = arith.constant 0 : index
    %c0_45 = arith.constant 0 : index
    %42 = vector.load %arg2[%c2_43, %c0_44, %c0_45] : memref<5x28x288xf32, #tpu.memory_space<vmem>>, vector<1x28x288xf32>
    %43 = vector.shape_cast %42 : vector<1x28x288xf32> to vector<28x288xf32>
    %cst_46 = arith.constant dense<0.000000e+00> : vector<12x288xf32>
    %44 = tpu.matmul %41, %43, %cst_46 {dimension_numbers = #tpu.dot_dimension_numbers<[1], [0], [0], [1], [0, 0, 1, 1], [], []>} : vector<12x28xf32>, vector<28x288xf32>, vector<12x288xf32> -> vector<12x288xf32>
    %45 = arith.addf %39, %44 : vector<12x288xf32>
    %c0_47 = arith.constant 0 : index
    %c2_48 = arith.constant 2 : index
    %c0_49 = arith.constant 0 : index
    %46 = vector.load %arg1[%c0_47, %c2_48, %c0_49] : memref<1x56x28xf32, #tpu.memory_space<vmem>>, vector<1x12x28xf32>
    %47 = vector.shape_cast %46 : vector<1x12x28xf32> to vector<12x28xf32>
    %c3_50 = arith.constant 3 : index
    %c0_51 = arith.constant 0 : index
    %c0_52 = arith.constant 0 : index
    %48 = vector.load %arg2[%c3_50, %c0_51, %c0_52] : memref<5x28x288xf32, #tpu.memory_space<vmem>>, vector<1x28x288xf32>
    %49 = vector.shape_cast %48 : vector<1x28x288xf32> to vector<28x288xf32>
    %cst_53 = arith.constant dense<0.000000e+00> : vector<12x288xf32>
    %50 = tpu.matmul %47, %49, %cst_53 {dimension_numbers = #tpu.dot_dimension_numbers<[1], [0], [0], [1], [0, 0, 1, 1], [], []>} : vector<12x28xf32>, vector<28x288xf32>, vector<12x288xf32> -> vector<12x288xf32>
    %51 = arith.addf %45, %50 : vector<12x288xf32>
    %c0_54 = arith.constant 0 : index
    %c16 = arith.constant 16 : index
    %c0_55 = arith.constant 0 : index
    %52 = vector.load %arg1[%c0_54, %c16, %c0_55] : memref<1x56x28xf32, #tpu.memory_space<vmem>>, vector<1x12x28xf32>
    %53 = vector.shape_cast %52 : vector<1x12x28xf32> to vector<12x28xf32>
    %c4_56 = arith.constant 4 : index
    %c0_57 = arith.constant 0 : index
    %c0_58 = arith.constant 0 : index
    %54 = vector.load %arg2[%c4_56, %c0_57, %c0_58] : memref<5x28x288xf32, #tpu.memory_space<vmem>>, vector<1x28x288xf32>
    %55 = vector.shape_cast %54 : vector<1x28x288xf32> to vector<28x288xf32>
    %cst_59 = arith.constant dense<0.000000e+00> : vector<12x288xf32>
    %56 = tpu.matmul %53, %55, %cst_59 {dimension_numbers = #tpu.dot_dimension_numbers<[1], [0], [0], [1], [0, 0, 1, 1], [], []>} : vector<12x28xf32>, vector<28x288xf32>, vector<12x288xf32> -> vector<12x288xf32>
    %57 = arith.addf %51, %56 : vector<12x288xf32>
    %58 = arith.maximumf %28, %57 : vector<12x288xf32>
    %59 = vector.extract_strided_slice %58 {offsets = [0, 0], sizes = [12, 144], strides = [1, 1]} : vector<12x288xf32> to vector<12x144xf32>
    %60 = vector.extract_strided_slice %58 {offsets = [0, 144], sizes = [12, 144], strides = [1, 1]} : vector<12x288xf32> to vector<12x144xf32>
    %61 = arith.maximumf %59, %60 : vector<12x144xf32>
    %c0_60 = arith.constant 0 : index
    %c0_61 = arith.constant 0 : index
    %62 = vector.load %arg3[%c0_60, %c0_61] : memref<1x144xf32, #tpu.memory_space<vmem>>, vector<1x144xf32>
    %63 = vector.broadcast %62 : vector<1x144xf32> to vector<12x144xf32>
    %64 = arith.addf %61, %63 : vector<12x144xf32>
    %cst_62 = arith.constant 0.000000e+00 : f32
    %65 = vector.broadcast %cst_62 : f32 to vector<12x144xf32>
    %66 = arith.maximumf %64, %65 : vector<12x144xf32>
    %c0_63 = arith.constant 0 : index
    %c28_64 = arith.constant 28 : index
    %c0_65 = arith.constant 0 : index
    %67 = vector.load %arg1[%c0_63, %c28_64, %c0_65] : memref<1x56x28xf32, #tpu.memory_space<vmem>>, vector<1x12x28xf32>
    %68 = vector.shape_cast %67 : vector<1x12x28xf32> to vector<12x28xf32>
    %c0_66 = arith.constant 0 : index
    %c0_67 = arith.constant 0 : index
    %c0_68 = arith.constant 0 : index
    %69 = vector.load %arg2[%c0_66, %c0_67, %c0_68] : memref<5x28x288xf32, #tpu.memory_space<vmem>>, vector<1x28x288xf32>
    %70 = vector.shape_cast %69 : vector<1x28x288xf32> to vector<28x288xf32>
    %cst_69 = arith.constant dense<0.000000e+00> : vector<12x288xf32>
    %71 = tpu.matmul %68, %70, %cst_69 {dimension_numbers = #tpu.dot_dimension_numbers<[1], [0], [0], [1], [0, 0, 1, 1], [], []>} : vector<12x28xf32>, vector<28x288xf32>, vector<12x288xf32> -> vector<12x288xf32>
    %c0_70 = arith.constant 0 : index
    %c42_71 = arith.constant 42 : index
    %c0_72 = arith.constant 0 : index
    %72 = vector.load %arg1[%c0_70, %c42_71, %c0_72] : memref<1x56x28xf32, #tpu.memory_space<vmem>>, vector<1x12x28xf32>
    %73 = vector.shape_cast %72 : vector<1x12x28xf32> to vector<12x28xf32>
    %c1_73 = arith.constant 1 : index
    %c0_74 = arith.constant 0 : index
    %c0_75 = arith.constant 0 : index
    %74 = vector.load %arg2[%c1_73, %c0_74, %c0_75] : memref<5x28x288xf32, #tpu.memory_space<vmem>>, vector<1x28x288xf32>
    %75 = vector.shape_cast %74 : vector<1x28x288xf32> to vector<28x288xf32>
    %cst_76 = arith.constant dense<0.000000e+00> : vector<12x288xf32>
    %76 = tpu.matmul %73, %75, %cst_76 {dimension_numbers = #tpu.dot_dimension_numbers<[1], [0], [0], [1], [0, 0, 1, 1], [], []>} : vector<12x28xf32>, vector<28x288xf32>, vector<12x288xf32> -> vector<12x288xf32>
    %77 = arith.addf %71, %76 : vector<12x288xf32>
    %c0_77 = arith.constant 0 : index
    %c2_78 = arith.constant 2 : index
    %c0_79 = arith.constant 0 : index
    %78 = vector.load %arg1[%c0_77, %c2_78, %c0_79] : memref<1x56x28xf32, #tpu.memory_space<vmem>>, vector<1x12x28xf32>
    %79 = vector.shape_cast %78 : vector<1x12x28xf32> to vector<12x28xf32>
    %c2_80 = arith.constant 2 : index
    %c0_81 = arith.constant 0 : index
    %c0_82 = arith.constant 0 : index
    %80 = vector.load %arg2[%c2_80, %c0_81, %c0_82] : memref<5x28x288xf32, #tpu.memory_space<vmem>>, vector<1x28x288xf32>
    %81 = vector.shape_cast %80 : vector<1x28x288xf32> to vector<28x288xf32>
    %cst_83 = arith.constant dense<0.000000e+00> : vector<12x288xf32>
    %82 = tpu.matmul %79, %81, %cst_83 {dimension_numbers = #tpu.dot_dimension_numbers<[1], [0], [0], [1], [0, 0, 1, 1], [], []>} : vector<12x28xf32>, vector<28x288xf32>, vector<12x288xf32> -> vector<12x288xf32>
    %83 = arith.addf %77, %82 : vector<12x288xf32>
    %c0_84 = arith.constant 0 : index
    %c16_85 = arith.constant 16 : index
    %c0_86 = arith.constant 0 : index
    %84 = vector.load %arg1[%c0_84, %c16_85, %c0_86] : memref<1x56x28xf32, #tpu.memory_space<vmem>>, vector<1x12x28xf32>
    %85 = vector.shape_cast %84 : vector<1x12x28xf32> to vector<12x28xf32>
    %c3_87 = arith.constant 3 : index
    %c0_88 = arith.constant 0 : index
    %c0_89 = arith.constant 0 : index
    %86 = vector.load %arg2[%c3_87, %c0_88, %c0_89] : memref<5x28x288xf32, #tpu.memory_space<vmem>>, vector<1x28x288xf32>
    %87 = vector.shape_cast %86 : vector<1x28x288xf32> to vector<28x288xf32>
    %cst_90 = arith.constant dense<0.000000e+00> : vector<12x288xf32>
    %88 = tpu.matmul %85, %87, %cst_90 {dimension_numbers = #tpu.dot_dimension_numbers<[1], [0], [0], [1], [0, 0, 1, 1], [], []>} : vector<12x28xf32>, vector<28x288xf32>, vector<12x288xf32> -> vector<12x288xf32>
    %89 = arith.addf %83, %88 : vector<12x288xf32>
    %c0_91 = arith.constant 0 : index
    %c30 = arith.constant 30 : index
    %c0_92 = arith.constant 0 : index
    %90 = vector.load %arg1[%c0_91, %c30, %c0_92] : memref<1x56x28xf32, #tpu.memory_space<vmem>>, vector<1x12x28xf32>
    %91 = vector.shape_cast %90 : vector<1x12x28xf32> to vector<12x28xf32>
    %c4_93 = arith.constant 4 : index
    %c0_94 = arith.constant 0 : index
    %c0_95 = arith.constant 0 : index
    %92 = vector.load %arg2[%c4_93, %c0_94, %c0_95] : memref<5x28x288xf32, #tpu.memory_space<vmem>>, vector<1x28x288xf32>
    %93 = vector.shape_cast %92 : vector<1x28x288xf32> to vector<28x288xf32>
    %cst_96 = arith.constant dense<0.000000e+00> : vector<12x288xf32>
    %94 = tpu.matmul %91, %93, %cst_96 {dimension_numbers = #tpu.dot_dimension_numbers<[1], [0], [0], [1], [0, 0, 1, 1], [], []>} : vector<12x28xf32>, vector<28x288xf32>, vector<12x288xf32> -> vector<12x288xf32>
    %95 = arith.addf %89, %94 : vector<12x288xf32>
    %c0_97 = arith.constant 0 : index
    %c42_98 = arith.constant 42 : index
    %c0_99 = arith.constant 0 : index
    %96 = vector.load %arg1[%c0_97, %c42_98, %c0_99] : memref<1x56x28xf32, #tpu.memory_space<vmem>>, vector<1x12x28xf32>
    %97 = vector.shape_cast %96 : vector<1x12x28xf32> to vector<12x28xf32>
    %c0_100 = arith.constant 0 : index
    %c0_101 = arith.constant 0 : index
    %c0_102 = arith.constant 0 : index
    %98 = vector.load %arg2[%c0_100, %c0_101, %c0_102] : memref<5x28x288xf32, #tpu.memory_space<vmem>>, vector<1x28x288xf32>
    %99 = vector.shape_cast %98 : vector<1x28x288xf32> to vector<28x288xf32>
    %cst_103 = arith.constant dense<0.000000e+00> : vector<12x288xf32>
    %100 = tpu.matmul %97, %99, %cst_103 {dimension_numbers = #tpu.dot_dimension_numbers<[1], [0], [0], [1], [0, 0, 1, 1], [], []>} : vector<12x28xf32>, vector<28x288xf32>, vector<12x288xf32> -> vector<12x288xf32>
    %c0_104 = arith.constant 0 : index
    %c2_105 = arith.constant 2 : index
    %c0_106 = arith.constant 0 : index
    %101 = vector.load %arg1[%c0_104, %c2_105, %c0_106] : memref<1x56x28xf32, #tpu.memory_space<vmem>>, vector<1x12x28xf32>
    %102 = vector.shape_cast %101 : vector<1x12x28xf32> to vector<12x28xf32>
    %c1_107 = arith.constant 1 : index
    %c0_108 = arith.constant 0 : index
    %c0_109 = arith.constant 0 : index
    %103 = vector.load %arg2[%c1_107, %c0_108, %c0_109] : memref<5x28x288xf32, #tpu.memory_space<vmem>>, vector<1x28x288xf32>
    %104 = vector.shape_cast %103 : vector<1x28x288xf32> to vector<28x288xf32>
    %cst_110 = arith.constant dense<0.000000e+00> : vector<12x288xf32>
    %105 = tpu.matmul %102, %104, %cst_110 {dimension_numbers = #tpu.dot_dimension_numbers<[1], [0], [0], [1], [0, 0, 1, 1], [], []>} : vector<12x28xf32>, vector<28x288xf32>, vector<12x288xf32> -> vector<12x288xf32>
    %106 = arith.addf %100, %105 : vector<12x288xf32>
    %c0_111 = arith.constant 0 : index
    %c16_112 = arith.constant 16 : index
    %c0_113 = arith.constant 0 : index
    %107 = vector.load %arg1[%c0_111, %c16_112, %c0_113] : memref<1x56x28xf32, #tpu.memory_space<vmem>>, vector<1x12x28xf32>
    %108 = vector.shape_cast %107 : vector<1x12x28xf32> to vector<12x28xf32>
    %c2_114 = arith.constant 2 : index
    %c0_115 = arith.constant 0 : index
    %c0_116 = arith.constant 0 : index
    %109 = vector.load %arg2[%c2_114, %c0_115, %c0_116] : memref<5x28x288xf32, #tpu.memory_space<vmem>>, vector<1x28x288xf32>
    %110 = vector.shape_cast %109 : vector<1x28x288xf32> to vector<28x288xf32>
    %cst_117 = arith.constant dense<0.000000e+00> : vector<12x288xf32>
    %111 = tpu.matmul %108, %110, %cst_117 {dimension_numbers = #tpu.dot_dimension_numbers<[1], [0], [0], [1], [0, 0, 1, 1], [], []>} : vector<12x28xf32>, vector<28x288xf32>, vector<12x288xf32> -> vector<12x288xf32>
    %112 = arith.addf %106, %111 : vector<12x288xf32>
    %c0_118 = arith.constant 0 : index
    %c30_119 = arith.constant 30 : index
    %c0_120 = arith.constant 0 : index
    %113 = vector.load %arg1[%c0_118, %c30_119, %c0_120] : memref<1x56x28xf32, #tpu.memory_space<vmem>>, vector<1x12x28xf32>
    %114 = vector.shape_cast %113 : vector<1x12x28xf32> to vector<12x28xf32>
    %c3_121 = arith.constant 3 : index
    %c0_122 = arith.constant 0 : index
    %c0_123 = arith.constant 0 : index
    %115 = vector.load %arg2[%c3_121, %c0_122, %c0_123] : memref<5x28x288xf32, #tpu.memory_space<vmem>>, vector<1x28x288xf32>
    %116 = vector.shape_cast %115 : vector<1x28x288xf32> to vector<28x288xf32>
    %cst_124 = arith.constant dense<0.000000e+00> : vector<12x288xf32>
    %117 = tpu.matmul %114, %116, %cst_124 {dimension_numbers = #tpu.dot_dimension_numbers<[1], [0], [0], [1], [0, 0, 1, 1], [], []>} : vector<12x28xf32>, vector<28x288xf32>, vector<12x288xf32> -> vector<12x288xf32>
    %118 = arith.addf %112, %117 : vector<12x288xf32>
    %c0_125 = arith.constant 0 : index
    %c44 = arith.constant 44 : index
    %c0_126 = arith.constant 0 : index
    %119 = vector.load %arg1[%c0_125, %c44, %c0_126] : memref<1x56x28xf32, #tpu.memory_space<vmem>>, vector<1x12x28xf32>
    %120 = vector.shape_cast %119 : vector<1x12x28xf32> to vector<12x28xf32>
    %c4_127 = arith.constant 4 : index
    %c0_128 = arith.constant 0 : index
    %c0_129 = arith.constant 0 : index
    %121 = vector.load %arg2[%c4_127, %c0_128, %c0_129] : memref<5x28x288xf32, #tpu.memory_space<vmem>>, vector<1x28x288xf32>
    %122 = vector.shape_cast %121 : vector<1x28x288xf32> to vector<28x288xf32>
    %cst_130 = arith.constant dense<0.000000e+00> : vector<12x288xf32>
    %123 = tpu.matmul %120, %122, %cst_130 {dimension_numbers = #tpu.dot_dimension_numbers<[1], [0], [0], [1], [0, 0, 1, 1], [], []>} : vector<12x28xf32>, vector<28x288xf32>, vector<12x288xf32> -> vector<12x288xf32>
    %124 = arith.addf %118, %123 : vector<12x288xf32>
    %125 = arith.maximumf %95, %124 : vector<12x288xf32>
    %126 = vector.extract_strided_slice %125 {offsets = [0, 0], sizes = [12, 144], strides = [1, 1]} : vector<12x288xf32> to vector<12x144xf32>
    %127 = vector.extract_strided_slice %125 {offsets = [0, 144], sizes = [12, 144], strides = [1, 1]} : vector<12x288xf32> to vector<12x144xf32>
    %128 = arith.maximumf %126, %127 : vector<12x144xf32>
    %c0_131 = arith.constant 0 : index
    %c0_132 = arith.constant 0 : index
    %129 = vector.load %arg3[%c0_131, %c0_132] : memref<1x144xf32, #tpu.memory_space<vmem>>, vector<1x144xf32>
    %130 = vector.broadcast %129 : vector<1x144xf32> to vector<12x144xf32>
    %131 = arith.addf %128, %130 : vector<12x144xf32>
    %cst_133 = arith.constant 0.000000e+00 : f32
    %132 = vector.broadcast %cst_133 : f32 to vector<12x144xf32>
    %133 = arith.maximumf %131, %132 : vector<12x144xf32>
    %134 = vector.extract_strided_slice %66 {offsets = [0, 0], sizes = [8, 144], strides = [1, 1]} : vector<12x144xf32> to vector<8x144xf32>
    %c0_134 = arith.constant 0 : index
    %c0_135 = arith.constant 0 : index
    %c0_136 = arith.constant 0 : index
    %135 = vector.load %arg4[%c0_134, %c0_135, %c0_136] : memref<5x144x160xf32, #tpu.memory_space<vmem>>, vector<1x144x160xf32>
    %136 = vector.shape_cast %135 : vector<1x144x160xf32> to vector<144x160xf32>
    %cst_137 = arith.constant dense<0.000000e+00> : vector<8x160xf32>
    %137 = tpu.matmul %134, %136, %cst_137 {dimension_numbers = #tpu.dot_dimension_numbers<[1], [0], [0], [1], [0, 0, 1, 1], [], []>} : vector<8x144xf32>, vector<144x160xf32>, vector<8x160xf32> -> vector<8x160xf32>
    %138 = vector.extract_strided_slice %133 {offsets = [0, 0], sizes = [8, 144], strides = [1, 1]} : vector<12x144xf32> to vector<8x144xf32>
    %c1_138 = arith.constant 1 : index
    %c0_139 = arith.constant 0 : index
    %c0_140 = arith.constant 0 : index
    %139 = vector.load %arg4[%c1_138, %c0_139, %c0_140] : memref<5x144x160xf32, #tpu.memory_space<vmem>>, vector<1x144x160xf32>
    %140 = vector.shape_cast %139 : vector<1x144x160xf32> to vector<144x160xf32>
    %cst_141 = arith.constant dense<0.000000e+00> : vector<8x160xf32>
    %141 = tpu.matmul %138, %140, %cst_141 {dimension_numbers = #tpu.dot_dimension_numbers<[1], [0], [0], [1], [0, 0, 1, 1], [], []>} : vector<8x144xf32>, vector<144x160xf32>, vector<8x160xf32> -> vector<8x160xf32>
    %142 = arith.addf %137, %141 : vector<8x160xf32>
    %143 = vector.extract_strided_slice %66 {offsets = [2, 0], sizes = [8, 144], strides = [1, 1]} : vector<12x144xf32> to vector<8x144xf32>
    %c2_142 = arith.constant 2 : index
    %c0_143 = arith.constant 0 : index
    %c0_144 = arith.constant 0 : index
    %144 = vector.load %arg4[%c2_142, %c0_143, %c0_144] : memref<5x144x160xf32, #tpu.memory_space<vmem>>, vector<1x144x160xf32>
    %145 = vector.shape_cast %144 : vector<1x144x160xf32> to vector<144x160xf32>
    %cst_145 = arith.constant dense<0.000000e+00> : vector<8x160xf32>
    %146 = tpu.matmul %143, %145, %cst_145 {dimension_numbers = #tpu.dot_dimension_numbers<[1], [0], [0], [1], [0, 0, 1, 1], [], []>} : vector<8x144xf32>, vector<144x160xf32>, vector<8x160xf32> -> vector<8x160xf32>
    %147 = arith.addf %142, %146 : vector<8x160xf32>
    %148 = vector.extract_strided_slice %133 {offsets = [2, 0], sizes = [8, 144], strides = [1, 1]} : vector<12x144xf32> to vector<8x144xf32>
    %c3_146 = arith.constant 3 : index
    %c0_147 = arith.constant 0 : index
    %c0_148 = arith.constant 0 : index
    %149 = vector.load %arg4[%c3_146, %c0_147, %c0_148] : memref<5x144x160xf32, #tpu.memory_space<vmem>>, vector<1x144x160xf32>
    %150 = vector.shape_cast %149 : vector<1x144x160xf32> to vector<144x160xf32>
    %cst_149 = arith.constant dense<0.000000e+00> : vector<8x160xf32>
    %151 = tpu.matmul %148, %150, %cst_149 {dimension_numbers = #tpu.dot_dimension_numbers<[1], [0], [0], [1], [0, 0, 1, 1], [], []>} : vector<8x144xf32>, vector<144x160xf32>, vector<8x160xf32> -> vector<8x160xf32>
    %152 = arith.addf %147, %151 : vector<8x160xf32>
    %153 = vector.extract_strided_slice %66 {offsets = [4, 0], sizes = [8, 144], strides = [1, 1]} : vector<12x144xf32> to vector<8x144xf32>
    %c4_150 = arith.constant 4 : index
    %c0_151 = arith.constant 0 : index
    %c0_152 = arith.constant 0 : index
    %154 = vector.load %arg4[%c4_150, %c0_151, %c0_152] : memref<5x144x160xf32, #tpu.memory_space<vmem>>, vector<1x144x160xf32>
    %155 = vector.shape_cast %154 : vector<1x144x160xf32> to vector<144x160xf32>
    %cst_153 = arith.constant dense<0.000000e+00> : vector<8x160xf32>
    %156 = tpu.matmul %153, %155, %cst_153 {dimension_numbers = #tpu.dot_dimension_numbers<[1], [0], [0], [1], [0, 0, 1, 1], [], []>} : vector<8x144xf32>, vector<144x160xf32>, vector<8x160xf32> -> vector<8x160xf32>
    %157 = arith.addf %152, %156 : vector<8x160xf32>
    %158 = vector.extract_strided_slice %133 {offsets = [0, 0], sizes = [8, 144], strides = [1, 1]} : vector<12x144xf32> to vector<8x144xf32>
    %c0_154 = arith.constant 0 : index
    %c0_155 = arith.constant 0 : index
    %c0_156 = arith.constant 0 : index
    %159 = vector.load %arg4[%c0_154, %c0_155, %c0_156] : memref<5x144x160xf32, #tpu.memory_space<vmem>>, vector<1x144x160xf32>
    %160 = vector.shape_cast %159 : vector<1x144x160xf32> to vector<144x160xf32>
    %cst_157 = arith.constant dense<0.000000e+00> : vector<8x160xf32>
    %161 = tpu.matmul %158, %160, %cst_157 {dimension_numbers = #tpu.dot_dimension_numbers<[1], [0], [0], [1], [0, 0, 1, 1], [], []>} : vector<8x144xf32>, vector<144x160xf32>, vector<8x160xf32> -> vector<8x160xf32>
    %162 = vector.extract_strided_slice %66 {offsets = [2, 0], sizes = [8, 144], strides = [1, 1]} : vector<12x144xf32> to vector<8x144xf32>
    %c1_158 = arith.constant 1 : index
    %c0_159 = arith.constant 0 : index
    %c0_160 = arith.constant 0 : index
    %163 = vector.load %arg4[%c1_158, %c0_159, %c0_160] : memref<5x144x160xf32, #tpu.memory_space<vmem>>, vector<1x144x160xf32>
    %164 = vector.shape_cast %163 : vector<1x144x160xf32> to vector<144x160xf32>
    %cst_161 = arith.constant dense<0.000000e+00> : vector<8x160xf32>
    %165 = tpu.matmul %162, %164, %cst_161 {dimension_numbers = #tpu.dot_dimension_numbers<[1], [0], [0], [1], [0, 0, 1, 1], [], []>} : vector<8x144xf32>, vector<144x160xf32>, vector<8x160xf32> -> vector<8x160xf32>
    %166 = arith.addf %161, %165 : vector<8x160xf32>
    %167 = vector.extract_strided_slice %133 {offsets = [2, 0], sizes = [8, 144], strides = [1, 1]} : vector<12x144xf32> to vector<8x144xf32>
    %c2_162 = arith.constant 2 : index
    %c0_163 = arith.constant 0 : index
    %c0_164 = arith.constant 0 : index
    %168 = vector.load %arg4[%c2_162, %c0_163, %c0_164] : memref<5x144x160xf32, #tpu.memory_space<vmem>>, vector<1x144x160xf32>
    %169 = vector.shape_cast %168 : vector<1x144x160xf32> to vector<144x160xf32>
    %cst_165 = arith.constant dense<0.000000e+00> : vector<8x160xf32>
    %170 = tpu.matmul %167, %169, %cst_165 {dimension_numbers = #tpu.dot_dimension_numbers<[1], [0], [0], [1], [0, 0, 1, 1], [], []>} : vector<8x144xf32>, vector<144x160xf32>, vector<8x160xf32> -> vector<8x160xf32>
    %171 = arith.addf %166, %170 : vector<8x160xf32>
    %172 = vector.extract_strided_slice %66 {offsets = [4, 0], sizes = [8, 144], strides = [1, 1]} : vector<12x144xf32> to vector<8x144xf32>
    %c3_166 = arith.constant 3 : index
    %c0_167 = arith.constant 0 : index
    %c0_168 = arith.constant 0 : index
    %173 = vector.load %arg4[%c3_166, %c0_167, %c0_168] : memref<5x144x160xf32, #tpu.memory_space<vmem>>, vector<1x144x160xf32>
    %174 = vector.shape_cast %173 : vector<1x144x160xf32> to vector<144x160xf32>
    %cst_169 = arith.constant dense<0.000000e+00> : vector<8x160xf32>
    %175 = tpu.matmul %172, %174, %cst_169 {dimension_numbers = #tpu.dot_dimension_numbers<[1], [0], [0], [1], [0, 0, 1, 1], [], []>} : vector<8x144xf32>, vector<144x160xf32>, vector<8x160xf32> -> vector<8x160xf32>
    %176 = arith.addf %171, %175 : vector<8x160xf32>
    %177 = vector.extract_strided_slice %133 {offsets = [4, 0], sizes = [8, 144], strides = [1, 1]} : vector<12x144xf32> to vector<8x144xf32>
    %c4_170 = arith.constant 4 : index
    %c0_171 = arith.constant 0 : index
    %c0_172 = arith.constant 0 : index
    %178 = vector.load %arg4[%c4_170, %c0_171, %c0_172] : memref<5x144x160xf32, #tpu.memory_space<vmem>>, vector<1x144x160xf32>
    %179 = vector.shape_cast %178 : vector<1x144x160xf32> to vector<144x160xf32>
    %cst_173 = arith.constant dense<0.000000e+00> : vector<8x160xf32>
    %180 = tpu.matmul %177, %179, %cst_173 {dimension_numbers = #tpu.dot_dimension_numbers<[1], [0], [0], [1], [0, 0, 1, 1], [], []>} : vector<8x144xf32>, vector<144x160xf32>, vector<8x160xf32> -> vector<8x160xf32>
    %181 = arith.addf %176, %180 : vector<8x160xf32>
    %182 = arith.maximumf %157, %181 : vector<8x160xf32>
    %183 = vector.extract_strided_slice %182 {offsets = [0, 0], sizes = [8, 80], strides = [1, 1]} : vector<8x160xf32> to vector<8x80xf32>
    %184 = vector.extract_strided_slice %182 {offsets = [0, 80], sizes = [8, 80], strides = [1, 1]} : vector<8x160xf32> to vector<8x80xf32>
    %185 = arith.maximumf %183, %184 : vector<8x80xf32>
    %c0_174 = arith.constant 0 : index
    %c0_175 = arith.constant 0 : index
    %186 = vector.load %arg5[%c0_174, %c0_175] : memref<1x80xf32, #tpu.memory_space<vmem>>, vector<1x80xf32>
    %187 = vector.broadcast %186 : vector<1x80xf32> to vector<8x80xf32>
    %188 = arith.addf %185, %187 : vector<8x80xf32>
    %cst_176 = arith.constant 0.000000e+00 : f32
    %189 = vector.broadcast %cst_176 : f32 to vector<8x80xf32>
    %190 = arith.maximumf %188, %189 : vector<8x80xf32>
    %191 = vector.extract_strided_slice %190 {offsets = [0, 0], sizes = [2, 80], strides = [1, 1]} : vector<8x80xf32> to vector<2x80xf32>
    %c0_177 = arith.constant 0 : index
    %c0_178 = arith.constant 0 : index
    %c0_179 = arith.constant 0 : index
    %192 = vector.load %arg6[%c0_177, %c0_178, %c0_179] : memref<4x80x50xf32, #tpu.memory_space<vmem>>, vector<1x80x50xf32>
    %193 = vector.shape_cast %192 : vector<1x80x50xf32> to vector<80x50xf32>
    %cst_180 = arith.constant dense<0.000000e+00> : vector<2x50xf32>
    %194 = tpu.matmul %191, %193, %cst_180 {dimension_numbers = #tpu.dot_dimension_numbers<[1], [0], [0], [1], [0, 0, 1, 1], [], []>} : vector<2x80xf32>, vector<80x50xf32>, vector<2x50xf32> -> vector<2x50xf32>
    %195 = vector.extract_strided_slice %190 {offsets = [2, 0], sizes = [2, 80], strides = [1, 1]} : vector<8x80xf32> to vector<2x80xf32>
    %c1_181 = arith.constant 1 : index
    %c0_182 = arith.constant 0 : index
    %c0_183 = arith.constant 0 : index
    %196 = vector.load %arg6[%c1_181, %c0_182, %c0_183] : memref<4x80x50xf32, #tpu.memory_space<vmem>>, vector<1x80x50xf32>
    %197 = vector.shape_cast %196 : vector<1x80x50xf32> to vector<80x50xf32>
    %cst_184 = arith.constant dense<0.000000e+00> : vector<2x50xf32>
    %198 = tpu.matmul %195, %197, %cst_184 {dimension_numbers = #tpu.dot_dimension_numbers<[1], [0], [0], [1], [0, 0, 1, 1], [], []>} : vector<2x80xf32>, vector<80x50xf32>, vector<2x50xf32> -> vector<2x50xf32>
    %199 = arith.addf %194, %198 : vector<2x50xf32>
    %200 = vector.extract_strided_slice %190 {offsets = [4, 0], sizes = [2, 80], strides = [1, 1]} : vector<8x80xf32> to vector<2x80xf32>
    %c2_185 = arith.constant 2 : index
    %c0_186 = arith.constant 0 : index
    %c0_187 = arith.constant 0 : index
    %201 = vector.load %arg6[%c2_185, %c0_186, %c0_187] : memref<4x80x50xf32, #tpu.memory_space<vmem>>, vector<1x80x50xf32>
    %202 = vector.shape_cast %201 : vector<1x80x50xf32> to vector<80x50xf32>
    %cst_188 = arith.constant dense<0.000000e+00> : vector<2x50xf32>
    %203 = tpu.matmul %200, %202, %cst_188 {dimension_numbers = #tpu.dot_dimension_numbers<[1], [0], [0], [1], [0, 0, 1, 1], [], []>} : vector<2x80xf32>, vector<80x50xf32>, vector<2x50xf32> -> vector<2x50xf32>
    %204 = arith.addf %199, %203 : vector<2x50xf32>
    %205 = vector.extract_strided_slice %190 {offsets = [6, 0], sizes = [2, 80], strides = [1, 1]} : vector<8x80xf32> to vector<2x80xf32>
    %c3_189 = arith.constant 3 : index
    %c0_190 = arith.constant 0 : index
    %c0_191 = arith.constant 0 : index
    %206 = vector.load %arg6[%c3_189, %c0_190, %c0_191] : memref<4x80x50xf32, #tpu.memory_space<vmem>>, vector<1x80x50xf32>
    %207 = vector.shape_cast %206 : vector<1x80x50xf32> to vector<80x50xf32>
    %cst_192 = arith.constant dense<0.000000e+00> : vector<2x50xf32>
    %208 = tpu.matmul %205, %207, %cst_192 {dimension_numbers = #tpu.dot_dimension_numbers<[1], [0], [0], [1], [0, 0, 1, 1], [], []>} : vector<2x80xf32>, vector<80x50xf32>, vector<2x50xf32> -> vector<2x50xf32>
    %209 = arith.addf %204, %208 : vector<2x50xf32>
    %c0_193 = arith.constant 0 : index
    %c0_194 = arith.constant 0 : index
    %210 = vector.load %arg7[%c0_193, %c0_194] : memref<1x50xf32, #tpu.memory_space<vmem>>, vector<1x50xf32>
    %211 = vector.broadcast %210 : vector<1x50xf32> to vector<2x50xf32>
    %212 = arith.addf %209, %211 : vector<2x50xf32>
    %cst_195 = arith.constant 0.000000e+00 : f32
    %213 = vector.broadcast %cst_195 : f32 to vector<2x50xf32>
    %214 = arith.maximumf %212, %213 : vector<2x50xf32>
    %c0_196 = arith.constant 0 : index
    %c0_197 = arith.constant 0 : index
    %215 = vector.load %arg8[%c0_196, %c0_197] : memref<50x12xf32, #tpu.memory_space<vmem>>, vector<50x12xf32>
    %cst_198 = arith.constant dense<0.000000e+00> : vector<2x12xf32>
    %216 = tpu.matmul %214, %215, %cst_198 {dimension_numbers = #tpu.dot_dimension_numbers<[1], [0], [0], [1], [0, 0, 1, 1], [], []>} : vector<2x50xf32>, vector<50x12xf32>, vector<2x12xf32> -> vector<2x12xf32>
    %c0_199 = arith.constant 0 : index
    %c0_200 = arith.constant 0 : index
    %217 = vector.load %arg9[%c0_199, %c0_200] : memref<1x12xf32, #tpu.memory_space<vmem>>, vector<1x12xf32>
    %218 = vector.broadcast %217 : vector<1x12xf32> to vector<2x12xf32>
    %219 = arith.addf %216, %218 : vector<2x12xf32>
    %cst_201 = arith.constant dense<0xFF800000> : vector<2xf32>
    %220 = vector.multi_reduction <maximumf>, %219, %cst_201 [1] : vector<2x12xf32> to vector<2xf32>
    %221 = vector.shape_cast %220 : vector<2xf32> to vector<2x1xf32>
    %222 = vector.broadcast %221 : vector<2x1xf32> to vector<2x12xf32>
    %223 = arith.subf %219, %222 : vector<2x12xf32>
    %224 = math.exp %223 : vector<2x12xf32>
    %cst_202 = arith.constant dense<0.000000e+00> : vector<2xf32>
    %225 = vector.multi_reduction <add>, %224, %cst_202 [1] : vector<2x12xf32> to vector<2xf32>
    %226 = vector.shape_cast %225 : vector<2xf32> to vector<2x1xf32>
    %227 = math.log %226 : vector<2x1xf32>
    %228 = vector.broadcast %227 : vector<2x1xf32> to vector<2x12xf32>
    %229 = arith.subf %223, %228 : vector<2x12xf32>
    %c0_203 = arith.constant 0 : index
    %c0_204 = arith.constant 0 : index
    %230 = vector.load %arg10[%c0_203, %c0_204] : memref<2x12xf32, #tpu.memory_space<vmem>>, vector<2x12xf32>
    tpu.vector_store %arg10[%c0_203, %c0_204], %229 {strides = array<i32>} : memref<2x12xf32, #tpu.memory_space<vmem>>, vector<2x12xf32>,
    return
  }
  func.func @transform_0(%arg0: i32) -> (i32, i32, i32) {
    %c0_i32 = arith.constant 0 : i32
    %c0_i32_0 = arith.constant 0 : i32
    %c0_i32_1 = arith.constant 0 : i32
    return %arg0, %c0_i32, %c0_i32_0 : i32, i32, i32
  }
  func.func @transform_1(%arg0: i32) -> (i32, i32, i32) {
    %c0_i32 = arith.constant 0 : i32
    %c0_i32_0 = arith.constant 0 : i32
    %c0_i32_1 = arith.constant 0 : i32
    %c0_i32_2 = arith.constant 0 : i32
    return %c0_i32, %c0_i32_0, %c0_i32_1 : i32, i32, i32
  }
  func.func @transform_2(%arg0: i32) -> (i32, i32) {
    %c0_i32 = arith.constant 0 : i32
    %c0_i32_0 = arith.constant 0 : i32
    %c0_i32_1 = arith.constant 0 : i32
    return %c0_i32, %c0_i32_0 : i32, i32
  }
  func.func @transform_3(%arg0: i32) -> (i32, i32, i32) {
    %c0_i32 = arith.constant 0 : i32
    %c0_i32_0 = arith.constant 0 : i32
    %c0_i32_1 = arith.constant 0 : i32
    %c0_i32_2 = arith.constant 0 : i32
    return %c0_i32, %c0_i32_0, %c0_i32_1 : i32, i32, i32
  }
  func.func @transform_4(%arg0: i32) -> (i32, i32) {
    %c0_i32 = arith.constant 0 : i32
    %c0_i32_0 = arith.constant 0 : i32
    %c0_i32_1 = arith.constant 0 : i32
    return %c0_i32, %c0_i32_0 : i32, i32
  }
  func.func @transform_5(%arg0: i32) -> (i32, i32, i32) {
    %c0_i32 = arith.constant 0 : i32
    %c0_i32_0 = arith.constant 0 : i32
    %c0_i32_1 = arith.constant 0 : i32
    %c0_i32_2 = arith.constant 0 : i32
    return %c0_i32, %c0_i32_0, %c0_i32_1 : i32, i32, i32
  }
  func.func @transform_6(%arg0: i32) -> (i32, i32) {
    %c0_i32 = arith.constant 0 : i32
    %c0_i32_0 = arith.constant 0 : i32
    %c0_i32_1 = arith.constant 0 : i32
    return %c0_i32, %c0_i32_0 : i32, i32
  }
  func.func @transform_7(%arg0: i32) -> (i32, i32) {
    %c0_i32 = arith.constant 0 : i32
    %c0_i32_0 = arith.constant 0 : i32
    %c0_i32_1 = arith.constant 0 : i32
    return %c0_i32, %c0_i32_0 : i32, i32
  }
  func.func @transform_8(%arg0: i32) -> (i32, i32) {
    %c0_i32 = arith.constant 0 : i32
    %c0_i32_0 = arith.constant 0 : i32
    %c0_i32_1 = arith.constant 0 : i32
    return %c0_i32, %c0_i32_0 : i32, i32
  }
  func.func @transform_9(%arg0: i32) -> (i32, i32) {
    %c0_i32 = arith.constant 0 : i32
    %c0_i32_0 = arith.constant 0 : i32
    return %arg0, %c0_i32 : i32, i32
  }
}

</mosaic_0001>

<llo_original>
// kernel: nn_for_mnist_forward.1
$region0: #{nn_for_mnist_forward.1}
  #allocation0 [shape = 'u32[]', space=smem, size = 0x4, offset = 0x4, fixed_abs, tag = 'smem constant byte address 0x4 - core index']
  #allocation1 [shape = 'u32[72,128]{1,0:T(1,128)}', space=vmem, size = 0x9000, scoped, tag = 'internal scratch']
  %s0 = inlined_call_operand.vmem [shape: f32[1,56,28], index: 0, kind: input, shape index: {}]
  %s1 = inlined_call_operand.vmem [shape: f32[5,28,288], index: 1, kind: input, shape index: {}]
  %s2 = inlined_call_operand.vmem [shape: f32[1,144], index: 2, kind: input, shape index: {}]
  %s3 = inlined_call_operand.hbm [shape: f32[5,144,160], index: 3, kind: input, shape index: {}]
  %s4 = inlined_call_operand.vmem [shape: f32[1,80], index: 4, kind: input, shape index: {}]
  %s5 = inlined_call_operand.vmem [shape: f32[4,80,50], index: 5, kind: input, shape index: {}]
  %s6 = inlined_call_operand.vmem [shape: f32[1,50], index: 6, kind: input, shape index: {}]
  %s7 = inlined_call_operand.vmem [shape: f32[50,12], index: 7, kind: input, shape index: {}]
  %s8 = inlined_call_operand.vmem [shape: f32[1,12], index: 8, kind: input, shape index: {}]
  %s9 = inlined_call_operand.hbm [shape: f32[2,12], index: 9, kind: output, shape index: {}]
  %s10 = sld [smem:[#allocation0]]
  $region50: #{nn_for_mnist_forward.1} parent=0
    _
  %s12 = ssub.s32 1, %s10
  %s13 = scalar_select 0, %s12, %s10
  $region1: #{nn_for_mnist_forward.1} parent=0
    #allocation2 [shape = 'u8[737280]{0}', space=vmem, size = 0xb4000, scoped, tag = 'input window, operand 3, single buffered']
    #allocation3 [shape = 's32[1]{0}', space=sflag, size = 0x4, scoped, tag = 'scoped memory for nn_for_mnist_forward.1']
    #allocation4 [shape = 's32[1]{0}', space=sflag, size = 0x4, scoped, tag = 'scoped memory for nn_for_mnist_forward.1']
    #allocation5 [shape = 'u8[1024]{0}', space=vmem, size = 0x400, scoped, tag = 'output window, operand 0, single buffered']
    %14 = vsyncpa [#allocation3], 0
    %15 = vsyncpa [#allocation4], 0
    // Predicated region
    $region2: #{nn_for_mnist_forward.1} parent=1 // pred_check
      _
    $region3: #{nn_for_mnist_forward.1} parent=1 // pred_check_branch
      %17 = sbr.rel (0) target = $region5
    $region4: #{nn_for_mnist_forward.1} parent=1 // pred_region
      _
    $region5: #{nn_for_mnist_forward.1} parent=1 // pred_fallthru
      _
    // Predicated region
    $region6: #{nn_for_mnist_forward.1} parent=1 // pred_check
      _
    $region7: #{nn_for_mnist_forward.1} parent=1 // pred_check_branch
      %19 = sbr.rel (0) target = $region9
    $region8: #{nn_for_mnist_forward.1} parent=1 // pred_region
      _
    $region9: #{nn_for_mnist_forward.1} parent=1 // pred_fallthru
      _
    // Predicated region
    $region10: #{nn_for_mnist_forward.1} parent=1 // pred_check
      _
    $region11: #{nn_for_mnist_forward.1} parent=1 // pred_check_branch
      %21 = sbr.rel (0) target = $region13
    $region12: #{nn_for_mnist_forward.1} parent=1 // pred_region
      _
    $region13: #{nn_for_mnist_forward.1} parent=1 // pred_fallthru
      _
    // Predicated region
    $region14: #{nn_for_mnist_forward.1} parent=1 // pred_check
      _
    $region15: #{nn_for_mnist_forward.1} parent=1 // pred_check_branch
      %23 = sbr.rel (0) target = $region17
    $region16: #{nn_for_mnist_forward.1} parent=1 // pred_region
      %25 = vsyncadd [#allocation3], 0
      %s26 = sshll.u32 %s3, 4
      %s27 = int_to_ptr.hbm [resolvable:$true] %s26
      %s28 = sshll.u32 [#allocation2], 4
      %s29 = int_to_ptr.vmem [resolvable:$true] %s28
      %34 = dma.hbm_to_vmem [thread:$0]  %s27, 23040, %s29, [#allocation3], 256, 256, 16
    $region17: #{nn_for_mnist_forward.1} parent=1 // pred_fallthru
      _
    // Predicated region
    $region18: #{nn_for_mnist_forward.1} parent=1 // pred_check
      _
    $region19: #{nn_for_mnist_forward.1} parent=1 // pred_check_branch
      %36 = sbr.rel (0) target = $region21
    $region20: #{nn_for_mnist_forward.1} parent=1 // pred_region
      _
    $region21: #{nn_for_mnist_forward.1} parent=1 // pred_fallthru
      _
    // Predicated region
    $region22: #{nn_for_mnist_forward.1} parent=1 // pred_check
      _
    $region23: #{nn_for_mnist_forward.1} parent=1 // pred_check_branch
      %38 = sbr.rel (0) target = $region25
    $region24: #{nn_for_mnist_forward.1} parent=1 // pred_region
      _
    $region25: #{nn_for_mnist_forward.1} parent=1 // pred_fallthru
      _
    // Predicated region
    $region26: #{nn_for_mnist_forward.1} parent=1 // pred_check
      _
    $region27: #{nn_for_mnist_forward.1} parent=1 // pred_check_branch
      %40 = sbr.rel (0) target = $region29
    $region28: #{nn_for_mnist_forward.1} parent=1 // pred_region
      _
    $region29: #{nn_for_mnist_forward.1} parent=1 // pred_fallthru
      _
    // Predicated region
    $region30: #{nn_for_mnist_forward.1} parent=1 // pred_check
      _
    $region31: #{nn_for_mnist_forward.1} parent=1 // pred_check_branch
      %42 = sbr.rel (0) target = $region33
    $region32: #{nn_for_mnist_forward.1} parent=1 // pred_region
      _
    $region33: #{nn_for_mnist_forward.1} parent=1 // pred_fallthru
      _
    // Predicated region
    $region34: #{nn_for_mnist_forward.1} parent=1 // pred_check
      _
    $region35: #{nn_for_mnist_forward.1} parent=1 // pred_check_branch
      %44 = sbr.rel (0) target = $region37
    $region36: #{nn_for_mnist_forward.1} parent=1 // pred_region
      _
    $region37: #{nn_for_mnist_forward.1} parent=1 // pred_fallthru
      _
    // Predicated region
    $region38: #{nn_for_mnist_forward.1} parent=1 // pred_check
      _
    $region39: #{nn_for_mnist_forward.1} parent=1 // pred_check_branch
      %46 = sbr.rel (0) target = $region41
    $region40: #{nn_for_mnist_forward.1} parent=1 // pred_region
      %48 = dma.done [#allocation3], 23040
    $region41: #{nn_for_mnist_forward.1} parent=1 // pred_fallthru
      _
    %v49 = vld [vmem:[%s0] sm:$0xff]
    %v50 = vld [vmem:[%s0 + $0x8] sm:$0xf]
    %v51 = vld [vmem:[%s1] sm:$0xff]
    %v52 = vld [vmem:[%s1 + $0x8] sm:$0xff]
    %v53 = vld [vmem:[%s1 + $0x10] sm:$0xff]
    %v54 = vld [vmem:[%s1 + $0x18] sm:$0xff]
    %v55 = vld [vmem:[%s1 + $0x20] sm:$0xff]
    %v56 = vld [vmem:[%s1 + $0x28] sm:$0xff]
    %v57 = vld [vmem:[%s1 + $0x30] sm:$0xff]
    %v58 = vld [vmem:[%s1 + $0x38] sm:$0xff]
    %v59 = vld [vmem:[%s1 + $0x40] sm:$0xff]
    %v60 = vld [vmem:[%s1 + $0x48] sm:$0xf]
    %v61 = vld [vmem:[%s1 + $0x50] sm:$0xf]
    %v62 = vld [vmem:[%s1 + $0x58] sm:$0xf]
    %v63 = vld [vmem:[%s0 + $0xe] sm:$0xff]
    %v64 = vld [vmem:[%s0 + $0x16] sm:$0xf]
    %s65 = scalar_lea.vmem %s1, 96
    %v66 = vld [vmem:[%s65] sm:$0xff]
    %v67 = vld [vmem:[%s65 + $0x8] sm:$0xff]
    %v68 = vld [vmem:[%s65 + $0x10] sm:$0xff]
    %v69 = vld [vmem:[%s65 + $0x18] sm:$0xff]
    %v70 = vld [vmem:[%s65 + $0x20] sm:$0xff]
    %v71 = vld [vmem:[%s65 + $0x28] sm:$0xff]
    %v72 = vld [vmem:[%s65 + $0x30] sm:$0xff]
    %v73 = vld [vmem:[%s65 + $0x38] sm:$0xff]
    %v74 = vld [vmem:[%s65 + $0x40] sm:$0xff]
    %v75 = vld [vmem:[%s65 + $0x48] sm:$0xf]
    %v76 = vld [vmem:[%s65 + $0x50] sm:$0xf]
    %v77 = vld [vmem:[%s65 + $0x58] sm:$0xf]
    %vm78 = vcmask 228352
    %v80 = vsel %vm78, %v63, 0
    %v83 = vsel %vm78, %v64, 0
    %vm85 = vcmask 1043456
    %v87 = vsel %vm85, %v75, 0
    %v90 = vsel %vm85, %v76, 0
    %v93 = vsel %vm85, %v77, 0
    %95 = vmatpush.msra.mxu0 0.0
    %96 = vmatpush.msra.mxu0 0.0
    %97 = vmatpush.msra.mxu0 0.0
    %98 = vmatpush.msra.mxu0 0.0
    %99 = vmatpush.msra.mxu0 0.0
    %100 = vmatpush.msra.mxu0 0.0
    %101 = vmatpush.msra.mxu0 0.0
    %102 = vmatpush.msra.mxu0 0.0
    %103 = vmatpush.msra.mxu0 0.0
    %104 = vmatpush.msra.mxu0 0.0
    %105 = vmatpush.msra.mxu0 0.0
    %106 = vmatpush.msra.mxu0 0.0
    %107 = vmatpush.msra.mxu0 %v87
    %108 = vmatpush.msra.mxu0 %v72
    %109 = vmatpush.msra.mxu0 %v69
    %110 = vmatpush.msra.mxu0 %v66
    %111 = vmatmul.f32.gmra.mxu0 %v80
    %v112 = vpop.f32.mrf.mxu0
    %v113 = vadd.f32 0.0, %v112
    %114 = vmatmul.f32.gmra.mxu0 %v83
    %v115 = vpop.f32.mrf.mxu0
    %v116 = vadd.f32 0.0, %v115
    %117 = vdwg.mxu0
    %118 = vmatpush.msra.mxu0 0.0
    %119 = vmatpush.msra.mxu0 0.0
    %120 = vmatpush.msra.mxu0 0.0
    %121 = vmatpush.msra.mxu0 0.0
    %122 = vmatpush.msra.mxu0 0.0
    %123 = vmatpush.msra.mxu0 0.0
    %124 = vmatpush.msra.mxu0 0.0
    %125 = vmatpush.msra.mxu0 0.0
    %126 = vmatpush.msra.mxu0 0.0
    %127 = vmatpush.msra.mxu0 0.0
    %128 = vmatpush.msra.mxu0 0.0
    %129 = vmatpush.msra.mxu0 0.0
    %130 = vmatpush.msra.mxu0 %v90
    %131 = vmatpush.msra.mxu0 %v73
    %132 = vmatpush.msra.mxu0 %v70
    %133 = vmatpush.msra.mxu0 %v67
    %134 = vmatmul.f32.gmra.mxu0 %v80
    %v135 = vpop.f32.mrf.mxu0
    %v136 = vadd.f32 0.0, %v135
    %137 = vmatmul.f32.gmra.mxu0 %v83
    %v138 = vpop.f32.mrf.mxu0
    %v139 = vadd.f32 0.0, %v138
    %140 = vdwg.mxu0
    %141 = vmatpush.msra.mxu0 0.0
    %142 = vmatpush.msra.mxu0 0.0
    %143 = vmatpush.msra.mxu0 0.0
    %144 = vmatpush.msra.mxu0 0.0
    %145 = vmatpush.msra.mxu0 0.0
    %146 = vmatpush.msra.mxu0 0.0
    %147 = vmatpush.msra.mxu0 0.0
    %148 = vmatpush.msra.mxu0 0.0
    %149 = vmatpush.msra.mxu0 0.0
    %150 = vmatpush.msra.mxu0 0.0
    %151 = vmatpush.msra.mxu0 0.0
    %152 = vmatpush.msra.mxu0 0.0
    %153 = vmatpush.msra.mxu0 %v93
    %154 = vmatpush.msra.mxu0 %v74
    %155 = vmatpush.msra.mxu0 %v71
    %156 = vmatpush.msra.mxu0 %v68
    %157 = vmatmul.f32.gmra.mxu0 %v80
    %v158 = vpop.f32.mrf.mxu0
    %v159 = vadd.f32 0.0, %v158
    %160 = vmatmul.f32.gmra.mxu0 %v83
    %v161 = vpop.f32.mrf.mxu0
    %v162 = vadd.f32 0.0, %v161
    %163 = vdwg.mxu0
    %v165 = vsel %vm78, %v49, 0
    %v168 = vsel %vm78, %v50, 0
    %v171 = vsel %vm85, %v60, 0
    %v174 = vsel %vm85, %v61, 0
    %v177 = vsel %vm85, %v62, 0
    %179 = vmatpush.msra.mxu0 0.0
    %180 = vmatpush.msra.mxu0 0.0
    %181 = vmatpush.msra.mxu0 0.0
    %182 = vmatpush.msra.mxu0 0.0
    %183 = vmatpush.msra.mxu0 0.0
    %184 = vmatpush.msra.mxu0 0.0
    %185 = vmatpush.msra.mxu0 0.0
    %186 = vmatpush.msra.mxu0 0.0
    %187 = vmatpush.msra.mxu0 0.0
    %188 = vmatpush.msra.mxu0 0.0
    %189 = vmatpush.msra.mxu0 0.0
    %190 = vmatpush.msra.mxu0 0.0
    %191 = vmatpush.msra.mxu0 %v171
    %192 = vmatpush.msra.mxu0 %v57
    %193 = vmatpush.msra.mxu0 %v54
    %194 = vmatpush.msra.mxu0 %v51
    %195 = vmatmul.f32.gmra.mxu0 %v165
    %v196 = vpop.f32.mrf.mxu0
    %v197 = vadd.f32 %v113, %v196
    %198 = vmatmul.f32.gmra.mxu0 %v168
    %v199 = vpop.f32.mrf.mxu0
    %v200 = vadd.f32 %v116, %v199
    %201 = vdwg.mxu0
    %202 = vmatpush.msra.mxu0 0.0
    %203 = vmatpush.msra.mxu0 0.0
    %204 = vmatpush.msra.mxu0 0.0
    %205 = vmatpush.msra.mxu0 0.0
    %206 = vmatpush.msra.mxu0 0.0
    %207 = vmatpush.msra.mxu0 0.0
    %208 = vmatpush.msra.mxu0 0.0
    %209 = vmatpush.msra.mxu0 0.0
    %210 = vmatpush.msra.mxu0 0.0
    %211 = vmatpush.msra.mxu0 0.0
    %212 = vmatpush.msra.mxu0 0.0
    %213 = vmatpush.msra.mxu0 0.0
    %214 = vmatpush.msra.mxu0 %v174
    %215 = vmatpush.msra.mxu0 %v58
    %216 = vmatpush.msra.mxu0 %v55
    %217 = vmatpush.msra.mxu0 %v52
    %218 = vmatmul.f32.gmra.mxu0 %v165
    %v219 = vpop.f32.mrf.mxu0
    %v220 = vadd.f32 %v136, %v219
    %221 = vmatmul.f32.gmra.mxu0 %v168
    %v222 = vpop.f32.mrf.mxu0
    %v223 = vadd.f32 %v139, %v222
    %224 = vdwg.mxu0
    %225 = vmatpush.msra.mxu0 0.0
    %226 = vmatpush.msra.mxu0 0.0
    %227 = vmatpush.msra.mxu0 0.0
    %228 = vmatpush.msra.mxu0 0.0
    %229 = vmatpush.msra.mxu0 0.0
    %230 = vmatpush.msra.mxu0 0.0
    %231 = vmatpush.msra.mxu0 0.0
    %232 = vmatpush.msra.mxu0 0.0
    %233 = vmatpush.msra.mxu0 0.0
    %234 = vmatpush.msra.mxu0 0.0
    %235 = vmatpush.msra.mxu0 0.0
    %236 = vmatpush.msra.mxu0 0.0
    %237 = vmatpush.msra.mxu0 %v177
    %238 = vmatpush.msra.mxu0 %v59
    %239 = vmatpush.msra.mxu0 %v56
    %240 = vmatpush.msra.mxu0 %v53
    %241 = vmatmul.f32.gmra.mxu0 %v165
    %v242 = vpop.f32.mrf.mxu0
    %v243 = vadd.f32 %v159, %v242
    %244 = vmatmul.f32.gmra.mxu0 %v168
    %v245 = vpop.f32.mrf.mxu0
    %v246 = vadd.f32 %v162, %v245
    %247 = vdwg.mxu0
    %v248 = vld [vmem:[%s0 + $0x1c] sm:$0xff]
    %v249 = vld [vmem:[%s0 + $0x24] sm:$0xf]
    %s250 = scalar_lea.vmem %s1, 192
    %v251 = vld [vmem:[%s250] sm:$0xff]
    %v252 = vld [vmem:[%s250 + $0x8] sm:$0xff]
    %v253 = vld [vmem:[%s250 + $0x10] sm:$0xff]
    %v254 = vld [vmem:[%s250 + $0x18] sm:$0xff]
    %v255 = vld [vmem:[%s250 + $0x20] sm:$0xff]
    %v256 = vld [vmem:[%s250 + $0x28] sm:$0xff]
    %v257 = vld [vmem:[%s250 + $0x30] sm:$0xff]
    %v258 = vld [vmem:[%s250 + $0x38] sm:$0xff]
    %v259 = vld [vmem:[%s250 + $0x40] sm:$0xff]
    %v260 = vld [vmem:[%s250 + $0x48] sm:$0xf]
    %v261 = vld [vmem:[%s250 + $0x50] sm:$0xf]
    %v262 = vld [vmem:[%s250 + $0x58] sm:$0xf]
    %v264 = vsel %vm78, %v248, 0
    %v267 = vsel %vm78, %v249, 0
    %v270 = vsel %vm85, %v260, 0
    %v273 = vsel %vm85, %v261, 0
    %v276 = vsel %vm85, %v262, 0
    %278 = vmatpush.msra.mxu0 0.0
    %279 = vmatpush.msra.mxu0 0.0
    %280 = vmatpush.msra.mxu0 0.0
    %281 = vmatpush.msra.mxu0 0.0
    %282 = vmatpush.msra.mxu0 0.0
    %283 = vmatpush.msra.mxu0 0.0
    %284 = vmatpush.msra.mxu0 0.0
    %285 = vmatpush.msra.mxu0 0.0
    %286 = vmatpush.msra.mxu0 0.0
    %287 = vmatpush.msra.mxu0 0.0
    %288 = vmatpush.msra.mxu0 0.0
    %289 = vmatpush.msra.mxu0 0.0
    %290 = vmatpush.msra.mxu0 %v270
    %291 = vmatpush.msra.mxu0 %v257
    %292 = vmatpush.msra.mxu0 %v254
    %293 = vmatpush.msra.mxu0 %v251
    %294 = vmatmul.f32.gmra.mxu0 %v264
    %v295 = vpop.f32.mrf.mxu0
    %v296 = vadd.f32 0.0, %v295
    %297 = vmatmul.f32.gmra.mxu0 %v267
    %v298 = vpop.f32.mrf.mxu0
    %v299 = vadd.f32 0.0, %v298
    %300 = vdwg.mxu0
    %301 = vmatpush.msra.mxu0 0.0
    %302 = vmatpush.msra.mxu0 0.0
    %303 = vmatpush.msra.mxu0 0.0
    %304 = vmatpush.msra.mxu0 0.0
    %305 = vmatpush.msra.mxu0 0.0
    %306 = vmatpush.msra.mxu0 0.0
    %307 = vmatpush.msra.mxu0 0.0
    %308 = vmatpush.msra.mxu0 0.0
    %309 = vmatpush.msra.mxu0 0.0
    %310 = vmatpush.msra.mxu0 0.0
    %311 = vmatpush.msra.mxu0 0.0
    %312 = vmatpush.msra.mxu0 0.0
    %313 = vmatpush.msra.mxu0 %v273
    %314 = vmatpush.msra.mxu0 %v258
    %315 = vmatpush.msra.mxu0 %v255
    %316 = vmatpush.msra.mxu0 %v252
    %317 = vmatmul.f32.gmra.mxu0 %v264
    %v318 = vpop.f32.mrf.mxu0
    %v319 = vadd.f32 0.0, %v318
    %320 = vmatmul.f32.gmra.mxu0 %v267
    %v321 = vpop.f32.mrf.mxu0
    %v322 = vadd.f32 0.0, %v321
    %323 = vdwg.mxu0
    %324 = vmatpush.msra.mxu0 0.0
    %325 = vmatpush.msra.mxu0 0.0
    %326 = vmatpush.msra.mxu0 0.0
    %327 = vmatpush.msra.mxu0 0.0
    %328 = vmatpush.msra.mxu0 0.0
    %329 = vmatpush.msra.mxu0 0.0
    %330 = vmatpush.msra.mxu0 0.0
    %331 = vmatpush.msra.mxu0 0.0
    %332 = vmatpush.msra.mxu0 0.0
    %333 = vmatpush.msra.mxu0 0.0
    %334 = vmatpush.msra.mxu0 0.0
    %335 = vmatpush.msra.mxu0 0.0
    %336 = vmatpush.msra.mxu0 %v276
    %337 = vmatpush.msra.mxu0 %v259
    %338 = vmatpush.msra.mxu0 %v256
    %339 = vmatpush.msra.mxu0 %v253
    %340 = vmatmul.f32.gmra.mxu0 %v264
    %v341 = vpop.f32.mrf.mxu0
    %v342 = vadd.f32 0.0, %v341
    %343 = vmatmul.f32.gmra.mxu0 %v267
    %v344 = vpop.f32.mrf.mxu0
    %v345 = vadd.f32 0.0, %v344
    %346 = vdwg.mxu0
    %v347 = vadd.f32 %v197, %v296
    %v348 = vadd.f32 %v220, %v319
    %v349 = vadd.f32 %v243, %v342
    %v350 = vadd.f32 %v200, %v299
    %v351 = vadd.f32 %v223, %v322
    %v352 = vadd.f32 %v246, %v345
    %v353 = vld [vmem:[%s0 + $0x2a] sm:$0xff]
    %v354 = vld [vmem:[%s0 + $0x32] sm:$0xf]
    %s355 = scalar_lea.vmem %s1, 288
    %v356 = vld [vmem:[%s355] sm:$0xff]
    %v357 = vld [vmem:[%s355 + $0x8] sm:$0xff]
    %v358 = vld [vmem:[%s355 + $0x10] sm:$0xff]
    %v359 = vld [vmem:[%s355 + $0x18] sm:$0xff]
    %v360 = vld [vmem:[%s355 + $0x20] sm:$0xff]
    %v361 = vld [vmem:[%s355 + $0x28] sm:$0xff]
    %v362 = vld [vmem:[%s355 + $0x30] sm:$0xff]
    %v363 = vld [vmem:[%s355 + $0x38] sm:$0xff]
    %v364 = vld [vmem:[%s355 + $0x40] sm:$0xff]
    %v365 = vld [vmem:[%s355 + $0x48] sm:$0xf]
    %v366 = vld [vmem:[%s355 + $0x50] sm:$0xf]
    %v367 = vld [vmem:[%s355 + $0x58] sm:$0xf]
    %v369 = vsel %vm78, %v353, 0
    %v372 = vsel %vm78, %v354, 0
    %v375 = vsel %vm85, %v365, 0
    %v378 = vsel %vm85, %v366, 0
    %v381 = vsel %vm85, %v367, 0
    %383 = vmatpush.msra.mxu0 0.0
    %384 = vmatpush.msra.mxu0 0.0
    %385 = vmatpush.msra.mxu0 0.0
    %386 = vmatpush.msra.mxu0 0.0
    %387 = vmatpush.msra.mxu0 0.0
    %388 = vmatpush.msra.mxu0 0.0
    %389 = vmatpush.msra.mxu0 0.0
    %390 = vmatpush.msra.mxu0 0.0
    %391 = vmatpush.msra.mxu0 0.0
    %392 = vmatpush.msra.mxu0 0.0
    %393 = vmatpush.msra.mxu0 0.0
    %394 = vmatpush.msra.mxu0 0.0
    %395 = vmatpush.msra.mxu0 %v375
    %396 = vmatpush.msra.mxu0 %v362
    %397 = vmatpush.msra.mxu0 %v359
    %398 = vmatpush.msra.mxu0 %v356
    %399 = vmatmul.f32.gmra.mxu0 %v369
    %v400 = vpop.f32.mrf.mxu0
    %v401 = vadd.f32 0.0, %v400
    %402 = vmatmul.f32.gmra.mxu0 %v372
    %v403 = vpop.f32.mrf.mxu0
    %v404 = vadd.f32 0.0, %v403
    %405 = vdwg.mxu0
    %406 = vmatpush.msra.mxu0 0.0
    %407 = vmatpush.msra.mxu0 0.0
    %408 = vmatpush.msra.mxu0 0.0
    %409 = vmatpush.msra.mxu0 0.0
    %410 = vmatpush.msra.mxu0 0.0
    %411 = vmatpush.msra.mxu0 0.0
    %412 = vmatpush.msra.mxu0 0.0
    %413 = vmatpush.msra.mxu0 0.0
    %414 = vmatpush.msra.mxu0 0.0
    %415 = vmatpush.msra.mxu0 0.0
    %416 = vmatpush.msra.mxu0 0.0
    %417 = vmatpush.msra.mxu0 0.0
    %418 = vmatpush.msra.mxu0 %v378
    %419 = vmatpush.msra.mxu0 %v363
    %420 = vmatpush.msra.mxu0 %v360
    %421 = vmatpush.msra.mxu0 %v357
    %422 = vmatmul.f32.gmra.mxu0 %v369
    %v423 = vpop.f32.mrf.mxu0
    %v424 = vadd.f32 0.0, %v423
    %425 = vmatmul.f32.gmra.mxu0 %v372
    %v426 = vpop.f32.mrf.mxu0
    %v427 = vadd.f32 0.0, %v426
    %428 = vdwg.mxu0
    %429 = vmatpush.msra.mxu0 0.0
    %430 = vmatpush.msra.mxu0 0.0
    %431 = vmatpush.msra.mxu0 0.0
    %432 = vmatpush.msra.mxu0 0.0
    %433 = vmatpush.msra.mxu0 0.0
    %434 = vmatpush.msra.mxu0 0.0
    %435 = vmatpush.msra.mxu0 0.0
    %436 = vmatpush.msra.mxu0 0.0
    %437 = vmatpush.msra.mxu0 0.0
    %438 = vmatpush.msra.mxu0 0.0
    %439 = vmatpush.msra.mxu0 0.0
    %440 = vmatpush.msra.mxu0 0.0
    %441 = vmatpush.msra.mxu0 %v381
    %442 = vmatpush.msra.mxu0 %v364
    %443 = vmatpush.msra.mxu0 %v361
    %444 = vmatpush.msra.mxu0 %v358
    %445 = vmatmul.f32.gmra.mxu0 %v369
    %v446 = vpop.f32.mrf.mxu0
    %v447 = vadd.f32 0.0, %v446
    %448 = vmatmul.f32.gmra.mxu0 %v372
    %v449 = vpop.f32.mrf.mxu0
    %v450 = vadd.f32 0.0, %v449
    %451 = vdwg.mxu0
    %v452 = vadd.f32 %v347, %v401
    %v453 = vadd.f32 %v348, %v424
    %v454 = vadd.f32 %v349, %v447
    %v455 = vadd.f32 %v350, %v404
    %v456 = vadd.f32 %v351, %v427
    %v457 = vadd.f32 %v352, %v450
    %v458 = vld [vmem:[%s0 + $0x2] sm:$0xff]
    %v459 = vld [vmem:[%s0 + $0xa] sm:$0xf]
    %s460 = scalar_lea.vmem %s1, 384
    %v461 = vld [vmem:[%s460] sm:$0xff]
    %v462 = vld [vmem:[%s460 + $0x8] sm:$0xff]
    %v463 = vld [vmem:[%s460 + $0x10] sm:$0xff]
    %v464 = vld [vmem:[%s460 + $0x18] sm:$0xff]
    %v465 = vld [vmem:[%s460 + $0x20] sm:$0xff]
    %v466 = vld [vmem:[%s460 + $0x28] sm:$0xff]
    %v467 = vld [vmem:[%s460 + $0x30] sm:$0xff]
    %v468 = vld [vmem:[%s460 + $0x38] sm:$0xff]
    %v469 = vld [vmem:[%s460 + $0x40] sm:$0xff]
    %v470 = vld [vmem:[%s460 + $0x48] sm:$0xf]
    %v471 = vld [vmem:[%s460 + $0x50] sm:$0xf]
    %v472 = vld [vmem:[%s460 + $0x58] sm:$0xf]
    %v474 = vsel %vm78, %v458, 0
    %v477 = vsel %vm78, %v459, 0
    %v480 = vsel %vm85, %v470, 0
    %v483 = vsel %vm85, %v471, 0
    %v486 = vsel %vm85, %v472, 0
    %488 = vmatpush.msra.mxu0 0.0
    %489 = vmatpush.msra.mxu0 0.0
    %490 = vmatpush.msra.mxu0 0.0
    %491 = vmatpush.msra.mxu0 0.0
    %492 = vmatpush.msra.mxu0 0.0
    %493 = vmatpush.msra.mxu0 0.0
    %494 = vmatpush.msra.mxu0 0.0
    %495 = vmatpush.msra.mxu0 0.0
    %496 = vmatpush.msra.mxu0 0.0
    %497 = vmatpush.msra.mxu0 0.0
    %498 = vmatpush.msra.mxu0 0.0
    %499 = vmatpush.msra.mxu0 0.0
    %500 = vmatpush.msra.mxu0 %v480
    %501 = vmatpush.msra.mxu0 %v467
    %502 = vmatpush.msra.mxu0 %v464
    %503 = vmatpush.msra.mxu0 %v461
    %504 = vmatmul.f32.gmra.mxu0 %v474
    %v505 = vpop.f32.mrf.mxu0
    %v506 = vadd.f32 0.0, %v505
    %507 = vmatmul.f32.gmra.mxu0 %v477
    %v508 = vpop.f32.mrf.mxu0
    %v509 = vadd.f32 0.0, %v508
    %510 = vdwg.mxu0
    %511 = vmatpush.msra.mxu0 0.0
    %512 = vmatpush.msra.mxu0 0.0
    %513 = vmatpush.msra.mxu0 0.0
    %514 = vmatpush.msra.mxu0 0.0
    %515 = vmatpush.msra.mxu0 0.0
    %516 = vmatpush.msra.mxu0 0.0
    %517 = vmatpush.msra.mxu0 0.0
    %518 = vmatpush.msra.mxu0 0.0
    %519 = vmatpush.msra.mxu0 0.0
    %520 = vmatpush.msra.mxu0 0.0
    %521 = vmatpush.msra.mxu0 0.0
    %522 = vmatpush.msra.mxu0 0.0
    %523 = vmatpush.msra.mxu0 %v483
    %524 = vmatpush.msra.mxu0 %v468
    %525 = vmatpush.msra.mxu0 %v465
    %526 = vmatpush.msra.mxu0 %v462
    %527 = vmatmul.f32.gmra.mxu0 %v474
    %v528 = vpop.f32.mrf.mxu0
    %v529 = vadd.f32 0.0, %v528
    %530 = vmatmul.f32.gmra.mxu0 %v477
    %v531 = vpop.f32.mrf.mxu0
    %v532 = vadd.f32 0.0, %v531
    %533 = vdwg.mxu0
    %534 = vmatpush.msra.mxu0 0.0
    %535 = vmatpush.msra.mxu0 0.0
    %536 = vmatpush.msra.mxu0 0.0
    %537 = vmatpush.msra.mxu0 0.0
    %538 = vmatpush.msra.mxu0 0.0
    %539 = vmatpush.msra.mxu0 0.0
    %540 = vmatpush.msra.mxu0 0.0
    %541 = vmatpush.msra.mxu0 0.0
    %542 = vmatpush.msra.mxu0 0.0
    %543 = vmatpush.msra.mxu0 0.0
    %544 = vmatpush.msra.mxu0 0.0
    %545 = vmatpush.msra.mxu0 0.0
    %546 = vmatpush.msra.mxu0 %v486
    %547 = vmatpush.msra.mxu0 %v469
    %548 = vmatpush.msra.mxu0 %v466
    %549 = vmatpush.msra.mxu0 %v463
    %550 = vmatmul.f32.gmra.mxu0 %v474
    %v551 = vpop.f32.mrf.mxu0
    %v552 = vadd.f32 0.0, %v551
    %553 = vmatmul.f32.gmra.mxu0 %v477
    %v554 = vpop.f32.mrf.mxu0
    %v555 = vadd.f32 0.0, %v554
    %556 = vdwg.mxu0
    %v557 = vadd.f32 %v452, %v506
    %v558 = vadd.f32 %v453, %v529
    %v559 = vadd.f32 %v454, %v552
    %v560 = vadd.f32 %v455, %v509
    %v561 = vadd.f32 %v456, %v532
    %v562 = vadd.f32 %v457, %v555
    %563 = vmatpush.msra.mxu0 0.0
    %564 = vmatpush.msra.mxu0 0.0
    %565 = vmatpush.msra.mxu0 0.0
    %566 = vmatpush.msra.mxu0 0.0
    %567 = vmatpush.msra.mxu0 0.0
    %568 = vmatpush.msra.mxu0 0.0
    %569 = vmatpush.msra.mxu0 0.0
    %570 = vmatpush.msra.mxu0 0.0
    %571 = vmatpush.msra.mxu0 0.0
    %572 = vmatpush.msra.mxu0 0.0
    %573 = vmatpush.msra.mxu0 0.0
    %574 = vmatpush.msra.mxu0 0.0
    %575 = vmatpush.msra.mxu0 %v87
    %576 = vmatpush.msra.mxu0 %v72
    %577 = vmatpush.msra.mxu0 %v69
    %578 = vmatpush.msra.mxu0 %v66
    %579 = vmatmul.f32.gmra.mxu0 %v264
    %v580 = vpop.f32.mrf.mxu0
    %v581 = vadd.f32 0.0, %v580
    %582 = vmatmul.f32.gmra.mxu0 %v267
    %v583 = vpop.f32.mrf.mxu0
    %v584 = vadd.f32 0.0, %v583
    %585 = vdwg.mxu0
    %586 = vmatpush.msra.mxu0 0.0
    %587 = vmatpush.msra.mxu0 0.0
    %588 = vmatpush.msra.mxu0 0.0
    %589 = vmatpush.msra.mxu0 0.0
    %590 = vmatpush.msra.mxu0 0.0
    %591 = vmatpush.msra.mxu0 0.0
    %592 = vmatpush.msra.mxu0 0.0
    %593 = vmatpush.msra.mxu0 0.0
    %594 = vmatpush.msra.mxu0 0.0
    %595 = vmatpush.msra.mxu0 0.0
    %596 = vmatpush.msra.mxu0 0.0
    %597 = vmatpush.msra.mxu0 0.0
    %598 = vmatpush.msra.mxu0 %v90
    %599 = vmatpush.msra.mxu0 %v73
    %600 = vmatpush.msra.mxu0 %v70
    %601 = vmatpush.msra.mxu0 %v67
    %602 = vmatmul.f32.gmra.mxu0 %v264
    %v603 = vpop.f32.mrf.mxu0
    %v604 = vadd.f32 0.0, %v603
    %605 = vmatmul.f32.gmra.mxu0 %v267
    %v606 = vpop.f32.mrf.mxu0
    %v607 = vadd.f32 0.0, %v606
    %608 = vdwg.mxu0
    %609 = vmatpush.msra.mxu0 0.0
    %610 = vmatpush.msra.mxu0 0.0
    %611 = vmatpush.msra.mxu0 0.0
    %612 = vmatpush.msra.mxu0 0.0
    %613 = vmatpush.msra.mxu0 0.0
    %614 = vmatpush.msra.mxu0 0.0
    %615 = vmatpush.msra.mxu0 0.0
    %616 = vmatpush.msra.mxu0 0.0
    %617 = vmatpush.msra.mxu0 0.0
    %618 = vmatpush.msra.mxu0 0.0
    %619 = vmatpush.msra.mxu0 0.0
    %620 = vmatpush.msra.mxu0 0.0
    %621 = vmatpush.msra.mxu0 %v93
    %622 = vmatpush.msra.mxu0 %v74
    %623 = vmatpush.msra.mxu0 %v71
    %624 = vmatpush.msra.mxu0 %v68
    %625 = vmatmul.f32.gmra.mxu0 %v264
    %v626 = vpop.f32.mrf.mxu0
    %v627 = vadd.f32 0.0, %v626
    %628 = vmatmul.f32.gmra.mxu0 %v267
    %v629 = vpop.f32.mrf.mxu0
    %v630 = vadd.f32 0.0, %v629
    %631 = vdwg.mxu0
    %632 = vmatpush.msra.mxu0 0.0
    %633 = vmatpush.msra.mxu0 0.0
    %634 = vmatpush.msra.mxu0 0.0
    %635 = vmatpush.msra.mxu0 0.0
    %636 = vmatpush.msra.mxu0 0.0
    %637 = vmatpush.msra.mxu0 0.0
    %638 = vmatpush.msra.mxu0 0.0
    %639 = vmatpush.msra.mxu0 0.0
    %640 = vmatpush.msra.mxu0 0.0
    %641 = vmatpush.msra.mxu0 0.0
    %642 = vmatpush.msra.mxu0 0.0
    %643 = vmatpush.msra.mxu0 0.0
    %644 = vmatpush.msra.mxu0 %v171
    %645 = vmatpush.msra.mxu0 %v57
    %646 = vmatpush.msra.mxu0 %v54
    %647 = vmatpush.msra.mxu0 %v51
    %648 = vmatmul.f32.gmra.mxu0 %v80
    %v649 = vpop.f32.mrf.mxu0
    %v650 = vadd.f32 %v581, %v649
    %651 = vmatmul.f32.gmra.mxu0 %v83
    %v652 = vpop.f32.mrf.mxu0
    %v653 = vadd.f32 %v584, %v652
    %654 = vdwg.mxu0
    %655 = vmatpush.msra.mxu0 0.0
    %656 = vmatpush.msra.mxu0 0.0
    %657 = vmatpush.msra.mxu0 0.0
    %658 = vmatpush.msra.mxu0 0.0
    %659 = vmatpush.msra.mxu0 0.0
    %660 = vmatpush.msra.mxu0 0.0
    %661 = vmatpush.msra.mxu0 0.0
    %662 = vmatpush.msra.mxu0 0.0
    %663 = vmatpush.msra.mxu0 0.0
    %664 = vmatpush.msra.mxu0 0.0
    %665 = vmatpush.msra.mxu0 0.0
    %666 = vmatpush.msra.mxu0 0.0
    %667 = vmatpush.msra.mxu0 %v174
    %668 = vmatpush.msra.mxu0 %v58
    %669 = vmatpush.msra.mxu0 %v55
    %670 = vmatpush.msra.mxu0 %v52
    %671 = vmatmul.f32.gmra.mxu0 %v80
    %v672 = vpop.f32.mrf.mxu0
    %v673 = vadd.f32 %v604, %v672
    %674 = vmatmul.f32.gmra.mxu0 %v83
    %v675 = vpop.f32.mrf.mxu0
    %v676 = vadd.f32 %v607, %v675
    %677 = vdwg.mxu0
    %678 = vmatpush.msra.mxu0 0.0
    %679 = vmatpush.msra.mxu0 0.0
    %680 = vmatpush.msra.mxu0 0.0
    %681 = vmatpush.msra.mxu0 0.0
    %682 = vmatpush.msra.mxu0 0.0
    %683 = vmatpush.msra.mxu0 0.0
    %684 = vmatpush.msra.mxu0 0.0
    %685 = vmatpush.msra.mxu0 0.0
    %686 = vmatpush.msra.mxu0 0.0
    %687 = vmatpush.msra.mxu0 0.0
    %688 = vmatpush.msra.mxu0 0.0
    %689 = vmatpush.msra.mxu0 0.0
    %690 = vmatpush.msra.mxu0 %v177
    %691 = vmatpush.msra.mxu0 %v59
    %692 = vmatpush.msra.mxu0 %v56
    %693 = vmatpush.msra.mxu0 %v53
    %694 = vmatmul.f32.gmra.mxu0 %v80
    %v695 = vpop.f32.mrf.mxu0
    %v696 = vadd.f32 %v627, %v695
    %697 = vmatmul.f32.gmra.mxu0 %v83
    %v698 = vpop.f32.mrf.mxu0
    %v699 = vadd.f32 %v630, %v698
    %700 = vdwg.mxu0
    %701 = vmatpush.msra.mxu0 0.0
    %702 = vmatpush.msra.mxu0 0.0
    %703 = vmatpush.msra.mxu0 0.0
    %704 = vmatpush.msra.mxu0 0.0
    %705 = vmatpush.msra.mxu0 0.0
    %706 = vmatpush.msra.mxu0 0.0
    %707 = vmatpush.msra.mxu0 0.0
    %708 = vmatpush.msra.mxu0 0.0
    %709 = vmatpush.msra.mxu0 0.0
    %710 = vmatpush.msra.mxu0 0.0
    %711 = vmatpush.msra.mxu0 0.0
    %712 = vmatpush.msra.mxu0 0.0
    %713 = vmatpush.msra.mxu0 %v270
    %714 = vmatpush.msra.mxu0 %v257
    %715 = vmatpush.msra.mxu0 %v254
    %716 = vmatpush.msra.mxu0 %v251
    %717 = vmatmul.f32.gmra.mxu0 %v369
    %v718 = vpop.f32.mrf.mxu0
    %v719 = vadd.f32 0.0, %v718
    %720 = vmatmul.f32.gmra.mxu0 %v372
    %v721 = vpop.f32.mrf.mxu0
    %v722 = vadd.f32 0.0, %v721
    %723 = vdwg.mxu0
    %724 = vmatpush.msra.mxu0 0.0
    %725 = vmatpush.msra.mxu0 0.0
    %726 = vmatpush.msra.mxu0 0.0
    %727 = vmatpush.msra.mxu0 0.0
    %728 = vmatpush.msra.mxu0 0.0
    %729 = vmatpush.msra.mxu0 0.0
    %730 = vmatpush.msra.mxu0 0.0
    %731 = vmatpush.msra.mxu0 0.0
    %732 = vmatpush.msra.mxu0 0.0
    %733 = vmatpush.msra.mxu0 0.0
    %734 = vmatpush.msra.mxu0 0.0
    %735 = vmatpush.msra.mxu0 0.0
    %736 = vmatpush.msra.mxu0 %v273
    %737 = vmatpush.msra.mxu0 %v258
    %738 = vmatpush.msra.mxu0 %v255
    %739 = vmatpush.msra.mxu0 %v252
    %740 = vmatmul.f32.gmra.mxu0 %v369
    %v741 = vpop.f32.mrf.mxu0
    %v742 = vadd.f32 0.0, %v741
    %743 = vmatmul.f32.gmra.mxu0 %v372
    %v744 = vpop.f32.mrf.mxu0
    %v745 = vadd.f32 0.0, %v744
    %746 = vdwg.mxu0
    %747 = vmatpush.msra.mxu0 0.0
    %748 = vmatpush.msra.mxu0 0.0
    %749 = vmatpush.msra.mxu0 0.0
    %750 = vmatpush.msra.mxu0 0.0
    %751 = vmatpush.msra.mxu0 0.0
    %752 = vmatpush.msra.mxu0 0.0
    %753 = vmatpush.msra.mxu0 0.0
    %754 = vmatpush.msra.mxu0 0.0
    %755 = vmatpush.msra.mxu0 0.0
    %756 = vmatpush.msra.mxu0 0.0
    %757 = vmatpush.msra.mxu0 0.0
    %758 = vmatpush.msra.mxu0 0.0
    %759 = vmatpush.msra.mxu0 %v276
    %760 = vmatpush.msra.mxu0 %v259
    %761 = vmatpush.msra.mxu0 %v256
    %762 = vmatpush.msra.mxu0 %v253
    %763 = vmatmul.f32.gmra.mxu0 %v369
    %v764 = vpop.f32.mrf.mxu0
    %v765 = vadd.f32 0.0, %v764
    %766 = vmatmul.f32.gmra.mxu0 %v372
    %v767 = vpop.f32.mrf.mxu0
    %v768 = vadd.f32 0.0, %v767
    %769 = vdwg.mxu0
    %v770 = vadd.f32 %v650, %v719
    %v771 = vadd.f32 %v673, %v742
    %v772 = vadd.f32 %v696, %v765
    %v773 = vadd.f32 %v653, %v722
    %v774 = vadd.f32 %v676, %v745
    %v775 = vadd.f32 %v699, %v768
    %776 = vmatpush.msra.mxu0 0.0
    %777 = vmatpush.msra.mxu0 0.0
    %778 = vmatpush.msra.mxu0 0.0
    %779 = vmatpush.msra.mxu0 0.0
    %780 = vmatpush.msra.mxu0 0.0
    %781 = vmatpush.msra.mxu0 0.0
    %782 = vmatpush.msra.mxu0 0.0
    %783 = vmatpush.msra.mxu0 0.0
    %784 = vmatpush.msra.mxu0 0.0
    %785 = vmatpush.msra.mxu0 0.0
    %786 = vmatpush.msra.mxu0 0.0
    %787 = vmatpush.msra.mxu0 0.0
    %788 = vmatpush.msra.mxu0 %v375
    %789 = vmatpush.msra.mxu0 %v362
    %790 = vmatpush.msra.mxu0 %v359
    %791 = vmatpush.msra.mxu0 %v356
    %792 = vmatmul.f32.gmra.mxu0 %v474
    %v793 = vpop.f32.mrf.mxu0
    %v794 = vadd.f32 0.0, %v793
    %795 = vmatmul.f32.gmra.mxu0 %v477
    %v796 = vpop.f32.mrf.mxu0
    %v797 = vadd.f32 0.0, %v796
    %798 = vdwg.mxu0
    %799 = vmatpush.msra.mxu0 0.0
    %800 = vmatpush.msra.mxu0 0.0
    %801 = vmatpush.msra.mxu0 0.0
    %802 = vmatpush.msra.mxu0 0.0
    %803 = vmatpush.msra.mxu0 0.0
    %804 = vmatpush.msra.mxu0 0.0
    %805 = vmatpush.msra.mxu0 0.0
    %806 = vmatpush.msra.mxu0 0.0
    %807 = vmatpush.msra.mxu0 0.0
    %808 = vmatpush.msra.mxu0 0.0
    %809 = vmatpush.msra.mxu0 0.0
    %810 = vmatpush.msra.mxu0 0.0
    %811 = vmatpush.msra.mxu0 %v378
    %812 = vmatpush.msra.mxu0 %v363
    %813 = vmatpush.msra.mxu0 %v360
    %814 = vmatpush.msra.mxu0 %v357
    %815 = vmatmul.f32.gmra.mxu0 %v474
    %v816 = vpop.f32.mrf.mxu0
    %v817 = vadd.f32 0.0, %v816
    %818 = vmatmul.f32.gmra.mxu0 %v477
    %v819 = vpop.f32.mrf.mxu0
    %v820 = vadd.f32 0.0, %v819
    %821 = vdwg.mxu0
    %822 = vmatpush.msra.mxu0 0.0
    %823 = vmatpush.msra.mxu0 0.0
    %824 = vmatpush.msra.mxu0 0.0
    %825 = vmatpush.msra.mxu0 0.0
    %826 = vmatpush.msra.mxu0 0.0
    %827 = vmatpush.msra.mxu0 0.0
    %828 = vmatpush.msra.mxu0 0.0
    %829 = vmatpush.msra.mxu0 0.0
    %830 = vmatpush.msra.mxu0 0.0
    %831 = vmatpush.msra.mxu0 0.0
    %832 = vmatpush.msra.mxu0 0.0
    %833 = vmatpush.msra.mxu0 0.0
    %834 = vmatpush.msra.mxu0 %v381
    %835 = vmatpush.msra.mxu0 %v364
    %836 = vmatpush.msra.mxu0 %v361
    %837 = vmatpush.msra.mxu0 %v358
    %838 = vmatmul.f32.gmra.mxu0 %v474
    %v839 = vpop.f32.mrf.mxu0
    %v840 = vadd.f32 0.0, %v839
    %841 = vmatmul.f32.gmra.mxu0 %v477
    %v842 = vpop.f32.mrf.mxu0
    %v843 = vadd.f32 0.0, %v842
    %844 = vdwg.mxu0
    %v845 = vadd.f32 %v770, %v794
    %v846 = vadd.f32 %v771, %v817
    %v847 = vadd.f32 %v772, %v840
    %v848 = vadd.f32 %v773, %v797
    %v849 = vadd.f32 %v774, %v820
    %v850 = vadd.f32 %v775, %v843
    %v851 = vld [vmem:[%s0 + $0x10] sm:$0xff]
    %v852 = vld [vmem:[%s0 + $0x18] sm:$0xf]
    %v854 = vsel %vm78, %v851, 0
    %v857 = vsel %vm78, %v852, 0
    %859 = vmatpush.msra.mxu0 0.0
    %860 = vmatpush.msra.mxu0 0.0
    %861 = vmatpush.msra.mxu0 0.0
    %862 = vmatpush.msra.mxu0 0.0
    %863 = vmatpush.msra.mxu0 0.0
    %864 = vmatpush.msra.mxu0 0.0
    %865 = vmatpush.msra.mxu0 0.0
    %866 = vmatpush.msra.mxu0 0.0
    %867 = vmatpush.msra.mxu0 0.0
    %868 = vmatpush.msra.mxu0 0.0
    %869 = vmatpush.msra.mxu0 0.0
    %870 = vmatpush.msra.mxu0 0.0
    %871 = vmatpush.msra.mxu0 %v480
    %872 = vmatpush.msra.mxu0 %v467
    %873 = vmatpush.msra.mxu0 %v464
    %874 = vmatpush.msra.mxu0 %v461
    %875 = vmatmul.f32.gmra.mxu0 %v854
    %v876 = vpop.f32.mrf.mxu0
    %v877 = vadd.f32 0.0, %v876
    %878 = vmatmul.f32.gmra.mxu0 %v857
    %v879 = vpop.f32.mrf.mxu0
    %v880 = vadd.f32 0.0, %v879
    %881 = vdwg.mxu0
    %882 = vmatpush.msra.mxu0 0.0
    %883 = vmatpush.msra.mxu0 0.0
    %884 = vmatpush.msra.mxu0 0.0
    %885 = vmatpush.msra.mxu0 0.0
    %886 = vmatpush.msra.mxu0 0.0
    %887 = vmatpush.msra.mxu0 0.0
    %888 = vmatpush.msra.mxu0 0.0
    %889 = vmatpush.msra.mxu0 0.0
    %890 = vmatpush.msra.mxu0 0.0
    %891 = vmatpush.msra.mxu0 0.0
    %892 = vmatpush.msra.mxu0 0.0
    %893 = vmatpush.msra.mxu0 0.0
    %894 = vmatpush.msra.mxu0 %v483
    %895 = vmatpush.msra.mxu0 %v468
    %896 = vmatpush.msra.mxu0 %v465
    %897 = vmatpush.msra.mxu0 %v462
    %898 = vmatmul.f32.gmra.mxu0 %v854
    %v899 = vpop.f32.mrf.mxu0
    %v900 = vadd.f32 0.0, %v899
    %901 = vmatmul.f32.gmra.mxu0 %v857
    %v902 = vpop.f32.mrf.mxu0
    %v903 = vadd.f32 0.0, %v902
    %904 = vdwg.mxu0
    %905 = vmatpush.msra.mxu0 0.0
    %906 = vmatpush.msra.mxu0 0.0
    %907 = vmatpush.msra.mxu0 0.0
    %908 = vmatpush.msra.mxu0 0.0
    %909 = vmatpush.msra.mxu0 0.0
    %910 = vmatpush.msra.mxu0 0.0
    %911 = vmatpush.msra.mxu0 0.0
    %912 = vmatpush.msra.mxu0 0.0
    %913 = vmatpush.msra.mxu0 0.0
    %914 = vmatpush.msra.mxu0 0.0
    %915 = vmatpush.msra.mxu0 0.0
    %916 = vmatpush.msra.mxu0 0.0
    %917 = vmatpush.msra.mxu0 %v486
    %918 = vmatpush.msra.mxu0 %v469
    %919 = vmatpush.msra.mxu0 %v466
    %920 = vmatpush.msra.mxu0 %v463
    %921 = vmatmul.f32.gmra.mxu0 %v854
    %v922 = vpop.f32.mrf.mxu0
    %v923 = vadd.f32 0.0, %v922
    %924 = vmatmul.f32.gmra.mxu0 %v857
    %v925 = vpop.f32.mrf.mxu0
    %v926 = vadd.f32 0.0, %v925
    %927 = vdwg.mxu0
    %v928 = vadd.f32 %v845, %v877
    %v929 = vadd.f32 %v846, %v900
    %v930 = vadd.f32 %v847, %v923
    %v931 = vadd.f32 %v848, %v880
    %v932 = vadd.f32 %v849, %v903
    %v933 = vadd.f32 %v850, %v926
    %v934 = vmax.f32 %v557, %v928
    %v935 = vmax.f32 %v558, %v929
    %v936 = vmax.f32 %v559, %v930
    %v937 = vmax.f32 %v560, %v931
    %v938 = vmax.f32 %v561, %v932
    %v939 = vmax.f32 %v562, %v933
    %944 = vrot.lane.b32.xlu0 %v935, 112
    %v945 = vpop.permute.xlu0 %944
    %946 = vrot.lane.b32.xlu0 %v936, 112
    %v947 = vpop.permute.xlu0 %946
    %948 = vrot.lane.b32.xlu0 %v938, 112
    %v949 = vpop.permute.xlu0 %948
    %950 = vrot.lane.b32.xlu0 %v939, 112
    %v951 = vpop.permute.xlu0 %950
    %vm952 = vcmask 916480
    %v953 = vsel %vm952, %v945, %v947
    %v954 = vsel %vm952, %v949, %v951
    %v959 = vmax.f32 %v934, %v953
    %v960 = vmax.f32 %v935, %v947
    %v961 = vmax.f32 %v937, %v954
    %v962 = vmax.f32 %v938, %v951
    %v963 = vld [vmem:[%s2] sm:$0x3]
    %v965 = vperm.slane %v963, 0
    %v966 = vperm.slane %v963, 1
    %v969 = vadd.f32 %v959, %v965
    %v970 = vadd.f32 %v960, %v966
    %v971 = vadd.f32 %v961, %v965
    %v972 = vadd.f32 %v962, %v966
    %v973 = vmax.f32 %v969, 0.0
    %v974 = vmax.f32 %v970, 0.0
    %v975 = vmax.f32 %v971, 0.0
    %v976 = vmax.f32 %v972, 0.0
    %977 = vmatpush.msra.mxu0 0.0
    %978 = vmatpush.msra.mxu0 0.0
    %979 = vmatpush.msra.mxu0 0.0
    %980 = vmatpush.msra.mxu0 0.0
    %981 = vmatpush.msra.mxu0 0.0
    %982 = vmatpush.msra.mxu0 0.0
    %983 = vmatpush.msra.mxu0 0.0
    %984 = vmatpush.msra.mxu0 0.0
    %985 = vmatpush.msra.mxu0 0.0
    %986 = vmatpush.msra.mxu0 0.0
    %987 = vmatpush.msra.mxu0 0.0
    %988 = vmatpush.msra.mxu0 0.0
    %989 = vmatpush.msra.mxu0 %v87
    %990 = vmatpush.msra.mxu0 %v72
    %991 = vmatpush.msra.mxu0 %v69
    %992 = vmatpush.msra.mxu0 %v66
    %993 = vmatmul.f32.gmra.mxu0 %v369
    %v994 = vpop.f32.mrf.mxu0
    %v995 = vadd.f32 0.0, %v994
    %996 = vmatmul.f32.gmra.mxu0 %v372
    %v997 = vpop.f32.mrf.mxu0
    %v998 = vadd.f32 0.0, %v997
    %999 = vdwg.mxu0
    %1000 = vmatpush.msra.mxu0 0.0
    %1001 = vmatpush.msra.mxu0 0.0
    %1002 = vmatpush.msra.mxu0 0.0
    %1003 = vmatpush.msra.mxu0 0.0
    %1004 = vmatpush.msra.mxu0 0.0
    %1005 = vmatpush.msra.mxu0 0.0
    %1006 = vmatpush.msra.mxu0 0.0
    %1007 = vmatpush.msra.mxu0 0.0
    %1008 = vmatpush.msra.mxu0 0.0
    %1009 = vmatpush.msra.mxu0 0.0
    %1010 = vmatpush.msra.mxu0 0.0
    %1011 = vmatpush.msra.mxu0 0.0
    %1012 = vmatpush.msra.mxu0 %v90
    %1013 = vmatpush.msra.mxu0 %v73
    %1014 = vmatpush.msra.mxu0 %v70
    %1015 = vmatpush.msra.mxu0 %v67
    %1016 = vmatmul.f32.gmra.mxu0 %v369
    %v1017 = vpop.f32.mrf.mxu0
    %v1018 = vadd.f32 0.0, %v1017
    %1019 = vmatmul.f32.gmra.mxu0 %v372
    %v1020 = vpop.f32.mrf.mxu0
    %v1021 = vadd.f32 0.0, %v1020
    %1022 = vdwg.mxu0
    %1023 = vmatpush.msra.mxu0 0.0
    %1024 = vmatpush.msra.mxu0 0.0
    %1025 = vmatpush.msra.mxu0 0.0
    %1026 = vmatpush.msra.mxu0 0.0
    %1027 = vmatpush.msra.mxu0 0.0
    %1028 = vmatpush.msra.mxu0 0.0
    %1029 = vmatpush.msra.mxu0 0.0
    %1030 = vmatpush.msra.mxu0 0.0
    %1031 = vmatpush.msra.mxu0 0.0
    %1032 = vmatpush.msra.mxu0 0.0
    %1033 = vmatpush.msra.mxu0 0.0
    %1034 = vmatpush.msra.mxu0 0.0
    %1035 = vmatpush.msra.mxu0 %v93
    %1036 = vmatpush.msra.mxu0 %v74
    %1037 = vmatpush.msra.mxu0 %v71
    %1038 = vmatpush.msra.mxu0 %v68
    %1039 = vmatmul.f32.gmra.mxu0 %v369
    %v1040 = vpop.f32.mrf.mxu0
    %v1041 = vadd.f32 0.0, %v1040
    %1042 = vmatmul.f32.gmra.mxu0 %v372
    %v1043 = vpop.f32.mrf.mxu0
    %v1044 = vadd.f32 0.0, %v1043
    %1045 = vdwg.mxu0
    %1046 = vmatpush.msra.mxu0 0.0
    %1047 = vmatpush.msra.mxu0 0.0
    %1048 = vmatpush.msra.mxu0 0.0
    %1049 = vmatpush.msra.mxu0 0.0
    %1050 = vmatpush.msra.mxu0 0.0
    %1051 = vmatpush.msra.mxu0 0.0
    %1052 = vmatpush.msra.mxu0 0.0
    %1053 = vmatpush.msra.mxu0 0.0
    %1054 = vmatpush.msra.mxu0 0.0
    %1055 = vmatpush.msra.mxu0 0.0
    %1056 = vmatpush.msra.mxu0 0.0
    %1057 = vmatpush.msra.mxu0 0.0
    %1058 = vmatpush.msra.mxu0 %v171
    %1059 = vmatpush.msra.mxu0 %v57
    %1060 = vmatpush.msra.mxu0 %v54
    %1061 = vmatpush.msra.mxu0 %v51
    %1062 = vmatmul.f32.gmra.mxu0 %v264
    %v1063 = vpop.f32.mrf.mxu0
    %v1064 = vadd.f32 %v995, %v1063
    %1065 = vmatmul.f32.gmra.mxu0 %v267
    %v1066 = vpop.f32.mrf.mxu0
    %v1067 = vadd.f32 %v998, %v1066
    %1068 = vdwg.mxu0
    %1069 = vmatpush.msra.mxu0 0.0
    %1070 = vmatpush.msra.mxu0 0.0
    %1071 = vmatpush.msra.mxu0 0.0
    %1072 = vmatpush.msra.mxu0 0.0
    %1073 = vmatpush.msra.mxu0 0.0
    %1074 = vmatpush.msra.mxu0 0.0
    %1075 = vmatpush.msra.mxu0 0.0
    %1076 = vmatpush.msra.mxu0 0.0
    %1077 = vmatpush.msra.mxu0 0.0
    %1078 = vmatpush.msra.mxu0 0.0
    %1079 = vmatpush.msra.mxu0 0.0
    %1080 = vmatpush.msra.mxu0 0.0
    %1081 = vmatpush.msra.mxu0 %v174
    %1082 = vmatpush.msra.mxu0 %v58
    %1083 = vmatpush.msra.mxu0 %v55
    %1084 = vmatpush.msra.mxu0 %v52
    %1085 = vmatmul.f32.gmra.mxu0 %v264
    %v1086 = vpop.f32.mrf.mxu0
    %v1087 = vadd.f32 %v1018, %v1086
    %1088 = vmatmul.f32.gmra.mxu0 %v267
    %v1089 = vpop.f32.mrf.mxu0
    %v1090 = vadd.f32 %v1021, %v1089
    %1091 = vdwg.mxu0
    %1092 = vmatpush.msra.mxu0 0.0
    %1093 = vmatpush.msra.mxu0 0.0
    %1094 = vmatpush.msra.mxu0 0.0
    %1095 = vmatpush.msra.mxu0 0.0
    %1096 = vmatpush.msra.mxu0 0.0
    %1097 = vmatpush.msra.mxu0 0.0
    %1098 = vmatpush.msra.mxu0 0.0
    %1099 = vmatpush.msra.mxu0 0.0
    %1100 = vmatpush.msra.mxu0 0.0
    %1101 = vmatpush.msra.mxu0 0.0
    %1102 = vmatpush.msra.mxu0 0.0
    %1103 = vmatpush.msra.mxu0 0.0
    %1104 = vmatpush.msra.mxu0 %v177
    %1105 = vmatpush.msra.mxu0 %v59
    %1106 = vmatpush.msra.mxu0 %v56
    %1107 = vmatpush.msra.mxu0 %v53
    %1108 = vmatmul.f32.gmra.mxu0 %v264
    %v1109 = vpop.f32.mrf.mxu0
    %v1110 = vadd.f32 %v1041, %v1109
    %1111 = vmatmul.f32.gmra.mxu0 %v267
    %v1112 = vpop.f32.mrf.mxu0
    %v1113 = vadd.f32 %v1044, %v1112
    %1114 = vdwg.mxu0
    %1115 = vmatpush.msra.mxu0 0.0
    %1116 = vmatpush.msra.mxu0 0.0
    %1117 = vmatpush.msra.mxu0 0.0
    %1118 = vmatpush.msra.mxu0 0.0
    %1119 = vmatpush.msra.mxu0 0.0
    %1120 = vmatpush.msra.mxu0 0.0
    %1121 = vmatpush.msra.mxu0 0.0
    %1122 = vmatpush.msra.mxu0 0.0
    %1123 = vmatpush.msra.mxu0 0.0
    %1124 = vmatpush.msra.mxu0 0.0
    %1125 = vmatpush.msra.mxu0 0.0
    %1126 = vmatpush.msra.mxu0 0.0
    %1127 = vmatpush.msra.mxu0 %v270
    %1128 = vmatpush.msra.mxu0 %v257
    %1129 = vmatpush.msra.mxu0 %v254
    %1130 = vmatpush.msra.mxu0 %v251
    %1131 = vmatmul.f32.gmra.mxu0 %v474
    %v1132 = vpop.f32.mrf.mxu0
    %v1133 = vadd.f32 0.0, %v1132
    %1134 = vmatmul.f32.gmra.mxu0 %v477
    %v1135 = vpop.f32.mrf.mxu0
    %v1136 = vadd.f32 0.0, %v1135
    %1137 = vdwg.mxu0
    %1138 = vmatpush.msra.mxu0 0.0
    %1139 = vmatpush.msra.mxu0 0.0
    %1140 = vmatpush.msra.mxu0 0.0
    %1141 = vmatpush.msra.mxu0 0.0
    %1142 = vmatpush.msra.mxu0 0.0
    %1143 = vmatpush.msra.mxu0 0.0
    %1144 = vmatpush.msra.mxu0 0.0
    %1145 = vmatpush.msra.mxu0 0.0
    %1146 = vmatpush.msra.mxu0 0.0
    %1147 = vmatpush.msra.mxu0 0.0
    %1148 = vmatpush.msra.mxu0 0.0
    %1149 = vmatpush.msra.mxu0 0.0
    %1150 = vmatpush.msra.mxu0 %v273
    %1151 = vmatpush.msra.mxu0 %v258
    %1152 = vmatpush.msra.mxu0 %v255
    %1153 = vmatpush.msra.mxu0 %v252
    %1154 = vmatmul.f32.gmra.mxu0 %v474
    %v1155 = vpop.f32.mrf.mxu0
    %v1156 = vadd.f32 0.0, %v1155
    %1157 = vmatmul.f32.gmra.mxu0 %v477
    %v1158 = vpop.f32.mrf.mxu0
    %v1159 = vadd.f32 0.0, %v1158
    %1160 = vdwg.mxu0
    %1161 = vmatpush.msra.mxu0 0.0
    %1162 = vmatpush.msra.mxu0 0.0
    %1163 = vmatpush.msra.mxu0 0.0
    %1164 = vmatpush.msra.mxu0 0.0
    %1165 = vmatpush.msra.mxu0 0.0
    %1166 = vmatpush.msra.mxu0 0.0
    %1167 = vmatpush.msra.mxu0 0.0
    %1168 = vmatpush.msra.mxu0 0.0
    %1169 = vmatpush.msra.mxu0 0.0
    %1170 = vmatpush.msra.mxu0 0.0
    %1171 = vmatpush.msra.mxu0 0.0
    %1172 = vmatpush.msra.mxu0 0.0
    %1173 = vmatpush.msra.mxu0 %v276
    %1174 = vmatpush.msra.mxu0 %v259
    %1175 = vmatpush.msra.mxu0 %v256
    %1176 = vmatpush.msra.mxu0 %v253
    %1177 = vmatmul.f32.gmra.mxu0 %v474
    %v1178 = vpop.f32.mrf.mxu0
    %v1179 = vadd.f32 0.0, %v1178
    %1180 = vmatmul.f32.gmra.mxu0 %v477
    %v1181 = vpop.f32.mrf.mxu0
    %v1182 = vadd.f32 0.0, %v1181
    %1183 = vdwg.mxu0
    %v1184 = vadd.f32 %v1064, %v1133
    %v1185 = vadd.f32 %v1087, %v1156
    %v1186 = vadd.f32 %v1110, %v1179
    %v1187 = vadd.f32 %v1067, %v1136
    %v1188 = vadd.f32 %v1090, %v1159
    %v1189 = vadd.f32 %v1113, %v1182
    %1190 = vmatpush.msra.mxu0 0.0
    %1191 = vmatpush.msra.mxu0 0.0
    %1192 = vmatpush.msra.mxu0 0.0
    %1193 = vmatpush.msra.mxu0 0.0
    %1194 = vmatpush.msra.mxu0 0.0
    %1195 = vmatpush.msra.mxu0 0.0
    %1196 = vmatpush.msra.mxu0 0.0
    %1197 = vmatpush.msra.mxu0 0.0
    %1198 = vmatpush.msra.mxu0 0.0
    %1199 = vmatpush.msra.mxu0 0.0
    %1200 = vmatpush.msra.mxu0 0.0
    %1201 = vmatpush.msra.mxu0 0.0
    %1202 = vmatpush.msra.mxu0 %v375
    %1203 = vmatpush.msra.mxu0 %v362
    %1204 = vmatpush.msra.mxu0 %v359
    %1205 = vmatpush.msra.mxu0 %v356
    %1206 = vmatmul.f32.gmra.mxu0 %v854
    %v1207 = vpop.f32.mrf.mxu0
    %v1208 = vadd.f32 0.0, %v1207
    %1209 = vmatmul.f32.gmra.mxu0 %v857
    %v1210 = vpop.f32.mrf.mxu0
    %v1211 = vadd.f32 0.0, %v1210
    %1212 = vdwg.mxu0
    %1213 = vmatpush.msra.mxu0 0.0
    %1214 = vmatpush.msra.mxu0 0.0
    %1215 = vmatpush.msra.mxu0 0.0
    %1216 = vmatpush.msra.mxu0 0.0
    %1217 = vmatpush.msra.mxu0 0.0
    %1218 = vmatpush.msra.mxu0 0.0
    %1219 = vmatpush.msra.mxu0 0.0
    %1220 = vmatpush.msra.mxu0 0.0
    %1221 = vmatpush.msra.mxu0 0.0
    %1222 = vmatpush.msra.mxu0 0.0
    %1223 = vmatpush.msra.mxu0 0.0
    %1224 = vmatpush.msra.mxu0 0.0
    %1225 = vmatpush.msra.mxu0 %v378
    %1226 = vmatpush.msra.mxu0 %v363
    %1227 = vmatpush.msra.mxu0 %v360
    %1228 = vmatpush.msra.mxu0 %v357
    %1229 = vmatmul.f32.gmra.mxu0 %v854
    %v1230 = vpop.f32.mrf.mxu0
    %v1231 = vadd.f32 0.0, %v1230
    %1232 = vmatmul.f32.gmra.mxu0 %v857
    %v1233 = vpop.f32.mrf.mxu0
    %v1234 = vadd.f32 0.0, %v1233
    %1235 = vdwg.mxu0
    %1236 = vmatpush.msra.mxu0 0.0
    %1237 = vmatpush.msra.mxu0 0.0
    %1238 = vmatpush.msra.mxu0 0.0
    %1239 = vmatpush.msra.mxu0 0.0
    %1240 = vmatpush.msra.mxu0 0.0
    %1241 = vmatpush.msra.mxu0 0.0
    %1242 = vmatpush.msra.mxu0 0.0
    %1243 = vmatpush.msra.mxu0 0.0
    %1244 = vmatpush.msra.mxu0 0.0
    %1245 = vmatpush.msra.mxu0 0.0
    %1246 = vmatpush.msra.mxu0 0.0
    %1247 = vmatpush.msra.mxu0 0.0
    %1248 = vmatpush.msra.mxu0 %v381
    %1249 = vmatpush.msra.mxu0 %v364
    %1250 = vmatpush.msra.mxu0 %v361
    %1251 = vmatpush.msra.mxu0 %v358
    %1252 = vmatmul.f32.gmra.mxu0 %v854
    %v1253 = vpop.f32.mrf.mxu0
    %v1254 = vadd.f32 0.0, %v1253
    %1255 = vmatmul.f32.gmra.mxu0 %v857
    %v1256 = vpop.f32.mrf.mxu0
    %v1257 = vadd.f32 0.0, %v1256
    %1258 = vdwg.mxu0
    %v1259 = vadd.f32 %v1184, %v1208
    %v1260 = vadd.f32 %v1185, %v1231
    %v1261 = vadd.f32 %v1186, %v1254
    %v1262 = vadd.f32 %v1187, %v1211
    %v1263 = vadd.f32 %v1188, %v1234
    %v1264 = vadd.f32 %v1189, %v1257
    %v1265 = vld [vmem:[%s0 + $0x1e] sm:$0xff]
    %v1266 = vld [vmem:[%s0 + $0x26] sm:$0xf]
    %v1268 = vsel %vm78, %v1265, 0
    %v1271 = vsel %vm78, %v1266, 0
    %1273 = vmatpush.msra.mxu0 0.0
    %1274 = vmatpush.msra.mxu0 0.0
    %1275 = vmatpush.msra.mxu0 0.0
    %1276 = vmatpush.msra.mxu0 0.0
    %1277 = vmatpush.msra.mxu0 0.0
    %1278 = vmatpush.msra.mxu0 0.0
    %1279 = vmatpush.msra.mxu0 0.0
    %1280 = vmatpush.msra.mxu0 0.0
    %1281 = vmatpush.msra.mxu0 0.0
    %1282 = vmatpush.msra.mxu0 0.0
    %1283 = vmatpush.msra.mxu0 0.0
    %1284 = vmatpush.msra.mxu0 0.0
    %1285 = vmatpush.msra.mxu0 %v480
    %1286 = vmatpush.msra.mxu0 %v467
    %1287 = vmatpush.msra.mxu0 %v464
    %1288 = vmatpush.msra.mxu0 %v461
    %1289 = vmatmul.f32.gmra.mxu0 %v1268
    %v1290 = vpop.f32.mrf.mxu0
    %v1291 = vadd.f32 0.0, %v1290
    %1292 = vmatmul.f32.gmra.mxu0 %v1271
    %v1293 = vpop.f32.mrf.mxu0
    %v1294 = vadd.f32 0.0, %v1293
    %1295 = vdwg.mxu0
    %1296 = vmatpush.msra.mxu0 0.0
    %1297 = vmatpush.msra.mxu0 0.0
    %1298 = vmatpush.msra.mxu0 0.0
    %1299 = vmatpush.msra.mxu0 0.0
    %1300 = vmatpush.msra.mxu0 0.0
    %1301 = vmatpush.msra.mxu0 0.0
    %1302 = vmatpush.msra.mxu0 0.0
    %1303 = vmatpush.msra.mxu0 0.0
    %1304 = vmatpush.msra.mxu0 0.0
    %1305 = vmatpush.msra.mxu0 0.0
    %1306 = vmatpush.msra.mxu0 0.0
    %1307 = vmatpush.msra.mxu0 0.0
    %1308 = vmatpush.msra.mxu0 %v483
    %1309 = vmatpush.msra.mxu0 %v468
    %1310 = vmatpush.msra.mxu0 %v465
    %1311 = vmatpush.msra.mxu0 %v462
    %1312 = vmatmul.f32.gmra.mxu0 %v1268
    %v1313 = vpop.f32.mrf.mxu0
    %v1314 = vadd.f32 0.0, %v1313
    %1315 = vmatmul.f32.gmra.mxu0 %v1271
    %v1316 = vpop.f32.mrf.mxu0
    %v1317 = vadd.f32 0.0, %v1316
    %1318 = vdwg.mxu0
    %1319 = vmatpush.msra.mxu0 0.0
    %1320 = vmatpush.msra.mxu0 0.0
    %1321 = vmatpush.msra.mxu0 0.0
    %1322 = vmatpush.msra.mxu0 0.0
    %1323 = vmatpush.msra.mxu0 0.0
    %1324 = vmatpush.msra.mxu0 0.0
    %1325 = vmatpush.msra.mxu0 0.0
    %1326 = vmatpush.msra.mxu0 0.0
    %1327 = vmatpush.msra.mxu0 0.0
    %1328 = vmatpush.msra.mxu0 0.0
    %1329 = vmatpush.msra.mxu0 0.0
    %1330 = vmatpush.msra.mxu0 0.0
    %1331 = vmatpush.msra.mxu0 %v486
    %1332 = vmatpush.msra.mxu0 %v469
    %1333 = vmatpush.msra.mxu0 %v466
    %1334 = vmatpush.msra.mxu0 %v463
    %1335 = vmatmul.f32.gmra.mxu0 %v1268
    %v1336 = vpop.f32.mrf.mxu0
    %v1337 = vadd.f32 0.0, %v1336
    %1338 = vmatmul.f32.gmra.mxu0 %v1271
    %v1339 = vpop.f32.mrf.mxu0
    %v1340 = vadd.f32 0.0, %v1339
    %1341 = vdwg.mxu0
    %v1342 = vadd.f32 %v1259, %v1291
    %v1343 = vadd.f32 %v1260, %v1314
    %v1344 = vadd.f32 %v1261, %v1337
    %v1345 = vadd.f32 %v1262, %v1294
    %v1346 = vadd.f32 %v1263, %v1317
    %v1347 = vadd.f32 %v1264, %v1340
    %1348 = vmatpush.msra.mxu0 0.0
    %1349 = vmatpush.msra.mxu0 0.0
    %1350 = vmatpush.msra.mxu0 0.0
    %1351 = vmatpush.msra.mxu0 0.0
    %1352 = vmatpush.msra.mxu0 0.0
    %1353 = vmatpush.msra.mxu0 0.0
    %1354 = vmatpush.msra.mxu0 0.0
    %1355 = vmatpush.msra.mxu0 0.0
    %1356 = vmatpush.msra.mxu0 0.0
    %1357 = vmatpush.msra.mxu0 0.0
    %1358 = vmatpush.msra.mxu0 0.0
    %1359 = vmatpush.msra.mxu0 0.0
    %1360 = vmatpush.msra.mxu0 %v87
    %1361 = vmatpush.msra.mxu0 %v72
    %1362 = vmatpush.msra.mxu0 %v69
    %1363 = vmatpush.msra.mxu0 %v66
    %1364 = vmatmul.f32.gmra.mxu0 %v474
    %v1365 = vpop.f32.mrf.mxu0
    %v1366 = vadd.f32 0.0, %v1365
    %1367 = vmatmul.f32.gmra.mxu0 %v477
    %v1368 = vpop.f32.mrf.mxu0
    %v1369 = vadd.f32 0.0, %v1368
    %1370 = vdwg.mxu0
    %1371 = vmatpush.msra.mxu0 0.0
    %1372 = vmatpush.msra.mxu0 0.0
    %1373 = vmatpush.msra.mxu0 0.0
    %1374 = vmatpush.msra.mxu0 0.0
    %1375 = vmatpush.msra.mxu0 0.0
    %1376 = vmatpush.msra.mxu0 0.0
    %1377 = vmatpush.msra.mxu0 0.0
    %1378 = vmatpush.msra.mxu0 0.0
    %1379 = vmatpush.msra.mxu0 0.0
    %1380 = vmatpush.msra.mxu0 0.0
    %1381 = vmatpush.msra.mxu0 0.0
    %1382 = vmatpush.msra.mxu0 0.0
    %1383 = vmatpush.msra.mxu0 %v90
    %1384 = vmatpush.msra.mxu0 %v73
    %1385 = vmatpush.msra.mxu0 %v70
    %1386 = vmatpush.msra.mxu0 %v67
    %1387 = vmatmul.f32.gmra.mxu0 %v474
    %v1388 = vpop.f32.mrf.mxu0
    %v1389 = vadd.f32 0.0, %v1388
    %1390 = vmatmul.f32.gmra.mxu0 %v477
    %v1391 = vpop.f32.mrf.mxu0
    %v1392 = vadd.f32 0.0, %v1391
    %1393 = vdwg.mxu0
    %1394 = vmatpush.msra.mxu0 0.0
    %1395 = vmatpush.msra.mxu0 0.0
    %1396 = vmatpush.msra.mxu0 0.0
    %1397 = vmatpush.msra.mxu0 0.0
    %1398 = vmatpush.msra.mxu0 0.0
    %1399 = vmatpush.msra.mxu0 0.0
    %1400 = vmatpush.msra.mxu0 0.0
    %1401 = vmatpush.msra.mxu0 0.0
    %1402 = vmatpush.msra.mxu0 0.0
    %1403 = vmatpush.msra.mxu0 0.0
    %1404 = vmatpush.msra.mxu0 0.0
    %1405 = vmatpush.msra.mxu0 0.0
    %1406 = vmatpush.msra.mxu0 %v93
    %1407 = vmatpush.msra.mxu0 %v74
    %1408 = vmatpush.msra.mxu0 %v71
    %1409 = vmatpush.msra.mxu0 %v68
    %1410 = vmatmul.f32.gmra.mxu0 %v474
    %v1411 = vpop.f32.mrf.mxu0
    %v1412 = vadd.f32 0.0, %v1411
    %1413 = vmatmul.f32.gmra.mxu0 %v477
    %v1414 = vpop.f32.mrf.mxu0
    %v1415 = vadd.f32 0.0, %v1414
    %1416 = vdwg.mxu0
    %1417 = vmatpush.msra.mxu0 0.0
    %1418 = vmatpush.msra.mxu0 0.0
    %1419 = vmatpush.msra.mxu0 0.0
    %1420 = vmatpush.msra.mxu0 0.0
    %1421 = vmatpush.msra.mxu0 0.0
    %1422 = vmatpush.msra.mxu0 0.0
    %1423 = vmatpush.msra.mxu0 0.0
    %1424 = vmatpush.msra.mxu0 0.0
    %1425 = vmatpush.msra.mxu0 0.0
    %1426 = vmatpush.msra.mxu0 0.0
    %1427 = vmatpush.msra.mxu0 0.0
    %1428 = vmatpush.msra.mxu0 0.0
    %1429 = vmatpush.msra.mxu0 %v171
    %1430 = vmatpush.msra.mxu0 %v57
    %1431 = vmatpush.msra.mxu0 %v54
    %1432 = vmatpush.msra.mxu0 %v51
    %1433 = vmatmul.f32.gmra.mxu0 %v369
    %v1434 = vpop.f32.mrf.mxu0
    %v1435 = vadd.f32 %v1366, %v1434
    %1436 = vmatmul.f32.gmra.mxu0 %v372
    %v1437 = vpop.f32.mrf.mxu0
    %v1438 = vadd.f32 %v1369, %v1437
    %1439 = vdwg.mxu0
    %1440 = vmatpush.msra.mxu0 0.0
    %1441 = vmatpush.msra.mxu0 0.0
    %1442 = vmatpush.msra.mxu0 0.0
    %1443 = vmatpush.msra.mxu0 0.0
    %1444 = vmatpush.msra.mxu0 0.0
    %1445 = vmatpush.msra.mxu0 0.0
    %1446 = vmatpush.msra.mxu0 0.0
    %1447 = vmatpush.msra.mxu0 0.0
    %1448 = vmatpush.msra.mxu0 0.0
    %1449 = vmatpush.msra.mxu0 0.0
    %1450 = vmatpush.msra.mxu0 0.0
    %1451 = vmatpush.msra.mxu0 0.0
    %1452 = vmatpush.msra.mxu0 %v174
    %1453 = vmatpush.msra.mxu0 %v58
    %1454 = vmatpush.msra.mxu0 %v55
    %1455 = vmatpush.msra.mxu0 %v52
    %1456 = vmatmul.f32.gmra.mxu0 %v369
    %v1457 = vpop.f32.mrf.mxu0
    %v1458 = vadd.f32 %v1389, %v1457
    %1459 = vmatmul.f32.gmra.mxu0 %v372
    %v1460 = vpop.f32.mrf.mxu0
    %v1461 = vadd.f32 %v1392, %v1460
    %1462 = vdwg.mxu0
    %1463 = vmatpush.msra.mxu0 0.0
    %1464 = vmatpush.msra.mxu0 0.0
    %1465 = vmatpush.msra.mxu0 0.0
    %1466 = vmatpush.msra.mxu0 0.0
    %1467 = vmatpush.msra.mxu0 0.0
    %1468 = vmatpush.msra.mxu0 0.0
    %1469 = vmatpush.msra.mxu0 0.0
    %1470 = vmatpush.msra.mxu0 0.0
    %1471 = vmatpush.msra.mxu0 0.0
    %1472 = vmatpush.msra.mxu0 0.0
    %1473 = vmatpush.msra.mxu0 0.0
    %1474 = vmatpush.msra.mxu0 0.0
    %1475 = vmatpush.msra.mxu0 %v177
    %1476 = vmatpush.msra.mxu0 %v59
    %1477 = vmatpush.msra.mxu0 %v56
    %1478 = vmatpush.msra.mxu0 %v53
    %1479 = vmatmul.f32.gmra.mxu0 %v369
    %v1480 = vpop.f32.mrf.mxu0
    %v1481 = vadd.f32 %v1412, %v1480
    %1482 = vmatmul.f32.gmra.mxu0 %v372
    %v1483 = vpop.f32.mrf.mxu0
    %v1484 = vadd.f32 %v1415, %v1483
    %1485 = vdwg.mxu0
    %1486 = vmatpush.msra.mxu0 0.0
    %1487 = vmatpush.msra.mxu0 0.0
    %1488 = vmatpush.msra.mxu0 0.0
    %1489 = vmatpush.msra.mxu0 0.0
    %1490 = vmatpush.msra.mxu0 0.0
    %1491 = vmatpush.msra.mxu0 0.0
    %1492 = vmatpush.msra.mxu0 0.0
    %1493 = vmatpush.msra.mxu0 0.0
    %1494 = vmatpush.msra.mxu0 0.0
    %1495 = vmatpush.msra.mxu0 0.0
    %1496 = vmatpush.msra.mxu0 0.0
    %1497 = vmatpush.msra.mxu0 0.0
    %1498 = vmatpush.msra.mxu0 %v270
    %1499 = vmatpush.msra.mxu0 %v257
    %1500 = vmatpush.msra.mxu0 %v254
    %1501 = vmatpush.msra.mxu0 %v251
    %1502 = vmatmul.f32.gmra.mxu0 %v854
    %v1503 = vpop.f32.mrf.mxu0
    %v1504 = vadd.f32 0.0, %v1503
    %1505 = vmatmul.f32.gmra.mxu0 %v857
    %v1506 = vpop.f32.mrf.mxu0
    %v1507 = vadd.f32 0.0, %v1506
    %1508 = vdwg.mxu0
    %1509 = vmatpush.msra.mxu0 0.0
    %1510 = vmatpush.msra.mxu0 0.0
    %1511 = vmatpush.msra.mxu0 0.0
    %1512 = vmatpush.msra.mxu0 0.0
    %1513 = vmatpush.msra.mxu0 0.0
    %1514 = vmatpush.msra.mxu0 0.0
    %1515 = vmatpush.msra.mxu0 0.0
    %1516 = vmatpush.msra.mxu0 0.0
    %1517 = vmatpush.msra.mxu0 0.0
    %1518 = vmatpush.msra.mxu0 0.0
    %1519 = vmatpush.msra.mxu0 0.0
    %1520 = vmatpush.msra.mxu0 0.0
    %1521 = vmatpush.msra.mxu0 %v273
    %1522 = vmatpush.msra.mxu0 %v258
    %1523 = vmatpush.msra.mxu0 %v255
    %1524 = vmatpush.msra.mxu0 %v252
    %1525 = vmatmul.f32.gmra.mxu0 %v854
    %v1526 = vpop.f32.mrf.mxu0
    %v1527 = vadd.f32 0.0, %v1526
    %1528 = vmatmul.f32.gmra.mxu0 %v857
    %v1529 = vpop.f32.mrf.mxu0
    %v1530 = vadd.f32 0.0, %v1529
    %1531 = vdwg.mxu0
    %1532 = vmatpush.msra.mxu0 0.0
    %1533 = vmatpush.msra.mxu0 0.0
    %1534 = vmatpush.msra.mxu0 0.0
    %1535 = vmatpush.msra.mxu0 0.0
    %1536 = vmatpush.msra.mxu0 0.0
    %1537 = vmatpush.msra.mxu0 0.0
    %1538 = vmatpush.msra.mxu0 0.0
    %1539 = vmatpush.msra.mxu0 0.0
    %1540 = vmatpush.msra.mxu0 0.0
    %1541 = vmatpush.msra.mxu0 0.0
    %1542 = vmatpush.msra.mxu0 0.0
    %1543 = vmatpush.msra.mxu0 0.0
    %1544 = vmatpush.msra.mxu0 %v276
    %1545 = vmatpush.msra.mxu0 %v259
    %1546 = vmatpush.msra.mxu0 %v256
    %1547 = vmatpush.msra.mxu0 %v253
    %1548 = vmatmul.f32.gmra.mxu0 %v854
    %v1549 = vpop.f32.mrf.mxu0
    %v1550 = vadd.f32 0.0, %v1549
    %1551 = vmatmul.f32.gmra.mxu0 %v857
    %v1552 = vpop.f32.mrf.mxu0
    %v1553 = vadd.f32 0.0, %v1552
    %1554 = vdwg.mxu0
    %v1555 = vadd.f32 %v1435, %v1504
    %v1556 = vadd.f32 %v1458, %v1527
    %v1557 = vadd.f32 %v1481, %v1550
    %v1558 = vadd.f32 %v1438, %v1507
    %v1559 = vadd.f32 %v1461, %v1530
    %v1560 = vadd.f32 %v1484, %v1553
    %1561 = vmatpush.msra.mxu0 0.0
    %1562 = vmatpush.msra.mxu0 0.0
    %1563 = vmatpush.msra.mxu0 0.0
    %1564 = vmatpush.msra.mxu0 0.0
    %1565 = vmatpush.msra.mxu0 0.0
    %1566 = vmatpush.msra.mxu0 0.0
    %1567 = vmatpush.msra.mxu0 0.0
    %1568 = vmatpush.msra.mxu0 0.0
    %1569 = vmatpush.msra.mxu0 0.0
    %1570 = vmatpush.msra.mxu0 0.0
    %1571 = vmatpush.msra.mxu0 0.0
    %1572 = vmatpush.msra.mxu0 0.0
    %1573 = vmatpush.msra.mxu0 %v375
    %1574 = vmatpush.msra.mxu0 %v362
    %1575 = vmatpush.msra.mxu0 %v359
    %1576 = vmatpush.msra.mxu0 %v356
    %1577 = vmatmul.f32.gmra.mxu0 %v1268
    %v1578 = vpop.f32.mrf.mxu0
    %v1579 = vadd.f32 0.0, %v1578
    %1580 = vmatmul.f32.gmra.mxu0 %v1271
    %v1581 = vpop.f32.mrf.mxu0
    %v1582 = vadd.f32 0.0, %v1581
    %1583 = vdwg.mxu0
    %1584 = vmatpush.msra.mxu0 0.0
    %1585 = vmatpush.msra.mxu0 0.0
    %1586 = vmatpush.msra.mxu0 0.0
    %1587 = vmatpush.msra.mxu0 0.0
    %1588 = vmatpush.msra.mxu0 0.0
    %1589 = vmatpush.msra.mxu0 0.0
    %1590 = vmatpush.msra.mxu0 0.0
    %1591 = vmatpush.msra.mxu0 0.0
    %1592 = vmatpush.msra.mxu0 0.0
    %1593 = vmatpush.msra.mxu0 0.0
    %1594 = vmatpush.msra.mxu0 0.0
    %1595 = vmatpush.msra.mxu0 0.0
    %1596 = vmatpush.msra.mxu0 %v378
    %1597 = vmatpush.msra.mxu0 %v363
    %1598 = vmatpush.msra.mxu0 %v360
    %1599 = vmatpush.msra.mxu0 %v357
    %1600 = vmatmul.f32.gmra.mxu0 %v1268
    %v1601 = vpop.f32.mrf.mxu0
    %v1602 = vadd.f32 0.0, %v1601
    %1603 = vmatmul.f32.gmra.mxu0 %v1271
    %v1604 = vpop.f32.mrf.mxu0
    %v1605 = vadd.f32 0.0, %v1604
    %1606 = vdwg.mxu0
    %1607 = vmatpush.msra.mxu0 0.0
    %1608 = vmatpush.msra.mxu0 0.0
    %1609 = vmatpush.msra.mxu0 0.0
    %1610 = vmatpush.msra.mxu0 0.0
    %1611 = vmatpush.msra.mxu0 0.0
    %1612 = vmatpush.msra.mxu0 0.0
    %1613 = vmatpush.msra.mxu0 0.0
    %1614 = vmatpush.msra.mxu0 0.0
    %1615 = vmatpush.msra.mxu0 0.0
    %1616 = vmatpush.msra.mxu0 0.0
    %1617 = vmatpush.msra.mxu0 0.0
    %1618 = vmatpush.msra.mxu0 0.0
    %1619 = vmatpush.msra.mxu0 %v381
    %1620 = vmatpush.msra.mxu0 %v364
    %1621 = vmatpush.msra.mxu0 %v361
    %1622 = vmatpush.msra.mxu0 %v358
    %1623 = vmatmul.f32.gmra.mxu0 %v1268
    %v1624 = vpop.f32.mrf.mxu0
    %v1625 = vadd.f32 0.0, %v1624
    %1626 = vmatmul.f32.gmra.mxu0 %v1271
    %v1627 = vpop.f32.mrf.mxu0
    %v1628 = vadd.f32 0.0, %v1627
    %1629 = vdwg.mxu0
    %v1630 = vadd.f32 %v1555, %v1579
    %v1631 = vadd.f32 %v1556, %v1602
    %v1632 = vadd.f32 %v1557, %v1625
    %v1633 = vadd.f32 %v1558, %v1582
    %v1634 = vadd.f32 %v1559, %v1605
    %v1635 = vadd.f32 %v1560, %v1628
    %v1636 = vld [vmem:[%s0 + $0x2c] sm:$0xff]
    %v1637 = vld [vmem:[%s0 + $0x34] sm:$0xf]
    %v1639 = vsel %vm78, %v1636, 0
    %v1642 = vsel %vm78, %v1637, 0
    %1644 = vmatpush.msra.mxu0 0.0
    %1645 = vmatpush.msra.mxu0 0.0
    %1646 = vmatpush.msra.mxu0 0.0
    %1647 = vmatpush.msra.mxu0 0.0
    %1648 = vmatpush.msra.mxu0 0.0
    %1649 = vmatpush.msra.mxu0 0.0
    %1650 = vmatpush.msra.mxu0 0.0
    %1651 = vmatpush.msra.mxu0 0.0
    %1652 = vmatpush.msra.mxu0 0.0
    %1653 = vmatpush.msra.mxu0 0.0
    %1654 = vmatpush.msra.mxu0 0.0
    %1655 = vmatpush.msra.mxu0 0.0
    %1656 = vmatpush.msra.mxu0 %v480
    %1657 = vmatpush.msra.mxu0 %v467
    %1658 = vmatpush.msra.mxu0 %v464
    %1659 = vmatpush.msra.mxu0 %v461
    %1660 = vmatmul.f32.gmra.mxu0 %v1639
    %v1661 = vpop.f32.mrf.mxu0
    %v1662 = vadd.f32 0.0, %v1661
    %1663 = vmatmul.f32.gmra.mxu0 %v1642
    %v1664 = vpop.f32.mrf.mxu0
    %v1665 = vadd.f32 0.0, %v1664
    %1666 = vdwg.mxu0
    %1667 = vmatpush.msra.mxu0 0.0
    %1668 = vmatpush.msra.mxu0 0.0
    %1669 = vmatpush.msra.mxu0 0.0
    %1670 = vmatpush.msra.mxu0 0.0
    %1671 = vmatpush.msra.mxu0 0.0
    %1672 = vmatpush.msra.mxu0 0.0
    %1673 = vmatpush.msra.mxu0 0.0
    %1674 = vmatpush.msra.mxu0 0.0
    %1675 = vmatpush.msra.mxu0 0.0
    %1676 = vmatpush.msra.mxu0 0.0
    %1677 = vmatpush.msra.mxu0 0.0
    %1678 = vmatpush.msra.mxu0 0.0
    %1679 = vmatpush.msra.mxu0 %v483
    %1680 = vmatpush.msra.mxu0 %v468
    %1681 = vmatpush.msra.mxu0 %v465
    %1682 = vmatpush.msra.mxu0 %v462
    %1683 = vmatmul.f32.gmra.mxu0 %v1639
    %v1684 = vpop.f32.mrf.mxu0
    %v1685 = vadd.f32 0.0, %v1684
    %1686 = vmatmul.f32.gmra.mxu0 %v1642
    %v1687 = vpop.f32.mrf.mxu0
    %v1688 = vadd.f32 0.0, %v1687
    %1689 = vdwg.mxu0
    %1690 = vmatpush.msra.mxu0 0.0
    %1691 = vmatpush.msra.mxu0 0.0
    %1692 = vmatpush.msra.mxu0 0.0
    %1693 = vmatpush.msra.mxu0 0.0
    %1694 = vmatpush.msra.mxu0 0.0
    %1695 = vmatpush.msra.mxu0 0.0
    %1696 = vmatpush.msra.mxu0 0.0
    %1697 = vmatpush.msra.mxu0 0.0
    %1698 = vmatpush.msra.mxu0 0.0
    %1699 = vmatpush.msra.mxu0 0.0
    %1700 = vmatpush.msra.mxu0 0.0
    %1701 = vmatpush.msra.mxu0 0.0
    %1702 = vmatpush.msra.mxu0 %v486
    %1703 = vmatpush.msra.mxu0 %v469
    %1704 = vmatpush.msra.mxu0 %v466
    %1705 = vmatpush.msra.mxu0 %v463
    %1706 = vmatmul.f32.gmra.mxu0 %v1639
    %v1707 = vpop.f32.mrf.mxu0
    %v1708 = vadd.f32 0.0, %v1707
    %1709 = vmatmul.f32.gmra.mxu0 %v1642
    %v1710 = vpop.f32.mrf.mxu0
    %v1711 = vadd.f32 0.0, %v1710
    %1712 = vdwg.mxu0
    %v1713 = vadd.f32 %v1630, %v1662
    %v1714 = vadd.f32 %v1631, %v1685
    %v1715 = vadd.f32 %v1632, %v1708
    %v1716 = vadd.f32 %v1633, %v1665
    %v1717 = vadd.f32 %v1634, %v1688
    %v1718 = vadd.f32 %v1635, %v1711
    %v1719 = vmax.f32 %v1342, %v1713
    %v1720 = vmax.f32 %v1343, %v1714
    %v1721 = vmax.f32 %v1344, %v1715
    %v1722 = vmax.f32 %v1345, %v1716
    %v1723 = vmax.f32 %v1346, %v1717
    %v1724 = vmax.f32 %v1347, %v1718
    %1729 = vrot.lane.b32.xlu0 %v1720, 112
    %v1730 = vpop.permute.xlu0 %1729
    %1731 = vrot.lane.b32.xlu0 %v1721, 112
    %v1732 = vpop.permute.xlu0 %1731
    %1733 = vrot.lane.b32.xlu0 %v1723, 112
    %v1734 = vpop.permute.xlu0 %1733
    %1735 = vrot.lane.b32.xlu0 %v1724, 112
    %v1736 = vpop.permute.xlu0 %1735
    %v1737 = vsel %vm952, %v1730, %v1732
    %v1738 = vsel %vm952, %v1734, %v1736
    %v1743 = vmax.f32 %v1719, %v1737
    %v1744 = vmax.f32 %v1720, %v1732
    %v1745 = vmax.f32 %v1722, %v1738
    %v1746 = vmax.f32 %v1723, %v1736
    %v1747 = vadd.f32 %v1743, %v965
    %v1748 = vadd.f32 %v1744, %v966
    %v1749 = vadd.f32 %v1745, %v965
    %v1750 = vadd.f32 %v1746, %v966
    %v1751 = vmax.f32 %v1747, 0.0
    %v1752 = vmax.f32 %v1748, 0.0
    %v1753 = vmax.f32 %v1749, 0.0
    %v1754 = vmax.f32 %v1750, 0.0
    %v1755 = vld [vmem:[#allocation2] sm:$0xff]
    %v1756 = vld [vmem:[#allocation2 + $0x8] sm:$0xff]
    %v1757 = vld [vmem:[#allocation2 + $0x10] sm:$0xff]
    %v1758 = vld [vmem:[#allocation2 + $0x18] sm:$0xff]
    %v1759 = vld [vmem:[#allocation2 + $0x20] sm:$0xff]
    %v1760 = vld [vmem:[#allocation2 + $0x28] sm:$0xff]
    %v1761 = vld [vmem:[#allocation2 + $0x30] sm:$0xff]
    %v1762 = vld [vmem:[#allocation2 + $0x38] sm:$0xff]
    %v1763 = vld [vmem:[#allocation2 + $0x40] sm:$0xff]
    %v1764 = vld [vmem:[#allocation2 + $0x48] sm:$0xff]
    %v1765 = vld [vmem:[#allocation2 + $0x50] sm:$0xff]
    %v1766 = vld [vmem:[#allocation2 + $0x58] sm:$0xff]
    %v1767 = vld [vmem:[#allocation2 + $0x60] sm:$0xff]
    %v1768 = vld [vmem:[#allocation2 + $0x68] sm:$0xff]
    %v1769 = vld [vmem:[#allocation2 + $0x70] sm:$0xff]
    %v1770 = vld [vmem:[#allocation2 + $0x78] sm:$0xff]
    %v1771 = vld [vmem:[#allocation2 + $0x80] sm:$0xff]
    %v1772 = vld [vmem:[#allocation2 + $0x88] sm:$0xff]
    %v1773 = vld [vmem:[#allocation2 + $0x90] sm:$0xff]
    %v1774 = vld [vmem:[#allocation2 + $0x98] sm:$0xff]
    %v1775 = vld [vmem:[#allocation2 + $0xa0] sm:$0xff]
    %v1776 = vld [vmem:[#allocation2 + $0xa8] sm:$0xff]
    %v1777 = vld [vmem:[#allocation2 + $0xb0] sm:$0xff]
    %v1778 = vld [vmem:[#allocation2 + $0xb8] sm:$0xff]
    %v1779 = vld [vmem:[#allocation2 + $0xc0] sm:$0xff]
    %v1780 = vld [vmem:[#allocation2 + $0xc8] sm:$0xff]
    %v1781 = vld [vmem:[#allocation2 + $0xd0] sm:$0xff]
    %v1782 = vld [vmem:[#allocation2 + $0xd8] sm:$0xff]
    %v1783 = vld [vmem:[#allocation2 + $0xe0] sm:$0xff]
    %v1784 = vld [vmem:[#allocation2 + $0xe8] sm:$0xff]
    %v1785 = vld [vmem:[#allocation2 + $0xf0] sm:$0xff]
    %v1786 = vld [vmem:[#allocation2 + $0xf8] sm:$0xff]
    %v1787 = vld [vmem:[#allocation2 + $0x100] sm:$0xff]
    %v1788 = vld [vmem:[#allocation2 + $0x108] sm:$0xff]
    %v1789 = vld [vmem:[#allocation2 + $0x110] sm:$0xff]
    %v1790 = vld [vmem:[#allocation2 + $0x118] sm:$0xff]
    %s1791 = scalar_lea.vmem [#allocation2], 288
    %v1792 = vld [vmem:[%s1791] sm:$0xff]
    %v1793 = vld [vmem:[%s1791 + $0x8] sm:$0xff]
    %v1794 = vld [vmem:[%s1791 + $0x10] sm:$0xff]
    %v1795 = vld [vmem:[%s1791 + $0x18] sm:$0xff]
    %v1796 = vld [vmem:[%s1791 + $0x20] sm:$0xff]
    %v1797 = vld [vmem:[%s1791 + $0x28] sm:$0xff]
    %v1798 = vld [vmem:[%s1791 + $0x30] sm:$0xff]
    %v1799 = vld [vmem:[%s1791 + $0x38] sm:$0xff]
    %v1800 = vld [vmem:[%s1791 + $0x40] sm:$0xff]
    %v1801 = vld [vmem:[%s1791 + $0x48] sm:$0xff]
    %v1802 = vld [vmem:[%s1791 + $0x50] sm:$0xff]
    %v1803 = vld [vmem:[%s1791 + $0x58] sm:$0xff]
    %v1804 = vld [vmem:[%s1791 + $0x60] sm:$0xff]
    %v1805 = vld [vmem:[%s1791 + $0x68] sm:$0xff]
    %v1806 = vld [vmem:[%s1791 + $0x70] sm:$0xff]
    %v1807 = vld [vmem:[%s1791 + $0x78] sm:$0xff]
    %v1808 = vld [vmem:[%s1791 + $0x80] sm:$0xff]
    %v1809 = vld [vmem:[%s1791 + $0x88] sm:$0xff]
    %v1810 = vld [vmem:[%s1791 + $0x90] sm:$0xff]
    %v1811 = vld [vmem:[%s1791 + $0x98] sm:$0xff]
    %v1812 = vld [vmem:[%s1791 + $0xa0] sm:$0xff]
    %v1813 = vld [vmem:[%s1791 + $0xa8] sm:$0xff]
    %v1814 = vld [vmem:[%s1791 + $0xb0] sm:$0xff]
    %v1815 = vld [vmem:[%s1791 + $0xb8] sm:$0xff]
    %v1816 = vld [vmem:[%s1791 + $0xc0] sm:$0xff]
    %v1817 = vld [vmem:[%s1791 + $0xc8] sm:$0xff]
    %v1818 = vld [vmem:[%s1791 + $0xd0] sm:$0xff]
    %v1819 = vld [vmem:[%s1791 + $0xd8] sm:$0xff]
    %v1820 = vld [vmem:[%s1791 + $0xe0] sm:$0xff]
    %v1821 = vld [vmem:[%s1791 + $0xe8] sm:$0xff]
    %v1822 = vld [vmem:[%s1791 + $0xf0] sm:$0xff]
    %v1823 = vld [vmem:[%s1791 + $0xf8] sm:$0xff]
    %v1824 = vld [vmem:[%s1791 + $0x100] sm:$0xff]
    %v1825 = vld [vmem:[%s1791 + $0x108] sm:$0xff]
    %v1826 = vld [vmem:[%s1791 + $0x110] sm:$0xff]
    %v1827 = vld [vmem:[%s1791 + $0x118] sm:$0xff]
    %vm1828 = vcmask 130048
    %v1830 = vsel %vm1828, %v1752, 0
    %1832 = vmatpush.msra.mxu0 %v1822
    %1833 = vmatpush.msra.mxu0 %v1820
    %1834 = vmatpush.msra.mxu0 %v1818
    %1835 = vmatpush.msra.mxu0 %v1816
    %1836 = vmatpush.msra.mxu0 %v1814
    %1837 = vmatpush.msra.mxu0 %v1812
    %1838 = vmatpush.msra.mxu0 %v1810
    %1839 = vmatpush.msra.mxu0 %v1808
    %1840 = vmatpush.msra.mxu0 %v1806
    %1841 = vmatpush.msra.mxu0 %v1804
    %1842 = vmatpush.msra.mxu0 %v1802
    %1843 = vmatpush.msra.mxu0 %v1800
    %1844 = vmatpush.msra.mxu0 %v1798
    %1845 = vmatpush.msra.mxu0 %v1796
    %1846 = vmatpush.msra.mxu0 %v1794
    %1847 = vmatpush.msra.mxu0 %v1792
    %1848 = vmatmul.f32.gmra.mxu0 %v1751
    %v1849 = vpop.f32.mrf.mxu0
    %v1850 = vadd.f32 0.0, %v1849
    %1851 = vdwg.mxu0
    %1852 = vmatpush.msra.mxu0 0.0
    %1853 = vmatpush.msra.mxu0 0.0
    %1854 = vmatpush.msra.mxu0 0.0
    %1855 = vmatpush.msra.mxu0 0.0
    %1856 = vmatpush.msra.mxu0 0.0
    %1857 = vmatpush.msra.mxu0 0.0
    %1858 = vmatpush.msra.mxu0 0.0
    %1859 = vmatpush.msra.mxu0 0.0
    %1860 = vmatpush.msra.mxu0 0.0
    %1861 = vmatpush.msra.mxu0 0.0
    %1862 = vmatpush.msra.mxu0 0.0
    %1863 = vmatpush.msra.mxu0 0.0
    %1864 = vmatpush.msra.mxu0 0.0
    %1865 = vmatpush.msra.mxu0 0.0
    %1866 = vmatpush.msra.mxu0 %v1826
    %1867 = vmatpush.msra.mxu0 %v1824
    %1868 = vmatmul.f32.gmra.mxu0 %v1830
    %v1869 = vpop.f32.mrf.mxu0
    %v1870 = vadd.f32 %v1850, %v1869
    %1871 = vdwg.mxu0
    %1872 = vmatpush.msra.mxu0 %v1823
    %1873 = vmatpush.msra.mxu0 %v1821
    %1874 = vmatpush.msra.mxu0 %v1819
    %1875 = vmatpush.msra.mxu0 %v1817
    %1876 = vmatpush.msra.mxu0 %v1815
    %1877 = vmatpush.msra.mxu0 %v1813
    %1878 = vmatpush.msra.mxu0 %v1811
    %1879 = vmatpush.msra.mxu0 %v1809
    %1880 = vmatpush.msra.mxu0 %v1807
    %1881 = vmatpush.msra.mxu0 %v1805
    %1882 = vmatpush.msra.mxu0 %v1803
    %1883 = vmatpush.msra.mxu0 %v1801
    %1884 = vmatpush.msra.mxu0 %v1799
    %1885 = vmatpush.msra.mxu0 %v1797
    %1886 = vmatpush.msra.mxu0 %v1795
    %1887 = vmatpush.msra.mxu0 %v1793
    %1888 = vmatmul.f32.gmra.mxu0 %v1751
    %v1889 = vpop.f32.mrf.mxu0
    %v1890 = vadd.f32 0.0, %v1889
    %1891 = vdwg.mxu0
    %1892 = vmatpush.msra.mxu0 0.0
    %1893 = vmatpush.msra.mxu0 0.0
    %1894 = vmatpush.msra.mxu0 0.0
    %1895 = vmatpush.msra.mxu0 0.0
    %1896 = vmatpush.msra.mxu0 0.0
    %1897 = vmatpush.msra.mxu0 0.0
    %1898 = vmatpush.msra.mxu0 0.0
    %1899 = vmatpush.msra.mxu0 0.0
    %1900 = vmatpush.msra.mxu0 0.0
    %1901 = vmatpush.msra.mxu0 0.0
    %1902 = vmatpush.msra.mxu0 0.0
    %1903 = vmatpush.msra.mxu0 0.0
    %1904 = vmatpush.msra.mxu0 0.0
    %1905 = vmatpush.msra.mxu0 0.0
    %1906 = vmatpush.msra.mxu0 %v1827
    %1907 = vmatpush.msra.mxu0 %v1825
    %1908 = vmatmul.f32.gmra.mxu0 %v1830
    %v1909 = vpop.f32.mrf.mxu0
    %v1910 = vadd.f32 %v1890, %v1909
    %1911 = vdwg.mxu0
    %v1913 = vsel %vm1828, %v974, 0
    %1915 = vmatpush.msra.mxu0 %v1785
    %1916 = vmatpush.msra.mxu0 %v1783
    %1917 = vmatpush.msra.mxu0 %v1781
    %1918 = vmatpush.msra.mxu0 %v1779
    %1919 = vmatpush.msra.mxu0 %v1777
    %1920 = vmatpush.msra.mxu0 %v1775
    %1921 = vmatpush.msra.mxu0 %v1773
    %1922 = vmatpush.msra.mxu0 %v1771
    %1923 = vmatpush.msra.mxu0 %v1769
    %1924 = vmatpush.msra.mxu0 %v1767
    %1925 = vmatpush.msra.mxu0 %v1765
    %1926 = vmatpush.msra.mxu0 %v1763
    %1927 = vmatpush.msra.mxu0 %v1761
    %1928 = vmatpush.msra.mxu0 %v1759
    %1929 = vmatpush.msra.mxu0 %v1757
    %1930 = vmatpush.msra.mxu0 %v1755
    %1931 = vmatmul.f32.gmra.mxu0 %v973
    %v1932 = vpop.f32.mrf.mxu0
    %v1933 = vadd.f32 %v1870, %v1932
    %1934 = vdwg.mxu0
    %1935 = vmatpush.msra.mxu0 0.0
    %1936 = vmatpush.msra.mxu0 0.0
    %1937 = vmatpush.msra.mxu0 0.0
    %1938 = vmatpush.msra.mxu0 0.0
    %1939 = vmatpush.msra.mxu0 0.0
    %1940 = vmatpush.msra.mxu0 0.0
    %1941 = vmatpush.msra.mxu0 0.0
    %1942 = vmatpush.msra.mxu0 0.0
    %1943 = vmatpush.msra.mxu0 0.0
    %1944 = vmatpush.msra.mxu0 0.0
    %1945 = vmatpush.msra.mxu0 0.0
    %1946 = vmatpush.msra.mxu0 0.0
    %1947 = vmatpush.msra.mxu0 0.0
    %1948 = vmatpush.msra.mxu0 0.0
    %1949 = vmatpush.msra.mxu0 %v1789
    %1950 = vmatpush.msra.mxu0 %v1787
    %1951 = vmatmul.f32.gmra.mxu0 %v1913
    %v1952 = vpop.f32.mrf.mxu0
    %v1953 = vadd.f32 %v1933, %v1952
    %1954 = vdwg.mxu0
    %1955 = vmatpush.msra.mxu0 %v1786
    %1956 = vmatpush.msra.mxu0 %v1784
    %1957 = vmatpush.msra.mxu0 %v1782
    %1958 = vmatpush.msra.mxu0 %v1780
    %1959 = vmatpush.msra.mxu0 %v1778
    %1960 = vmatpush.msra.mxu0 %v1776
    %1961 = vmatpush.msra.mxu0 %v1774
    %1962 = vmatpush.msra.mxu0 %v1772
    %1963 = vmatpush.msra.mxu0 %v1770
    %1964 = vmatpush.msra.mxu0 %v1768
    %1965 = vmatpush.msra.mxu0 %v1766
    %1966 = vmatpush.msra.mxu0 %v1764
    %1967 = vmatpush.msra.mxu0 %v1762
    %1968 = vmatpush.msra.mxu0 %v1760
    %1969 = vmatpush.msra.mxu0 %v1758
    %1970 = vmatpush.msra.mxu0 %v1756
    %1971 = vmatmul.f32.gmra.mxu0 %v973
    %v1972 = vpop.f32.mrf.mxu0
    %v1973 = vadd.f32 %v1910, %v1972
    %1974 = vdwg.mxu0
    %1975 = vmatpush.msra.mxu0 0.0
    %1976 = vmatpush.msra.mxu0 0.0
    %1977 = vmatpush.msra.mxu0 0.0
    %1978 = vmatpush.msra.mxu0 0.0
    %1979 = vmatpush.msra.mxu0 0.0
    %1980 = vmatpush.msra.mxu0 0.0
    %1981 = vmatpush.msra.mxu0 0.0
    %1982 = vmatpush.msra.mxu0 0.0
    %1983 = vmatpush.msra.mxu0 0.0
    %1984 = vmatpush.msra.mxu0 0.0
    %1985 = vmatpush.msra.mxu0 0.0
    %1986 = vmatpush.msra.mxu0 0.0
    %1987 = vmatpush.msra.mxu0 0.0
    %1988 = vmatpush.msra.mxu0 0.0
    %1989 = vmatpush.msra.mxu0 %v1790
    %1990 = vmatpush.msra.mxu0 %v1788
    %1991 = vmatmul.f32.gmra.mxu0 %v1913
    %v1992 = vpop.f32.mrf.mxu0
    %v1993 = vadd.f32 %v1973, %v1992
    %1994 = vdwg.mxu0
    %s1995 = scalar_lea.vmem [#allocation2], 576
    %v1996 = vld [vmem:[%s1995] sm:$0xff]
    %v1997 = vld [vmem:[%s1995 + $0x8] sm:$0xff]
    %v1998 = vld [vmem:[%s1995 + $0x10] sm:$0xff]
    %v1999 = vld [vmem:[%s1995 + $0x18] sm:$0xff]
    %v2000 = vld [vmem:[%s1995 + $0x20] sm:$0xff]
    %v2001 = vld [vmem:[%s1995 + $0x28] sm:$0xff]
    %v2002 = vld [vmem:[%s1995 + $0x30] sm:$0xff]
    %v2003 = vld [vmem:[%s1995 + $0x38] sm:$0xff]
    %v2004 = vld [vmem:[%s1995 + $0x40] sm:$0xff]
    %v2005 = vld [vmem:[%s1995 + $0x48] sm:$0xff]
    %v2006 = vld [vmem:[%s1995 + $0x50] sm:$0xff]
    %v2007 = vld [vmem:[%s1995 + $0x58] sm:$0xff]
    %v2008 = vld [vmem:[%s1995 + $0x60] sm:$0xff]
    %v2009 = vld [vmem:[%s1995 + $0x68] sm:$0xff]
    %v2010 = vld [vmem:[%s1995 + $0x70] sm:$0xff]
    %v2011 = vld [vmem:[%s1995 + $0x78] sm:$0xff]
    %v2012 = vld [vmem:[%s1995 + $0x80] sm:$0xff]
    %v2013 = vld [vmem:[%s1995 + $0x88] sm:$0xff]
    %v2014 = vld [vmem:[%s1995 + $0x90] sm:$0xff]
    %v2015 = vld [vmem:[%s1995 + $0x98] sm:$0xff]
    %v2016 = vld [vmem:[%s1995 + $0xa0] sm:$0xff]
    %v2017 = vld [vmem:[%s1995 + $0xa8] sm:$0xff]
    %v2018 = vld [vmem:[%s1995 + $0xb0] sm:$0xff]
    %v2019 = vld [vmem:[%s1995 + $0xb8] sm:$0xff]
    %v2020 = vld [vmem:[%s1995 + $0xc0] sm:$0xff]
    %v2021 = vld [vmem:[%s1995 + $0xc8] sm:$0xff]
    %v2022 = vld [vmem:[%s1995 + $0xd0] sm:$0xff]
    %v2023 = vld [vmem:[%s1995 + $0xd8] sm:$0xff]
    %v2024 = vld [vmem:[%s1995 + $0xe0] sm:$0xff]
    %v2025 = vld [vmem:[%s1995 + $0xe8] sm:$0xff]
    %v2026 = vld [vmem:[%s1995 + $0xf0] sm:$0xff]
    %v2027 = vld [vmem:[%s1995 + $0xf8] sm:$0xff]
    %v2028 = vld [vmem:[%s1995 + $0x100] sm:$0xff]
    %v2029 = vld [vmem:[%s1995 + $0x108] sm:$0xff]
    %v2030 = vld [vmem:[%s1995 + $0x110] sm:$0xff]
    %v2031 = vld [vmem:[%s1995 + $0x118] sm:$0xff]
    %vm2035 = vcmask 1045504
    %v2036 = vrot.slane %v973, 2
    %v2037 = vrot.slane %v975, 2
    %v2038 = vsel %vm2035, %v2036, %v2037
    %v2039 = vrot.slane %v974, 2
    %v2040 = vrot.slane %v976, 2
    %v2041 = vsel %vm2035, %v2039, %v2040
    %v2043 = vsel %vm1828, %v2041, 0
    %2045 = vmatpush.msra.mxu0 %v2026
    %2046 = vmatpush.msra.mxu0 %v2024
    %2047 = vmatpush.msra.mxu0 %v2022
    %2048 = vmatpush.msra.mxu0 %v2020
    %2049 = vmatpush.msra.mxu0 %v2018
    %2050 = vmatpush.msra.mxu0 %v2016
    %2051 = vmatpush.msra.mxu0 %v2014
    %2052 = vmatpush.msra.mxu0 %v2012
    %2053 = vmatpush.msra.mxu0 %v2010
    %2054 = vmatpush.msra.mxu0 %v2008
    %2055 = vmatpush.msra.mxu0 %v2006
    %2056 = vmatpush.msra.mxu0 %v2004
    %2057 = vmatpush.msra.mxu0 %v2002
    %2058 = vmatpush.msra.mxu0 %v2000
    %2059 = vmatpush.msra.mxu0 %v1998
    %2060 = vmatpush.msra.mxu0 %v1996
    %2061 = vmatmul.f32.gmra.mxu0 %v2038
    %v2062 = vpop.f32.mrf.mxu0
    %v2063 = vadd.f32 0.0, %v2062
    %2064 = vdwg.mxu0
    %2065 = vmatpush.msra.mxu0 0.0
    %2066 = vmatpush.msra.mxu0 0.0
    %2067 = vmatpush.msra.mxu0 0.0
    %2068 = vmatpush.msra.mxu0 0.0
    %2069 = vmatpush.msra.mxu0 0.0
    %2070 = vmatpush.msra.mxu0 0.0
    %2071 = vmatpush.msra.mxu0 0.0
    %2072 = vmatpush.msra.mxu0 0.0
    %2073 = vmatpush.msra.mxu0 0.0
    %2074 = vmatpush.msra.mxu0 0.0
    %2075 = vmatpush.msra.mxu0 0.0
    %2076 = vmatpush.msra.mxu0 0.0
    %2077 = vmatpush.msra.mxu0 0.0
    %2078 = vmatpush.msra.mxu0 0.0
    %2079 = vmatpush.msra.mxu0 %v2030
    %2080 = vmatpush.msra.mxu0 %v2028
    %2081 = vmatmul.f32.gmra.mxu0 %v2043
    %v2082 = vpop.f32.mrf.mxu0
    %v2083 = vadd.f32 %v2063, %v2082
    %2084 = vdwg.mxu0
    %2085 = vmatpush.msra.mxu0 %v2027
    %2086 = vmatpush.msra.mxu0 %v2025
    %2087 = vmatpush.msra.mxu0 %v2023
    %2088 = vmatpush.msra.mxu0 %v2021
    %2089 = vmatpush.msra.mxu0 %v2019
    %2090 = vmatpush.msra.mxu0 %v2017
    %2091 = vmatpush.msra.mxu0 %v2015
    %2092 = vmatpush.msra.mxu0 %v2013
    %2093 = vmatpush.msra.mxu0 %v2011
    %2094 = vmatpush.msra.mxu0 %v2009
    %2095 = vmatpush.msra.mxu0 %v2007
    %2096 = vmatpush.msra.mxu0 %v2005
    %2097 = vmatpush.msra.mxu0 %v2003
    %2098 = vmatpush.msra.mxu0 %v2001
    %2099 = vmatpush.msra.mxu0 %v1999
    %2100 = vmatpush.msra.mxu0 %v1997
    %2101 = vmatmul.f32.gmra.mxu0 %v2038
    %v2102 = vpop.f32.mrf.mxu0
    %v2103 = vadd.f32 0.0, %v2102
    %2104 = vdwg.mxu0
    %2105 = vmatpush.msra.mxu0 0.0
    %2106 = vmatpush.msra.mxu0 0.0
    %2107 = vmatpush.msra.mxu0 0.0
    %2108 = vmatpush.msra.mxu0 0.0
    %2109 = vmatpush.msra.mxu0 0.0
    %2110 = vmatpush.msra.mxu0 0.0
    %2111 = vmatpush.msra.mxu0 0.0
    %2112 = vmatpush.msra.mxu0 0.0
    %2113 = vmatpush.msra.mxu0 0.0
    %2114 = vmatpush.msra.mxu0 0.0
    %2115 = vmatpush.msra.mxu0 0.0
    %2116 = vmatpush.msra.mxu0 0.0
    %2117 = vmatpush.msra.mxu0 0.0
    %2118 = vmatpush.msra.mxu0 0.0
    %2119 = vmatpush.msra.mxu0 %v2031
    %2120 = vmatpush.msra.mxu0 %v2029
    %2121 = vmatmul.f32.gmra.mxu0 %v2043
    %v2122 = vpop.f32.mrf.mxu0
    %v2123 = vadd.f32 %v2103, %v2122
    %2124 = vdwg.mxu0
    %v2125 = vadd.f32 %v1953, %v2083
    %v2126 = vadd.f32 %v1993, %v2123
    %s2127 = scalar_lea.vmem [#allocation2], 864
    %v2128 = vld [vmem:[%s2127] sm:$0xff]
    %v2129 = vld [vmem:[%s2127 + $0x8] sm:$0xff]
    %v2130 = vld [vmem:[%s2127 + $0x10] sm:$0xff]
    %v2131 = vld [vmem:[%s2127 + $0x18] sm:$0xff]
    %v2132 = vld [vmem:[%s2127 + $0x20] sm:$0xff]
    %v2133 = vld [vmem:[%s2127 + $0x28] sm:$0xff]
    %v2134 = vld [vmem:[%s2127 + $0x30] sm:$0xff]
    %v2135 = vld [vmem:[%s2127 + $0x38] sm:$0xff]
    %v2136 = vld [vmem:[%s2127 + $0x40] sm:$0xff]
    %v2137 = vld [vmem:[%s2127 + $0x48] sm:$0xff]
    %v2138 = vld [vmem:[%s2127 + $0x50] sm:$0xff]
    %v2139 = vld [vmem:[%s2127 + $0x58] sm:$0xff]
    %v2140 = vld [vmem:[%s2127 + $0x60] sm:$0xff]
    %v2141 = vld [vmem:[%s2127 + $0x68] sm:$0xff]
    %v2142 = vld [vmem:[%s2127 + $0x70] sm:$0xff]
    %v2143 = vld [vmem:[%s2127 + $0x78] sm:$0xff]
    %v2144 = vld [vmem:[%s2127 + $0x80] sm:$0xff]
    %v2145 = vld [vmem:[%s2127 + $0x88] sm:$0xff]
    %v2146 = vld [vmem:[%s2127 + $0x90] sm:$0xff]
    %v2147 = vld [vmem:[%s2127 + $0x98] sm:$0xff]
    %v2148 = vld [vmem:[%s2127 + $0xa0] sm:$0xff]
    %v2149 = vld [vmem:[%s2127 + $0xa8] sm:$0xff]
    %v2150 = vld [vmem:[%s2127 + $0xb0] sm:$0xff]
    %v2151 = vld [vmem:[%s2127 + $0xb8] sm:$0xff]
    %v2152 = vld [vmem:[%s2127 + $0xc0] sm:$0xff]
    %v2153 = vld [vmem:[%s2127 + $0xc8] sm:$0xff]
    %v2154 = vld [vmem:[%s2127 + $0xd0] sm:$0xff]
    %v2155 = vld [vmem:[%s2127 + $0xd8] sm:$0xff]
    %v2156 = vld [vmem:[%s2127 + $0xe0] sm:$0xff]
    %v2157 = vld [vmem:[%s2127 + $0xe8] sm:$0xff]
    %v2158 = vld [vmem:[%s2127 + $0xf0] sm:$0xff]
    %v2159 = vld [vmem:[%s2127 + $0xf8] sm:$0xff]
    %v2160 = vld [vmem:[%s2127 + $0x100] sm:$0xff]
    %v2161 = vld [vmem:[%s2127 + $0x108] sm:$0xff]
    %v2162 = vld [vmem:[%s2127 + $0x110] sm:$0xff]
    %v2163 = vld [vmem:[%s2127 + $0x118] sm:$0xff]
    %v2167 = vrot.slane %v1751, 2
    %v2168 = vrot.slane %v1753, 2
    %v2169 = vsel %vm2035, %v2167, %v2168
    %v2170 = vrot.slane %v1752, 2
    %v2171 = vrot.slane %v1754, 2
    %v2172 = vsel %vm2035, %v2170, %v2171
    %v2174 = vsel %vm1828, %v2172, 0
    %2176 = vmatpush.msra.mxu0 %v2158
    %2177 = vmatpush.msra.mxu0 %v2156
    %2178 = vmatpush.msra.mxu0 %v2154
    %2179 = vmatpush.msra.mxu0 %v2152
    %2180 = vmatpush.msra.mxu0 %v2150
    %2181 = vmatpush.msra.mxu0 %v2148
    %2182 = vmatpush.msra.mxu0 %v2146
    %2183 = vmatpush.msra.mxu0 %v2144
    %2184 = vmatpush.msra.mxu0 %v2142
    %2185 = vmatpush.msra.mxu0 %v2140
    %2186 = vmatpush.msra.mxu0 %v2138
    %2187 = vmatpush.msra.mxu0 %v2136
    %2188 = vmatpush.msra.mxu0 %v2134
    %2189 = vmatpush.msra.mxu0 %v2132
    %2190 = vmatpush.msra.mxu0 %v2130
    %2191 = vmatpush.msra.mxu0 %v2128
    %2192 = vmatmul.f32.gmra.mxu0 %v2169
    %v2193 = vpop.f32.mrf.mxu0
    %v2194 = vadd.f32 0.0, %v2193
    %2195 = vdwg.mxu0
    %2196 = vmatpush.msra.mxu0 0.0
    %2197 = vmatpush.msra.mxu0 0.0
    %2198 = vmatpush.msra.mxu0 0.0
    %2199 = vmatpush.msra.mxu0 0.0
    %2200 = vmatpush.msra.mxu0 0.0
    %2201 = vmatpush.msra.mxu0 0.0
    %2202 = vmatpush.msra.mxu0 0.0
    %2203 = vmatpush.msra.mxu0 0.0
    %2204 = vmatpush.msra.mxu0 0.0
    %2205 = vmatpush.msra.mxu0 0.0
    %2206 = vmatpush.msra.mxu0 0.0
    %2207 = vmatpush.msra.mxu0 0.0
    %2208 = vmatpush.msra.mxu0 0.0
    %2209 = vmatpush.msra.mxu0 0.0
    %2210 = vmatpush.msra.mxu0 %v2162
    %2211 = vmatpush.msra.mxu0 %v2160
    %2212 = vmatmul.f32.gmra.mxu0 %v2174
    %v2213 = vpop.f32.mrf.mxu0
    %v2214 = vadd.f32 %v2194, %v2213
    %2215 = vdwg.mxu0
    %2216 = vmatpush.msra.mxu0 %v2159
    %2217 = vmatpush.msra.mxu0 %v2157
    %2218 = vmatpush.msra.mxu0 %v2155
    %2219 = vmatpush.msra.mxu0 %v2153
    %2220 = vmatpush.msra.mxu0 %v2151
    %2221 = vmatpush.msra.mxu0 %v2149
    %2222 = vmatpush.msra.mxu0 %v2147
    %2223 = vmatpush.msra.mxu0 %v2145
    %2224 = vmatpush.msra.mxu0 %v2143
    %2225 = vmatpush.msra.mxu0 %v2141
    %2226 = vmatpush.msra.mxu0 %v2139
    %2227 = vmatpush.msra.mxu0 %v2137
    %2228 = vmatpush.msra.mxu0 %v2135
    %2229 = vmatpush.msra.mxu0 %v2133
    %2230 = vmatpush.msra.mxu0 %v2131
    %2231 = vmatpush.msra.mxu0 %v2129
    %2232 = vmatmul.f32.gmra.mxu0 %v2169
    %v2233 = vpop.f32.mrf.mxu0
    %v2234 = vadd.f32 0.0, %v2233
    %2235 = vdwg.mxu0
    %2236 = vmatpush.msra.mxu0 0.0
    %2237 = vmatpush.msra.mxu0 0.0
    %2238 = vmatpush.msra.mxu0 0.0
    %2239 = vmatpush.msra.mxu0 0.0
    %2240 = vmatpush.msra.mxu0 0.0
    %2241 = vmatpush.msra.mxu0 0.0
    %2242 = vmatpush.msra.mxu0 0.0
    %2243 = vmatpush.msra.mxu0 0.0
    %2244 = vmatpush.msra.mxu0 0.0
    %2245 = vmatpush.msra.mxu0 0.0
    %2246 = vmatpush.msra.mxu0 0.0
    %2247 = vmatpush.msra.mxu0 0.0
    %2248 = vmatpush.msra.mxu0 0.0
    %2249 = vmatpush.msra.mxu0 0.0
    %2250 = vmatpush.msra.mxu0 %v2163
    %2251 = vmatpush.msra.mxu0 %v2161
    %2252 = vmatmul.f32.gmra.mxu0 %v2174
    %v2253 = vpop.f32.mrf.mxu0
    %v2254 = vadd.f32 %v2234, %v2253
    %2255 = vdwg.mxu0
    %v2256 = vadd.f32 %v2125, %v2214
    %v2257 = vadd.f32 %v2126, %v2254
    %s2258 = scalar_lea.vmem [#allocation2], 1152
    %v2259 = vld [vmem:[%s2258] sm:$0xff]
    %v2260 = vld [vmem:[%s2258 + $0x8] sm:$0xff]
    %v2261 = vld [vmem:[%s2258 + $0x10] sm:$0xff]
    %v2262 = vld [vmem:[%s2258 + $0x18] sm:$0xff]
    %v2263 = vld [vmem:[%s2258 + $0x20] sm:$0xff]
    %v2264 = vld [vmem:[%s2258 + $0x28] sm:$0xff]
    %v2265 = vld [vmem:[%s2258 + $0x30] sm:$0xff]
    %v2266 = vld [vmem:[%s2258 + $0x38] sm:$0xff]
    %v2267 = vld [vmem:[%s2258 + $0x40] sm:$0xff]
    %v2268 = vld [vmem:[%s2258 + $0x48] sm:$0xff]
    %v2269 = vld [vmem:[%s2258 + $0x50] sm:$0xff]
    %v2270 = vld [vmem:[%s2258 + $0x58] sm:$0xff]
    %v2271 = vld [vmem:[%s2258 + $0x60] sm:$0xff]
    %v2272 = vld [vmem:[%s2258 + $0x68] sm:$0xff]
    %v2273 = vld [vmem:[%s2258 + $0x70] sm:$0xff]
    %v2274 = vld [vmem:[%s2258 + $0x78] sm:$0xff]
    %v2275 = vld [vmem:[%s2258 + $0x80] sm:$0xff]
    %v2276 = vld [vmem:[%s2258 + $0x88] sm:$0xff]
    %v2277 = vld [vmem:[%s2258 + $0x90] sm:$0xff]
    %v2278 = vld [vmem:[%s2258 + $0x98] sm:$0xff]
    %v2279 = vld [vmem:[%s2258 + $0xa0] sm:$0xff]
    %v2280 = vld [vmem:[%s2258 + $0xa8] sm:$0xff]
    %v2281 = vld [vmem:[%s2258 + $0xb0] sm:$0xff]
    %v2282 = vld [vmem:[%s2258 + $0xb8] sm:$0xff]
    %v2283 = vld [vmem:[%s2258 + $0xc0] sm:$0xff]
    %v2284 = vld [vmem:[%s2258 + $0xc8] sm:$0xff]
    %v2285 = vld [vmem:[%s2258 + $0xd0] sm:$0xff]
    %v2286 = vld [vmem:[%s2258 + $0xd8] sm:$0xff]
    %v2287 = vld [vmem:[%s2258 + $0xe0] sm:$0xff]
    %v2288 = vld [vmem:[%s2258 + $0xe8] sm:$0xff]
    %v2289 = vld [vmem:[%s2258 + $0xf0] sm:$0xff]
    %v2290 = vld [vmem:[%s2258 + $0xf8] sm:$0xff]
    %v2291 = vld [vmem:[%s2258 + $0x100] sm:$0xff]
    %v2292 = vld [vmem:[%s2258 + $0x108] sm:$0xff]
    %v2293 = vld [vmem:[%s2258 + $0x110] sm:$0xff]
    %v2294 = vld [vmem:[%s2258 + $0x118] sm:$0xff]
    %v2295 = vrot.slane %v973, 4
    %v2296 = vrot.slane %v975, 4
    %v2297 = vsel %vm85, %v2295, %v2296
    %v2298 = vrot.slane %v974, 4
    %v2299 = vrot.slane %v976, 4
    %v2300 = vsel %vm85, %v2298, %v2299
    %v2302 = vsel %vm1828, %v2300, 0
    %2304 = vmatpush.msra.mxu0 %v2289
    %2305 = vmatpush.msra.mxu0 %v2287
    %2306 = vmatpush.msra.mxu0 %v2285
    %2307 = vmatpush.msra.mxu0 %v2283
    %2308 = vmatpush.msra.mxu0 %v2281
    %2309 = vmatpush.msra.mxu0 %v2279
    %2310 = vmatpush.msra.mxu0 %v2277
    %2311 = vmatpush.msra.mxu0 %v2275
    %2312 = vmatpush.msra.mxu0 %v2273
    %2313 = vmatpush.msra.mxu0 %v2271
    %2314 = vmatpush.msra.mxu0 %v2269
    %2315 = vmatpush.msra.mxu0 %v2267
    %2316 = vmatpush.msra.mxu0 %v2265
    %2317 = vmatpush.msra.mxu0 %v2263
    %2318 = vmatpush.msra.mxu0 %v2261
    %2319 = vmatpush.msra.mxu0 %v2259
    %2320 = vmatmul.f32.gmra.mxu0 %v2297
    %v2321 = vpop.f32.mrf.mxu0
    %v2322 = vadd.f32 0.0, %v2321
    %2323 = vdwg.mxu0
    %2324 = vmatpush.msra.mxu0 0.0
    %2325 = vmatpush.msra.mxu0 0.0
    %2326 = vmatpush.msra.mxu0 0.0
    %2327 = vmatpush.msra.mxu0 0.0
    %2328 = vmatpush.msra.mxu0 0.0
    %2329 = vmatpush.msra.mxu0 0.0
    %2330 = vmatpush.msra.mxu0 0.0
    %2331 = vmatpush.msra.mxu0 0.0
    %2332 = vmatpush.msra.mxu0 0.0
    %2333 = vmatpush.msra.mxu0 0.0
    %2334 = vmatpush.msra.mxu0 0.0
    %2335 = vmatpush.msra.mxu0 0.0
    %2336 = vmatpush.msra.mxu0 0.0
    %2337 = vmatpush.msra.mxu0 0.0
    %2338 = vmatpush.msra.mxu0 %v2293
    %2339 = vmatpush.msra.mxu0 %v2291
    %2340 = vmatmul.f32.gmra.mxu0 %v2302
    %v2341 = vpop.f32.mrf.mxu0
    %v2342 = vadd.f32 %v2322, %v2341
    %2343 = vdwg.mxu0
    %2344 = vmatpush.msra.mxu0 %v2290
    %2345 = vmatpush.msra.mxu0 %v2288
    %2346 = vmatpush.msra.mxu0 %v2286
    %2347 = vmatpush.msra.mxu0 %v2284
    %2348 = vmatpush.msra.mxu0 %v2282
    %2349 = vmatpush.msra.mxu0 %v2280
    %2350 = vmatpush.msra.mxu0 %v2278
    %2351 = vmatpush.msra.mxu0 %v2276
    %2352 = vmatpush.msra.mxu0 %v2274
    %2353 = vmatpush.msra.mxu0 %v2272
    %2354 = vmatpush.msra.mxu0 %v2270
    %2355 = vmatpush.msra.mxu0 %v2268
    %2356 = vmatpush.msra.mxu0 %v2266
    %2357 = vmatpush.msra.mxu0 %v2264
    %2358 = vmatpush.msra.mxu0 %v2262
    %2359 = vmatpush.msra.mxu0 %v2260
    %2360 = vmatmul.f32.gmra.mxu0 %v2297
    %v2361 = vpop.f32.mrf.mxu0
    %v2362 = vadd.f32 0.0, %v2361
    %2363 = vdwg.mxu0
    %2364 = vmatpush.msra.mxu0 0.0
    %2365 = vmatpush.msra.mxu0 0.0
    %2366 = vmatpush.msra.mxu0 0.0
    %2367 = vmatpush.msra.mxu0 0.0
    %2368 = vmatpush.msra.mxu0 0.0
    %2369 = vmatpush.msra.mxu0 0.0
    %2370 = vmatpush.msra.mxu0 0.0
    %2371 = vmatpush.msra.mxu0 0.0
    %2372 = vmatpush.msra.mxu0 0.0
    %2373 = vmatpush.msra.mxu0 0.0
    %2374 = vmatpush.msra.mxu0 0.0
    %2375 = vmatpush.msra.mxu0 0.0
    %2376 = vmatpush.msra.mxu0 0.0
    %2377 = vmatpush.msra.mxu0 0.0
    %2378 = vmatpush.msra.mxu0 %v2294
    %2379 = vmatpush.msra.mxu0 %v2292
    %2380 = vmatmul.f32.gmra.mxu0 %v2302
    %v2381 = vpop.f32.mrf.mxu0
    %v2382 = vadd.f32 %v2362, %v2381
    %2383 = vdwg.mxu0
    %v2384 = vadd.f32 %v2256, %v2342
    %v2385 = vadd.f32 %v2257, %v2382
    %2386 = vmatpush.msra.mxu0 %v1822
    %2387 = vmatpush.msra.mxu0 %v1820
    %2388 = vmatpush.msra.mxu0 %v1818
    %2389 = vmatpush.msra.mxu0 %v1816
    %2390 = vmatpush.msra.mxu0 %v1814
    %2391 = vmatpush.msra.mxu0 %v1812
    %2392 = vmatpush.msra.mxu0 %v1810
    %2393 = vmatpush.msra.mxu0 %v1808
    %2394 = vmatpush.msra.mxu0 %v1806
    %2395 = vmatpush.msra.mxu0 %v1804
    %2396 = vmatpush.msra.mxu0 %v1802
    %2397 = vmatpush.msra.mxu0 %v1800
    %2398 = vmatpush.msra.mxu0 %v1798
    %2399 = vmatpush.msra.mxu0 %v1796
    %2400 = vmatpush.msra.mxu0 %v1794
    %2401 = vmatpush.msra.mxu0 %v1792
    %2402 = vmatmul.f32.gmra.mxu0 %v2038
    %v2403 = vpop.f32.mrf.mxu0
    %v2404 = vadd.f32 0.0, %v2403
    %2405 = vdwg.mxu0
    %2406 = vmatpush.msra.mxu0 0.0
    %2407 = vmatpush.msra.mxu0 0.0
    %2408 = vmatpush.msra.mxu0 0.0
    %2409 = vmatpush.msra.mxu0 0.0
    %2410 = vmatpush.msra.mxu0 0.0
    %2411 = vmatpush.msra.mxu0 0.0
    %2412 = vmatpush.msra.mxu0 0.0
    %2413 = vmatpush.msra.mxu0 0.0
    %2414 = vmatpush.msra.mxu0 0.0
    %2415 = vmatpush.msra.mxu0 0.0
    %2416 = vmatpush.msra.mxu0 0.0
    %2417 = vmatpush.msra.mxu0 0.0
    %2418 = vmatpush.msra.mxu0 0.0
    %2419 = vmatpush.msra.mxu0 0.0
    %2420 = vmatpush.msra.mxu0 %v1826
    %2421 = vmatpush.msra.mxu0 %v1824
    %2422 = vmatmul.f32.gmra.mxu0 %v2043
    %v2423 = vpop.f32.mrf.mxu0
    %v2424 = vadd.f32 %v2404, %v2423
    %2425 = vdwg.mxu0
    %2426 = vmatpush.msra.mxu0 %v1823
    %2427 = vmatpush.msra.mxu0 %v1821
    %2428 = vmatpush.msra.mxu0 %v1819
    %2429 = vmatpush.msra.mxu0 %v1817
    %2430 = vmatpush.msra.mxu0 %v1815
    %2431 = vmatpush.msra.mxu0 %v1813
    %2432 = vmatpush.msra.mxu0 %v1811
    %2433 = vmatpush.msra.mxu0 %v1809
    %2434 = vmatpush.msra.mxu0 %v1807
    %2435 = vmatpush.msra.mxu0 %v1805
    %2436 = vmatpush.msra.mxu0 %v1803
    %2437 = vmatpush.msra.mxu0 %v1801
    %2438 = vmatpush.msra.mxu0 %v1799
    %2439 = vmatpush.msra.mxu0 %v1797
    %2440 = vmatpush.msra.mxu0 %v1795
    %2441 = vmatpush.msra.mxu0 %v1793
    %2442 = vmatmul.f32.gmra.mxu0 %v2038
    %v2443 = vpop.f32.mrf.mxu0
    %v2444 = vadd.f32 0.0, %v2443
    %2445 = vdwg.mxu0
    %2446 = vmatpush.msra.mxu0 0.0
    %2447 = vmatpush.msra.mxu0 0.0
    %2448 = vmatpush.msra.mxu0 0.0
    %2449 = vmatpush.msra.mxu0 0.0
    %2450 = vmatpush.msra.mxu0 0.0
    %2451 = vmatpush.msra.mxu0 0.0
    %2452 = vmatpush.msra.mxu0 0.0
    %2453 = vmatpush.msra.mxu0 0.0
    %2454 = vmatpush.msra.mxu0 0.0
    %2455 = vmatpush.msra.mxu0 0.0
    %2456 = vmatpush.msra.mxu0 0.0
    %2457 = vmatpush.msra.mxu0 0.0
    %2458 = vmatpush.msra.mxu0 0.0
    %2459 = vmatpush.msra.mxu0 0.0
    %2460 = vmatpush.msra.mxu0 %v1827
    %2461 = vmatpush.msra.mxu0 %v1825
    %2462 = vmatmul.f32.gmra.mxu0 %v2043
    %v2463 = vpop.f32.mrf.mxu0
    %v2464 = vadd.f32 %v2444, %v2463
    %2465 = vdwg.mxu0
    %2466 = vmatpush.msra.mxu0 %v1785
    %2467 = vmatpush.msra.mxu0 %v1783
    %2468 = vmatpush.msra.mxu0 %v1781
    %2469 = vmatpush.msra.mxu0 %v1779
    %2470 = vmatpush.msra.mxu0 %v1777
    %2471 = vmatpush.msra.mxu0 %v1775
    %2472 = vmatpush.msra.mxu0 %v1773
    %2473 = vmatpush.msra.mxu0 %v1771
    %2474 = vmatpush.msra.mxu0 %v1769
    %2475 = vmatpush.msra.mxu0 %v1767
    %2476 = vmatpush.msra.mxu0 %v1765
    %2477 = vmatpush.msra.mxu0 %v1763
    %2478 = vmatpush.msra.mxu0 %v1761
    %2479 = vmatpush.msra.mxu0 %v1759
    %2480 = vmatpush.msra.mxu0 %v1757
    %2481 = vmatpush.msra.mxu0 %v1755
    %2482 = vmatmul.f32.gmra.mxu0 %v1751
    %v2483 = vpop.f32.mrf.mxu0
    %v2484 = vadd.f32 %v2424, %v2483
    %2485 = vdwg.mxu0
    %2486 = vmatpush.msra.mxu0 0.0
    %2487 = vmatpush.msra.mxu0 0.0
    %2488 = vmatpush.msra.mxu0 0.0
    %2489 = vmatpush.msra.mxu0 0.0
    %2490 = vmatpush.msra.mxu0 0.0
    %2491 = vmatpush.msra.mxu0 0.0
    %2492 = vmatpush.msra.mxu0 0.0
    %2493 = vmatpush.msra.mxu0 0.0
    %2494 = vmatpush.msra.mxu0 0.0
    %2495 = vmatpush.msra.mxu0 0.0
    %2496 = vmatpush.msra.mxu0 0.0
    %2497 = vmatpush.msra.mxu0 0.0
    %2498 = vmatpush.msra.mxu0 0.0
    %2499 = vmatpush.msra.mxu0 0.0
    %2500 = vmatpush.msra.mxu0 %v1789
    %2501 = vmatpush.msra.mxu0 %v1787
    %2502 = vmatmul.f32.gmra.mxu0 %v1830
    %v2503 = vpop.f32.mrf.mxu0
    %v2504 = vadd.f32 %v2484, %v2503
    %2505 = vdwg.mxu0
    %2506 = vmatpush.msra.mxu0 %v1786
    %2507 = vmatpush.msra.mxu0 %v1784
    %2508 = vmatpush.msra.mxu0 %v1782
    %2509 = vmatpush.msra.mxu0 %v1780
    %2510 = vmatpush.msra.mxu0 %v1778
    %2511 = vmatpush.msra.mxu0 %v1776
    %2512 = vmatpush.msra.mxu0 %v1774
    %2513 = vmatpush.msra.mxu0 %v1772
    %2514 = vmatpush.msra.mxu0 %v1770
    %2515 = vmatpush.msra.mxu0 %v1768
    %2516 = vmatpush.msra.mxu0 %v1766
    %2517 = vmatpush.msra.mxu0 %v1764
    %2518 = vmatpush.msra.mxu0 %v1762
    %2519 = vmatpush.msra.mxu0 %v1760
    %2520 = vmatpush.msra.mxu0 %v1758
    %2521 = vmatpush.msra.mxu0 %v1756
    %2522 = vmatmul.f32.gmra.mxu0 %v1751
    %v2523 = vpop.f32.mrf.mxu0
    %v2524 = vadd.f32 %v2464, %v2523
    %2525 = vdwg.mxu0
    %2526 = vmatpush.msra.mxu0 0.0
    %2527 = vmatpush.msra.mxu0 0.0
    %2528 = vmatpush.msra.mxu0 0.0
    %2529 = vmatpush.msra.mxu0 0.0
    %2530 = vmatpush.msra.mxu0 0.0
    %2531 = vmatpush.msra.mxu0 0.0
    %2532 = vmatpush.msra.mxu0 0.0
    %2533 = vmatpush.msra.mxu0 0.0
    %2534 = vmatpush.msra.mxu0 0.0
    %2535 = vmatpush.msra.mxu0 0.0
    %2536 = vmatpush.msra.mxu0 0.0
    %2537 = vmatpush.msra.mxu0 0.0
    %2538 = vmatpush.msra.mxu0 0.0
    %2539 = vmatpush.msra.mxu0 0.0
    %2540 = vmatpush.msra.mxu0 %v1790
    %2541 = vmatpush.msra.mxu0 %v1788
    %2542 = vmatmul.f32.gmra.mxu0 %v1830
    %v2543 = vpop.f32.mrf.mxu0
    %v2544 = vadd.f32 %v2524, %v2543
    %2545 = vdwg.mxu0
    %2546 = vmatpush.msra.mxu0 %v2026
    %2547 = vmatpush.msra.mxu0 %v2024
    %2548 = vmatpush.msra.mxu0 %v2022
    %2549 = vmatpush.msra.mxu0 %v2020
    %2550 = vmatpush.msra.mxu0 %v2018
    %2551 = vmatpush.msra.mxu0 %v2016
    %2552 = vmatpush.msra.mxu0 %v2014
    %2553 = vmatpush.msra.mxu0 %v2012
    %2554 = vmatpush.msra.mxu0 %v2010
    %2555 = vmatpush.msra.mxu0 %v2008
    %2556 = vmatpush.msra.mxu0 %v2006
    %2557 = vmatpush.msra.mxu0 %v2004
    %2558 = vmatpush.msra.mxu0 %v2002
    %2559 = vmatpush.msra.mxu0 %v2000
    %2560 = vmatpush.msra.mxu0 %v1998
    %2561 = vmatpush.msra.mxu0 %v1996
    %2562 = vmatmul.f32.gmra.mxu0 %v2169
    %v2563 = vpop.f32.mrf.mxu0
    %v2564 = vadd.f32 0.0, %v2563
    %2565 = vdwg.mxu0
    %2566 = vmatpush.msra.mxu0 0.0
    %2567 = vmatpush.msra.mxu0 0.0
    %2568 = vmatpush.msra.mxu0 0.0
    %2569 = vmatpush.msra.mxu0 0.0
    %2570 = vmatpush.msra.mxu0 0.0
    %2571 = vmatpush.msra.mxu0 0.0
    %2572 = vmatpush.msra.mxu0 0.0
    %2573 = vmatpush.msra.mxu0 0.0
    %2574 = vmatpush.msra.mxu0 0.0
    %2575 = vmatpush.msra.mxu0 0.0
    %2576 = vmatpush.msra.mxu0 0.0
    %2577 = vmatpush.msra.mxu0 0.0
    %2578 = vmatpush.msra.mxu0 0.0
    %2579 = vmatpush.msra.mxu0 0.0
    %2580 = vmatpush.msra.mxu0 %v2030
    %2581 = vmatpush.msra.mxu0 %v2028
    %2582 = vmatmul.f32.gmra.mxu0 %v2174
    %v2583 = vpop.f32.mrf.mxu0
    %v2584 = vadd.f32 %v2564, %v2583
    %2585 = vdwg.mxu0
    %2586 = vmatpush.msra.mxu0 %v2027
    %2587 = vmatpush.msra.mxu0 %v2025
    %2588 = vmatpush.msra.mxu0 %v2023
    %2589 = vmatpush.msra.mxu0 %v2021
    %2590 = vmatpush.msra.mxu0 %v2019
    %2591 = vmatpush.msra.mxu0 %v2017
    %2592 = vmatpush.msra.mxu0 %v2015
    %2593 = vmatpush.msra.mxu0 %v2013
    %2594 = vmatpush.msra.mxu0 %v2011
    %2595 = vmatpush.msra.mxu0 %v2009
    %2596 = vmatpush.msra.mxu0 %v2007
    %2597 = vmatpush.msra.mxu0 %v2005
    %2598 = vmatpush.msra.mxu0 %v2003
    %2599 = vmatpush.msra.mxu0 %v2001
    %2600 = vmatpush.msra.mxu0 %v1999
    %2601 = vmatpush.msra.mxu0 %v1997
    %2602 = vmatmul.f32.gmra.mxu0 %v2169
    %v2603 = vpop.f32.mrf.mxu0
    %v2604 = vadd.f32 0.0, %v2603
    %2605 = vdwg.mxu0
    %2606 = vmatpush.msra.mxu0 0.0
    %2607 = vmatpush.msra.mxu0 0.0
    %2608 = vmatpush.msra.mxu0 0.0
    %2609 = vmatpush.msra.mxu0 0.0
    %2610 = vmatpush.msra.mxu0 0.0
    %2611 = vmatpush.msra.mxu0 0.0
    %2612 = vmatpush.msra.mxu0 0.0
    %2613 = vmatpush.msra.mxu0 0.0
    %2614 = vmatpush.msra.mxu0 0.0
    %2615 = vmatpush.msra.mxu0 0.0
    %2616 = vmatpush.msra.mxu0 0.0
    %2617 = vmatpush.msra.mxu0 0.0
    %2618 = vmatpush.msra.mxu0 0.0
    %2619 = vmatpush.msra.mxu0 0.0
    %2620 = vmatpush.msra.mxu0 %v2031
    %2621 = vmatpush.msra.mxu0 %v2029
    %2622 = vmatmul.f32.gmra.mxu0 %v2174
    %v2623 = vpop.f32.mrf.mxu0
    %v2624 = vadd.f32 %v2604, %v2623
    %2625 = vdwg.mxu0
    %v2626 = vadd.f32 %v2504, %v2584
    %v2627 = vadd.f32 %v2544, %v2624
    %2628 = vmatpush.msra.mxu0 %v2158
    %2629 = vmatpush.msra.mxu0 %v2156
    %2630 = vmatpush.msra.mxu0 %v2154
    %2631 = vmatpush.msra.mxu0 %v2152
    %2632 = vmatpush.msra.mxu0 %v2150
    %2633 = vmatpush.msra.mxu0 %v2148
    %2634 = vmatpush.msra.mxu0 %v2146
    %2635 = vmatpush.msra.mxu0 %v2144
    %2636 = vmatpush.msra.mxu0 %v2142
    %2637 = vmatpush.msra.mxu0 %v2140
    %2638 = vmatpush.msra.mxu0 %v2138
    %2639 = vmatpush.msra.mxu0 %v2136
    %2640 = vmatpush.msra.mxu0 %v2134
    %2641 = vmatpush.msra.mxu0 %v2132
    %2642 = vmatpush.msra.mxu0 %v2130
    %2643 = vmatpush.msra.mxu0 %v2128
    %2644 = vmatmul.f32.gmra.mxu0 %v2297
    %v2645 = vpop.f32.mrf.mxu0
    %v2646 = vadd.f32 0.0, %v2645
    %2647 = vdwg.mxu0
    %2648 = vmatpush.msra.mxu0 0.0
    %2649 = vmatpush.msra.mxu0 0.0
    %2650 = vmatpush.msra.mxu0 0.0
    %2651 = vmatpush.msra.mxu0 0.0
    %2652 = vmatpush.msra.mxu0 0.0
    %2653 = vmatpush.msra.mxu0 0.0
    %2654 = vmatpush.msra.mxu0 0.0
    %2655 = vmatpush.msra.mxu0 0.0
    %2656 = vmatpush.msra.mxu0 0.0
    %2657 = vmatpush.msra.mxu0 0.0
    %2658 = vmatpush.msra.mxu0 0.0
    %2659 = vmatpush.msra.mxu0 0.0
    %2660 = vmatpush.msra.mxu0 0.0
    %2661 = vmatpush.msra.mxu0 0.0
    %2662 = vmatpush.msra.mxu0 %v2162
    %2663 = vmatpush.msra.mxu0 %v2160
    %2664 = vmatmul.f32.gmra.mxu0 %v2302
    %v2665 = vpop.f32.mrf.mxu0
    %v2666 = vadd.f32 %v2646, %v2665
    %2667 = vdwg.mxu0
    %2668 = vmatpush.msra.mxu0 %v2159
    %2669 = vmatpush.msra.mxu0 %v2157
    %2670 = vmatpush.msra.mxu0 %v2155
    %2671 = vmatpush.msra.mxu0 %v2153
    %2672 = vmatpush.msra.mxu0 %v2151
    %2673 = vmatpush.msra.mxu0 %v2149
    %2674 = vmatpush.msra.mxu0 %v2147
    %2675 = vmatpush.msra.mxu0 %v2145
    %2676 = vmatpush.msra.mxu0 %v2143
    %2677 = vmatpush.msra.mxu0 %v2141
    %2678 = vmatpush.msra.mxu0 %v2139
    %2679 = vmatpush.msra.mxu0 %v2137
    %2680 = vmatpush.msra.mxu0 %v2135
    %2681 = vmatpush.msra.mxu0 %v2133
    %2682 = vmatpush.msra.mxu0 %v2131
    %2683 = vmatpush.msra.mxu0 %v2129
    %2684 = vmatmul.f32.gmra.mxu0 %v2297
    %v2685 = vpop.f32.mrf.mxu0
    %v2686 = vadd.f32 0.0, %v2685
    %2687 = vdwg.mxu0
    %2688 = vmatpush.msra.mxu0 0.0
    %2689 = vmatpush.msra.mxu0 0.0
    %2690 = vmatpush.msra.mxu0 0.0
    %2691 = vmatpush.msra.mxu0 0.0
    %2692 = vmatpush.msra.mxu0 0.0
    %2693 = vmatpush.msra.mxu0 0.0
    %2694 = vmatpush.msra.mxu0 0.0
    %2695 = vmatpush.msra.mxu0 0.0
    %2696 = vmatpush.msra.mxu0 0.0
    %2697 = vmatpush.msra.mxu0 0.0
    %2698 = vmatpush.msra.mxu0 0.0
    %2699 = vmatpush.msra.mxu0 0.0
    %2700 = vmatpush.msra.mxu0 0.0
    %2701 = vmatpush.msra.mxu0 0.0
    %2702 = vmatpush.msra.mxu0 %v2163
    %2703 = vmatpush.msra.mxu0 %v2161
    %2704 = vmatmul.f32.gmra.mxu0 %v2302
    %v2705 = vpop.f32.mrf.mxu0
    %v2706 = vadd.f32 %v2686, %v2705
    %2707 = vdwg.mxu0
    %v2708 = vadd.f32 %v2626, %v2666
    %v2709 = vadd.f32 %v2627, %v2706
    %v2710 = vrot.slane %v1751, 4
    %v2711 = vrot.slane %v1753, 4
    %v2712 = vsel %vm85, %v2710, %v2711
    %v2713 = vrot.slane %v1752, 4
    %v2714 = vrot.slane %v1754, 4
    %v2715 = vsel %vm85, %v2713, %v2714
    %v2717 = vsel %vm1828, %v2715, 0
    %2719 = vmatpush.msra.mxu0 %v2289
    %2720 = vmatpush.msra.mxu0 %v2287
    %2721 = vmatpush.msra.mxu0 %v2285
    %2722 = vmatpush.msra.mxu0 %v2283
    %2723 = vmatpush.msra.mxu0 %v2281
    %2724 = vmatpush.msra.mxu0 %v2279
    %2725 = vmatpush.msra.mxu0 %v2277
    %2726 = vmatpush.msra.mxu0 %v2275
    %2727 = vmatpush.msra.mxu0 %v2273
    %2728 = vmatpush.msra.mxu0 %v2271
    %2729 = vmatpush.msra.mxu0 %v2269
    %2730 = vmatpush.msra.mxu0 %v2267
    %2731 = vmatpush.msra.mxu0 %v2265
    %2732 = vmatpush.msra.mxu0 %v2263
    %2733 = vmatpush.msra.mxu0 %v2261
    %2734 = vmatpush.msra.mxu0 %v2259
    %2735 = vmatmul.f32.gmra.mxu0 %v2712
    %v2736 = vpop.f32.mrf.mxu0
    %v2737 = vadd.f32 0.0, %v2736
    %2738 = vdwg.mxu0
    %2739 = vmatpush.msra.mxu0 0.0
    %2740 = vmatpush.msra.mxu0 0.0
    %2741 = vmatpush.msra.mxu0 0.0
    %2742 = vmatpush.msra.mxu0 0.0
    %2743 = vmatpush.msra.mxu0 0.0
    %2744 = vmatpush.msra.mxu0 0.0
    %2745 = vmatpush.msra.mxu0 0.0
    %2746 = vmatpush.msra.mxu0 0.0
    %2747 = vmatpush.msra.mxu0 0.0
    %2748 = vmatpush.msra.mxu0 0.0
    %2749 = vmatpush.msra.mxu0 0.0
    %2750 = vmatpush.msra.mxu0 0.0
    %2751 = vmatpush.msra.mxu0 0.0
    %2752 = vmatpush.msra.mxu0 0.0
    %2753 = vmatpush.msra.mxu0 %v2293
    %2754 = vmatpush.msra.mxu0 %v2291
    %2755 = vmatmul.f32.gmra.mxu0 %v2717
    %v2756 = vpop.f32.mrf.mxu0
    %v2757 = vadd.f32 %v2737, %v2756
    %2758 = vdwg.mxu0
    %2759 = vmatpush.msra.mxu0 %v2290
    %2760 = vmatpush.msra.mxu0 %v2288
    %2761 = vmatpush.msra.mxu0 %v2286
    %2762 = vmatpush.msra.mxu0 %v2284
    %2763 = vmatpush.msra.mxu0 %v2282
    %2764 = vmatpush.msra.mxu0 %v2280
    %2765 = vmatpush.msra.mxu0 %v2278
    %2766 = vmatpush.msra.mxu0 %v2276
    %2767 = vmatpush.msra.mxu0 %v2274
    %2768 = vmatpush.msra.mxu0 %v2272
    %2769 = vmatpush.msra.mxu0 %v2270
    %2770 = vmatpush.msra.mxu0 %v2268
    %2771 = vmatpush.msra.mxu0 %v2266
    %2772 = vmatpush.msra.mxu0 %v2264
    %2773 = vmatpush.msra.mxu0 %v2262
    %2774 = vmatpush.msra.mxu0 %v2260
    %2775 = vmatmul.f32.gmra.mxu0 %v2712
    %v2776 = vpop.f32.mrf.mxu0
    %v2777 = vadd.f32 0.0, %v2776
    %2778 = vdwg.mxu0
    %2779 = vmatpush.msra.mxu0 0.0
    %2780 = vmatpush.msra.mxu0 0.0
    %2781 = vmatpush.msra.mxu0 0.0
    %2782 = vmatpush.msra.mxu0 0.0
    %2783 = vmatpush.msra.mxu0 0.0
    %2784 = vmatpush.msra.mxu0 0.0
    %2785 = vmatpush.msra.mxu0 0.0
    %2786 = vmatpush.msra.mxu0 0.0
    %2787 = vmatpush.msra.mxu0 0.0
    %2788 = vmatpush.msra.mxu0 0.0
    %2789 = vmatpush.msra.mxu0 0.0
    %2790 = vmatpush.msra.mxu0 0.0
    %2791 = vmatpush.msra.mxu0 0.0
    %2792 = vmatpush.msra.mxu0 0.0
    %2793 = vmatpush.msra.mxu0 %v2294
    %2794 = vmatpush.msra.mxu0 %v2292
    %2795 = vmatmul.f32.gmra.mxu0 %v2717
    %v2796 = vpop.f32.mrf.mxu0
    %v2797 = vadd.f32 %v2777, %v2796
    %2798 = vdwg.mxu0
    %v2799 = vadd.f32 %v2708, %v2757
    %v2800 = vadd.f32 %v2709, %v2797
    %v2801 = vmax.f32 %v2384, %v2799
    %v2802 = vmax.f32 %v2385, %v2800
    %2805 = vrot.lane.b32.xlu0 %v2801, 48
    %v2806 = vpop.permute.xlu0 %2805
    %2807 = vrot.lane.b32.xlu0 %v2802, 48
    %v2808 = vpop.permute.xlu0 %2807
    %vm2809 = vcmask 392192
    %v2810 = vsel %vm2809, %v2806, %v2808
    %v2812 = vmax.f32 %v2801, %v2810
    %v2813 = vld [vmem:[%s4] sm:$0x1]
    %v2815 = vperm.slane %v2813, 0
    %v2817 = vadd.f32 %v2812, %v2815
    %v2818 = vmax.f32 %v2817, 0.0
    %v2819 = vld [vmem:[%s5] sm:$0xff]
    %v2820 = vld [vmem:[%s5 + $0x8] sm:$0xff]
    %v2821 = vld [vmem:[%s5 + $0x10] sm:$0xff]
    %v2822 = vld [vmem:[%s5 + $0x18] sm:$0xff]
    %v2823 = vld [vmem:[%s5 + $0x20] sm:$0xff]
    %v2824 = vld [vmem:[%s5 + $0x28] sm:$0xff]
    %v2825 = vld [vmem:[%s5 + $0x30] sm:$0xff]
    %v2826 = vld [vmem:[%s5 + $0x38] sm:$0xff]
    %v2827 = vld [vmem:[%s5 + $0x40] sm:$0xff]
    %v2828 = vld [vmem:[%s5 + $0x48] sm:$0xff]
    %s2829 = scalar_lea.vmem %s5, 80
    %v2830 = vld [vmem:[%s2829] sm:$0xff]
    %v2831 = vld [vmem:[%s2829 + $0x8] sm:$0xff]
    %v2832 = vld [vmem:[%s2829 + $0x10] sm:$0xff]
    %v2833 = vld [vmem:[%s2829 + $0x18] sm:$0xff]
    %v2834 = vld [vmem:[%s2829 + $0x20] sm:$0xff]
    %v2835 = vld [vmem:[%s2829 + $0x28] sm:$0xff]
    %v2836 = vld [vmem:[%s2829 + $0x30] sm:$0xff]
    %v2837 = vld [vmem:[%s2829 + $0x38] sm:$0xff]
    %v2838 = vld [vmem:[%s2829 + $0x40] sm:$0xff]
    %v2839 = vld [vmem:[%s2829 + $0x48] sm:$0xff]
    %v2841 = vrot.slane %v2818, 2
    %vm2842 = vcmask 654336
    %v2843 = vsel %vm2842, %v2841, 0
    %2845 = vmatpush.msra.mxu0 0.0
    %2846 = vmatpush.msra.mxu0 0.0
    %2847 = vmatpush.msra.mxu0 0.0
    %2848 = vmatpush.msra.mxu0 0.0
    %2849 = vmatpush.msra.mxu0 0.0
    %2850 = vmatpush.msra.mxu0 0.0
    %2851 = vmatpush.msra.mxu0 %v2839
    %2852 = vmatpush.msra.mxu0 %v2838
    %2853 = vmatpush.msra.mxu0 %v2837
    %2854 = vmatpush.msra.mxu0 %v2836
    %2855 = vmatpush.msra.mxu0 %v2835
    %2856 = vmatpush.msra.mxu0 %v2834
    %2857 = vmatpush.msra.mxu0 %v2833
    %2858 = vmatpush.msra.mxu0 %v2832
    %2859 = vmatpush.msra.mxu0 %v2831
    %2860 = vmatpush.msra.mxu0 %v2830
    %2861 = vmatmul.f32.gmra.mxu0 %v2843
    %v2862 = vpop.f32.mrf.mxu0
    %v2863 = vadd.f32 0.0, %v2862
    %2864 = vdwg.mxu0
    %v2865 = vsel %vm2842, %v2818, 0
    %2867 = vmatpush.msra.mxu0 0.0
    %2868 = vmatpush.msra.mxu0 0.0
    %2869 = vmatpush.msra.mxu0 0.0
    %2870 = vmatpush.msra.mxu0 0.0
    %2871 = vmatpush.msra.mxu0 0.0
    %2872 = vmatpush.msra.mxu0 0.0
    %2873 = vmatpush.msra.mxu0 %v2828
    %2874 = vmatpush.msra.mxu0 %v2827
    %2875 = vmatpush.msra.mxu0 %v2826
    %2876 = vmatpush.msra.mxu0 %v2825
    %2877 = vmatpush.msra.mxu0 %v2824
    %2878 = vmatpush.msra.mxu0 %v2823
    %2879 = vmatpush.msra.mxu0 %v2822
    %2880 = vmatpush.msra.mxu0 %v2821
    %2881 = vmatpush.msra.mxu0 %v2820
    %2882 = vmatpush.msra.mxu0 %v2819
    %2883 = vmatmul.f32.gmra.mxu0 %v2865
    %v2884 = vpop.f32.mrf.mxu0
    %v2885 = vadd.f32 %v2863, %v2884
    %2886 = vdwg.mxu0
    %s2887 = scalar_lea.vmem %s5, 160
    %v2888 = vld [vmem:[%s2887] sm:$0xff]
    %v2889 = vld [vmem:[%s2887 + $0x8] sm:$0xff]
    %v2890 = vld [vmem:[%s2887 + $0x10] sm:$0xff]
    %v2891 = vld [vmem:[%s2887 + $0x18] sm:$0xff]
    %v2892 = vld [vmem:[%s2887 + $0x20] sm:$0xff]
    %v2893 = vld [vmem:[%s2887 + $0x28] sm:$0xff]
    %v2894 = vld [vmem:[%s2887 + $0x30] sm:$0xff]
    %v2895 = vld [vmem:[%s2887 + $0x38] sm:$0xff]
    %v2896 = vld [vmem:[%s2887 + $0x40] sm:$0xff]
    %v2897 = vld [vmem:[%s2887 + $0x48] sm:$0xff]
    %v2898 = vrot.slane %v2818, 4
    %v2899 = vsel %vm2842, %v2898, 0
    %2901 = vmatpush.msra.mxu0 0.0
    %2902 = vmatpush.msra.mxu0 0.0
    %2903 = vmatpush.msra.mxu0 0.0
    %2904 = vmatpush.msra.mxu0 0.0
    %2905 = vmatpush.msra.mxu0 0.0
    %2906 = vmatpush.msra.mxu0 0.0
    %2907 = vmatpush.msra.mxu0 %v2897
    %2908 = vmatpush.msra.mxu0 %v2896
    %2909 = vmatpush.msra.mxu0 %v2895
    %2910 = vmatpush.msra.mxu0 %v2894
    %2911 = vmatpush.msra.mxu0 %v2893
    %2912 = vmatpush.msra.mxu0 %v2892
    %2913 = vmatpush.msra.mxu0 %v2891
    %2914 = vmatpush.msra.mxu0 %v2890
    %2915 = vmatpush.msra.mxu0 %v2889
    %2916 = vmatpush.msra.mxu0 %v2888
    %2917 = vmatmul.f32.gmra.mxu0 %v2899
    %v2918 = vpop.f32.mrf.mxu0
    %v2919 = vadd.f32 0.0, %v2918
    %2920 = vdwg.mxu0
    %v2921 = vadd.f32 %v2885, %v2919
    %s2922 = scalar_lea.vmem %s5, 240
    %v2923 = vld [vmem:[%s2922] sm:$0xff]
    %v2924 = vld [vmem:[%s2922 + $0x8] sm:$0xff]
    %v2925 = vld [vmem:[%s2922 + $0x10] sm:$0xff]
    %v2926 = vld [vmem:[%s2922 + $0x18] sm:$0xff]
    %v2927 = vld [vmem:[%s2922 + $0x20] sm:$0xff]
    %v2928 = vld [vmem:[%s2922 + $0x28] sm:$0xff]
    %v2929 = vld [vmem:[%s2922 + $0x30] sm:$0xff]
    %v2930 = vld [vmem:[%s2922 + $0x38] sm:$0xff]
    %v2931 = vld [vmem:[%s2922 + $0x40] sm:$0xff]
    %v2932 = vld [vmem:[%s2922 + $0x48] sm:$0xff]
    %v2933 = vrot.slane %v2818, 6
    %v2934 = vsel %vm2842, %v2933, 0
    %2936 = vmatpush.msra.mxu0 0.0
    %2937 = vmatpush.msra.mxu0 0.0
    %2938 = vmatpush.msra.mxu0 0.0
    %2939 = vmatpush.msra.mxu0 0.0
    %2940 = vmatpush.msra.mxu0 0.0
    %2941 = vmatpush.msra.mxu0 0.0
    %2942 = vmatpush.msra.mxu0 %v2932
    %2943 = vmatpush.msra.mxu0 %v2931
    %2944 = vmatpush.msra.mxu0 %v2930
    %2945 = vmatpush.msra.mxu0 %v2929
    %2946 = vmatpush.msra.mxu0 %v2928
    %2947 = vmatpush.msra.mxu0 %v2927
    %2948 = vmatpush.msra.mxu0 %v2926
    %2949 = vmatpush.msra.mxu0 %v2925
    %2950 = vmatpush.msra.mxu0 %v2924
    %2951 = vmatpush.msra.mxu0 %v2923
    %2952 = vmatmul.f32.gmra.mxu0 %v2934
    %v2953 = vpop.f32.mrf.mxu0
    %v2954 = vadd.f32 0.0, %v2953
    %2955 = vdwg.mxu0
    %v2956 = vadd.f32 %v2921, %v2954
    %v2957 = vld [vmem:[%s6] sm:$0x1]
    %v2959 = vperm.slane %v2957, 0
    %v2961 = vadd.f32 %v2956, %v2959
    %v2962 = vmax.f32 %v2961, 0.0
    %v2963 = vld [vmem:[%s7] sm:$0xff]
    %v2964 = vld [vmem:[%s7 + $0x8] sm:$0xff]
    %v2965 = vld [vmem:[%s7 + $0x10] sm:$0xff]
    %v2966 = vld [vmem:[%s7 + $0x18] sm:$0xff]
    %v2967 = vld [vmem:[%s7 + $0x20] sm:$0xff]
    %v2968 = vld [vmem:[%s7 + $0x28] sm:$0xff]
    %v2969 = vld [vmem:[%s7 + $0x30] sm:$0x3]
    %v2970 = vld [vmem:[%s8] sm:$0x1]
    %v2972 = vperm.slane %v2970, 0
    %vm2974 = vcmask 408576
    %v2976 = vsel %vm2974, %v2962, 0
    %vm2978 = vcmask 1041408
    %v2980 = vsel %vm2978, %v2969, 0
    %2982 = vmatpush.msra.mxu0 0.0
    %2983 = vmatpush.msra.mxu0 0.0
    %2984 = vmatpush.msra.mxu0 0.0
    %2985 = vmatpush.msra.mxu0 0.0
    %2986 = vmatpush.msra.mxu0 0.0
    %2987 = vmatpush.msra.mxu0 0.0
    %2988 = vmatpush.msra.mxu0 0.0
    %2989 = vmatpush.msra.mxu0 0.0
    %2990 = vmatpush.msra.mxu0 0.0
    %2991 = vmatpush.msra.mxu0 %v2980
    %2992 = vmatpush.msra.mxu0 %v2968
    %2993 = vmatpush.msra.mxu0 %v2967
    %2994 = vmatpush.msra.mxu0 %v2966
    %2995 = vmatpush.msra.mxu0 %v2965
    %2996 = vmatpush.msra.mxu0 %v2964
    %2997 = vmatpush.msra.mxu0 %v2963
    %2998 = vmatmul.f32.gmra.mxu0 %v2976
    %v2999 = vpop.f32.mrf.mxu0
    %v3000 = vadd.f32 %v2972, %v2999
    %3001 = vdwg.mxu0
    %vm3002 = vcmask 91136
    %v3003 = vsel %vm3002, %v3000, -inf
    %3004 = vmax.xlane.f32.xlu0 %v3003
    %v3005 = vpop.xlane.xlu0 %3004
    %v3006 = vsub.f32 %v3000, %v3005
    %v3007 = vmul.f32 %v3006, 1.442695
    %v3008 = vpow.pop %v3007
    %v3009 = vsel %vm3002, %v3008, 0.0
    %3010 = vadd.xlane.f32.xlu0 %v3009
    %v3011 = vpop.xlane.xlu0 %3010
    %v3012 = vlog2.pop %v3011
    %v3013 = vmul.f32 %v3012, 0.6931472
    %v3014 = vsub.f32 %v3006, %v3013
    %3015 = vst.msk [vmem:[#allocation5] sm:$0x3] %vm3002, %v3014
    // Predicated region
    $region42: #{nn_for_mnist_forward.1} parent=1 // pred_check
      _
    $region43: #{nn_for_mnist_forward.1} parent=1 // pred_check_branch
      %3017 = sbr.rel (0) target = $region45
    $region44: #{nn_for_mnist_forward.1} parent=1 // pred_region
      %3019 = vsyncadd [#allocation4], 0
      %s3021 = sshll.u32 [#allocation5], 4
      %s3022 = int_to_ptr.vmem [resolvable:$true] %s3021
      %s3023 = sshll.u32 %s9, 4
      %s3024 = int_to_ptr.hbm [resolvable:$true] %s3023
      %3026 = dma.vmem_to_hbm [thread:$0]  %s3022, 32, %s3024, [#allocation4]
    $region45: #{nn_for_mnist_forward.1} parent=1 // pred_fallthru
      _
    // Predicated region
    $region46: #{nn_for_mnist_forward.1} parent=1 // pred_check
      _
    $region47: #{nn_for_mnist_forward.1} parent=1 // pred_check_branch
      %3028 = sbr.rel (0) target = $region49
    $region48: #{nn_for_mnist_forward.1} parent=1 // pred_region
      %3030 = dma.done [#allocation4], 32
    $region49: #{nn_for_mnist_forward.1} parent=1 // pred_fallthru
      _
    %3031 = vsyncpa [#allocation3], 1
    %3032 = vsyncpa [#allocation4], 1

</llo_original>
